<compile_context>
chip_gen: v7x
topology: tpu7x:2x2x1
jax: 0.10.0
libtpu: 0.0.40
codegen_flags: <defaults>
</compile_context>

<pallas_src>
import functools

import jax
import jax.numpy as jnp
from jax.experimental import pallas as pl
from jax.experimental.pallas import tpu as pltpu


# ---------------------------------------------------------------------------
# Fused conv-as-matmul kernel:  out = act( BN?( x @ w + b ) )
#   grid = (n_m, n_k); K is the trailing "arbitrary" reduction axis.
#   The output block is the accumulator (f32, resident across K); epilogue
#   (bias + batch-stat BN + LeakyReLU) runs on the last K step.
#   BN requires the full M block resident (n_m == 1 when use_bn=True).
# ---------------------------------------------------------------------------
def _matmul_bn_act_kernel(x_ref, w_ref, b_ref, g_ref, bt_ref, o_ref,
                          *, use_bn, act, n_k):
    k = pl.program_id(1)

    prod = jnp.dot(x_ref[...], w_ref[...], preferred_element_type=jnp.float32)

    @pl.when(k == 0)
    def _():
        o_ref[...] = prod

    @pl.when(k > 0)
    def _():
        o_ref[...] += prod

    @pl.when(k == n_k - 1)
    def _():
        y = o_ref[...] + b_ref[...]
        if use_bn:
            # batch statistics over rows (B*OH*OW), per output channel (lanes)
            mean = jnp.mean(y, axis=0, keepdims=True)
            var = jnp.mean((y - mean) * (y - mean), axis=0, keepdims=True)
            y = (y - mean) * jax.lax.rsqrt(var + 1e-5) * g_ref[...] + bt_ref[...]
        if act == "leaky":
            y = jnp.where(y > 0, y, 0.2 * y)
        o_ref[...] = y.astype(o_ref.dtype)


def _pick_m_tile(m, target=2048):
    """Largest divisor of m that is <= target and a multiple of 8 (else m)."""
    if m <= target:
        return m
    t = (target // 8) * 8
    while t >= 8:
        if m % t == 0:
            return t
        t -= 8
    return m


def fused_matmul_bn_act(x, w, b, gamma, beta, *, use_bn, act,
                        m_tile=None, k_tile=None):
    M, K = x.shape
    Kw, N = w.shape
    assert K == Kw
    if use_bn:
        m_tile = M                     # batch-stat BN needs the full M block
    if m_tile is None:
        m_tile = M
    if k_tile is None or K % k_tile != 0:
        k_tile = K
    assert M % m_tile == 0
    n_m, n_k = M // m_tile, K // k_tile

    kernel = functools.partial(_matmul_bn_act_kernel,
                               use_bn=use_bn, act=act, n_k=n_k)
    return pl.pallas_call(
        kernel,
        out_shape=jax.ShapeDtypeStruct((M, N), jnp.float32),
        grid_spec=pltpu.PrefetchScalarGridSpec(
            num_scalar_prefetch=0,
            grid=(n_m, n_k),
            in_specs=[
                pl.BlockSpec((m_tile, k_tile), lambda m, k: (m, k)),
                pl.BlockSpec((k_tile, N), lambda m, k: (k, 0)),
                pl.BlockSpec((1, N), lambda m, k: (0, 0)),
                pl.BlockSpec((1, N), lambda m, k: (0, 0)),
                pl.BlockSpec((1, N), lambda m, k: (0, 0)),
            ],
            out_specs=pl.BlockSpec((m_tile, N), lambda m, k: (m, 0)),
        ),
        compiler_params=pltpu.CompilerParams(
            dimension_semantics=("parallel", "arbitrary")),
    )(x, w, b, gamma, beta)


# ---------------------------------------------------------------------------
# Fused FC head kernel:
#   h   = LeakyReLU( BN1d( x @ w1 + b1 ) )    (x: (B, 6272), w1: (6272, 1024))
#   out = sigmoid( h @ w2.T + b2 )            (w2: (nout, 1024))
# grid = (n_k,) over the 6272-wide contraction; fc1 accumulates in a small
# (B, 1024) VMEM scratch; the whole BN/LeakyReLU/fc2/sigmoid epilogue runs on
# the last K step, so fc2 never leaves VMEM and no extra pallas_call is needed.
# ---------------------------------------------------------------------------
def _fc_head_kernel(x_ref, w1_ref, b1_ref, g_ref, bt_ref, w2_ref, b2_ref,
                    o_ref, acc_ref, *, n_k, nout):
    k = pl.program_id(0)

    prod = jnp.dot(x_ref[...], w1_ref[...], preferred_element_type=jnp.float32)

    @pl.when(k == 0)
    def _():
        acc_ref[...] = prod

    @pl.when(k > 0)
    def _():
        acc_ref[...] += prod

    @pl.when(k == n_k - 1)
    def _():
        h = acc_ref[...] + b1_ref[...]
        mean = jnp.mean(h, axis=0, keepdims=True)
        var = jnp.mean((h - mean) * (h - mean), axis=0, keepdims=True)
        h = (h - mean) * jax.lax.rsqrt(var + 1e-5) * g_ref[...] + bt_ref[...]
        h = jnp.where(h > 0, h, 0.2 * h)
        if nout == 1:
            # fc2 as a per-row lane reduction (VPU mul + XLU reduce), not MXU.
            logit = jnp.sum(h * w2_ref[...], axis=1, keepdims=True)
        else:
            logit = jax.lax.dot_general(
                h, w2_ref[...], (((1,), (1,)), ((), ())),
                preferred_element_type=jnp.float32)
        logit = logit + b2_ref[...]
        # sigmoid: exp on EUP, exact reciprocal (keeps the 1e-4 check intact).
        o_ref[...] = pl.reciprocal(1.0 + jnp.exp(-logit),
                                   approx=False).astype(o_ref.dtype)


def fc_head(x, w1, b1, gamma, beta, w2, b2, *, k_tile=None):
    M, K = x.shape
    Kw, N = w1.shape
    assert K == Kw
    nout = w2.shape[0]
    if k_tile is None or K % k_tile != 0:
        k_tile = K
    n_k = K // k_tile

    kernel = functools.partial(_fc_head_kernel, n_k=n_k, nout=nout)
    return pl.pallas_call(
        kernel,
        out_shape=jax.ShapeDtypeStruct((M, nout), jnp.float32),
        grid_spec=pltpu.PrefetchScalarGridSpec(
            num_scalar_prefetch=0,
            grid=(n_k,),
            in_specs=[
                pl.BlockSpec((M, k_tile), lambda k: (0, k)),
                pl.BlockSpec((k_tile, N), lambda k: (k, 0)),
                pl.BlockSpec((1, N), lambda k: (0, 0)),
                pl.BlockSpec((1, N), lambda k: (0, 0)),
                pl.BlockSpec((1, N), lambda k: (0, 0)),
                pl.BlockSpec((nout, N), lambda k: (0, 0)),
                pl.BlockSpec((1, nout), lambda k: (0, 0)),
            ],
            out_specs=pl.BlockSpec((M, nout), lambda k: (0, 0)),
            scratch_shapes=[pltpu.VMEM((M, N), jnp.float32)],
        ),
        compiler_params=pltpu.CompilerParams(
            dimension_semantics=("arbitrary",)),
    )(x, w1, b1, gamma, beta, w2, b2)


# ---------------------------------------------------------------------------
# Glue: NHWC im2col (data rearrangement only, no FLOPs).
# Column order is (kh, kw, c); weights are prepared to match.
# ---------------------------------------------------------------------------
def im2col_nhwc(x, ksize, stride, pad):
    B, H, W, C = x.shape
    xp = jnp.pad(x, ((0, 0), (pad, pad), (pad, pad), (0, 0)))
    OH = (H + 2 * pad - ksize) // stride + 1
    OW = (W + 2 * pad - ksize) // stride + 1
    cols = []
    for kh in range(ksize):
        for kw in range(ksize):
            cols.append(xp[:, kh:kh + stride * OH:stride,
                           kw:kw + stride * OW:stride, :])
    patches = jnp.stack(cols, axis=3)          # (B, OH, OW, k*k, C)
    return patches.reshape(B * OH * OW, ksize * ksize * C), OH, OW


# ---------------------------------------------------------------------------
# Discriminator parameters (PyTorch layout, mimics initialize_weights):
#   Conv2d / Linear weights ~ N(0, 0.02), biases zero, BN gamma=1, beta=0.
# ---------------------------------------------------------------------------
def init_discriminator_params(key, input_dim=1, output_dim=1, input_size=28):
    ks = jax.random.split(key, 4)
    feat = 128 * (input_size // 4) * (input_size // 4)
    std = 0.02
    return {
        "w_conv1": jax.random.normal(ks[0], (64, input_dim, 4, 4), jnp.float32) * std,
        "b_conv1": jnp.zeros((64,), jnp.float32),
        "w_conv2": jax.random.normal(ks[1], (128, 64, 4, 4), jnp.float32) * std,
        "b_conv2": jnp.zeros((128,), jnp.float32),
        "bn2_gamma": jnp.ones((128,), jnp.float32),
        "bn2_beta": jnp.zeros((128,), jnp.float32),
        "w_fc1": jax.random.normal(ks[2], (1024, feat), jnp.float32) * std,
        "b_fc1": jnp.zeros((1024,), jnp.float32),
        "bn1d_gamma": jnp.ones((1024,), jnp.float32),
        "bn1d_beta": jnp.zeros((1024,), jnp.float32),
        "w_fc2": jax.random.normal(ks[3], (output_dim, 1024), jnp.float32) * std,
        "b_fc2": jnp.zeros((output_dim,), jnp.float32),
    }


def prepare_params(p, input_size=28):
    """One-time layout prep: kernel-friendly weight layouts (NHWC feature order)."""
    s4 = input_size // 4
    # Conv weights OIHW -> (KH, KW, I, O) flattened to ((kh,kw,i), O)
    w1 = jnp.transpose(p["w_conv1"], (2, 3, 1, 0)).reshape(-1, 64)
    w2 = jnp.transpose(p["w_conv2"], (2, 3, 1, 0)).reshape(-1, 128)
    # fc1 expects the PyTorch C-major flatten of conv2's NCHW output; our
    # activations are NHWC-flat, so permute fc1's columns once instead of
    # transposing the activation every forward pass.
    wfc1 = p["w_fc1"].reshape(1024, 128, s4, s4)                 # (n, c, h, w)
    wfc1 = jnp.transpose(wfc1, (2, 3, 1, 0)).reshape(128 * s4 * s4, 1024)
    return {
        "w1": w1, "b1": p["b_conv1"][None, :],
        "w2": w2, "b2": p["b_conv2"][None, :],
        "g2": p["bn2_gamma"][None, :], "bt2": p["bn2_beta"][None, :],
        "wfc1": wfc1, "bfc1": p["b_fc1"][None, :],
        "g1d": p["bn1d_gamma"][None, :], "bt1d": p["bn1d_beta"][None, :],
        "wfc2": p["w_fc2"],                 # (nout, 1024)
        "bfc2": p["b_fc2"][None, :],        # (1, nout)
    }


# ---------------------------------------------------------------------------
# Forward pass: all matmul / BN / activation compute runs in Pallas kernels;
# activations stay NHWC, no layout transposes between layers.
# ---------------------------------------------------------------------------
def discriminator_forward(x_nchw, pp):
    B = x_nchw.shape[0]
    f32 = jnp.float32
    x = jnp.transpose(x_nchw, (0, 2, 3, 1))               # NHWC (C=1: trivial)

    ones64 = jnp.ones((1, 64), f32)
    zeros64 = jnp.zeros((1, 64), f32)

    # conv1: Conv2d(input_dim, 64, 4, 2, 1) + LeakyReLU(0.2)  (no BN -> tile M)
    p1, oh1, ow1 = im2col_nhwc(x, 4, 2, 1)                # (B*14*14, Cin*16)
    y1 = fused_matmul_bn_act(p1, pp["w1"], pp["b1"], ones64, zeros64,
                             use_bn=False, act="leaky",
                             m_tile=_pick_m_tile(B * oh1 * ow1))
    y1 = y1.reshape(B, oh1, ow1, 64)                      # NHWC, no transpose

    # conv2: Conv2d(64, 128, 4, 2, 1) + BatchNorm2d + LeakyReLU(0.2)
    # M stays whole (batch statistics); K=1024 tiled into 4 pipelined steps.
    p2, oh2, ow2 = im2col_nhwc(y1, 4, 2, 1)               # (B*7*7, 1024)
    y2 = fused_matmul_bn_act(p2, pp["w2"], pp["b2"], pp["g2"], pp["bt2"],
                             use_bn=True, act="leaky", k_tile=256)

    # NHWC-flat features; fc1 columns were pre-permuted to match.
    xf = y2.reshape(B, -1)                                # (B, 6272)

    # fc1 + BatchNorm1d + LeakyReLU + fc2 + Sigmoid, fully fused in one kernel.
    # 6272 = 7 * 896, so k_tile=896 gives 7 double-buffered weight-stream steps.
    out = fc_head(xf, pp["wfc1"], pp["bfc1"], pp["g1d"], pp["bt1d"],
                  pp["wfc2"], pp["bfc2"], k_tile=896)
    return out


# ---------------------------------------------------------------------------
# Pure-JAX reference (PyTorch-layout params) for the correctness check.
# ---------------------------------------------------------------------------
def reference_forward(x, params, input_size=28):
    B = x.shape[0]

    def conv(x, w, b, stride, pad):
        y = jax.lax.conv_general_dilated(
            x, w, (stride, stride), [(pad, pad), (pad, pad)],
            dimension_numbers=("NCHW", "OIHW", "NCHW"))
        return y + b[None, :, None, None]

    def bn(y, gamma, beta, axes, shape):
        mean = jnp.mean(y, axis=axes, keepdims=True)
        var = jnp.mean((y - mean) ** 2, axis=axes, keepdims=True)
        return (y - mean) / jnp.sqrt(var + 1e-5) * gamma.reshape(shape) \
            + beta.reshape(shape)

    leaky = lambda v: jnp.where(v > 0, v, 0.2 * v)

    y = leaky(conv(x, params["w_conv1"], params["b_conv1"], 2, 1))
    y = conv(y, params["w_conv2"], params["b_conv2"], 2, 1)
    y = leaky(bn(y, params["bn2_gamma"], params["bn2_beta"],
                 (0, 2, 3), (1, 128, 1, 1)))
    y = y.reshape(B, 128 * (input_size // 4) * (input_size // 4))
    y = y @ params["w_fc1"].T + params["b_fc1"]
    y = leaky(bn(y, params["bn1d_gamma"], params["bn1d_beta"], (0,), (1, 1024)))
    y = y @ params["w_fc2"].T + params["b_fc2"]
    return jax.nn.sigmoid(y)


if __name__ == "__main__":
    key = jax.random.PRNGKey(0)
    k_x, k_p = jax.random.split(key)

    B, C, H, W = 2, 1, 28, 28            # D = discriminator(input_size=28)
    x = jax.random.normal(k_x, (B, C, H, W), jnp.float32)
    params = init_discriminator_params(k_p, input_dim=C, output_dim=1,
                                       input_size=H)
    pp = prepare_params(params, input_size=H)

    fwd = jax.jit(discriminator_forward)
    out = jax.block_until_ready(fwd(x, pp))
    assert out.shape == (B, 1), out.shape

    ref = jax.block_until_ready(reference_forward(x, params, input_size=H))
    assert jnp.allclose(out, ref, atol=1e-4, rtol=1e-4), (out, ref)

    print("KERNEL_OK")
</pallas_src>

<mosaic_0001>
module attributes {stable_mosaic.version = 11 : i64} {
  func.func @_matmul_bn_act_kernel(%arg0: i32, %arg1: i32, %arg2: memref<392x16xf32, #tpu.memory_space<vmem>>, %arg3: memref<16x64xf32, #tpu.memory_space<vmem>>, %arg4: memref<1x64xf32, #tpu.memory_space<vmem>>, %arg5: memref<1x64xf32, #tpu.memory_space<vmem>>, %arg6: memref<1x64xf32, #tpu.memory_space<vmem>>, %arg7: memref<392x64xf32, #tpu.memory_space<vmem>>) attributes {dimension_semantics = [#tpu.dimension_semantics<parallel>, #tpu.dimension_semantics<arbitrary>], iteration_bounds = array<i64: 1, 1>, scalar_prefetch = 0 : i64, scratch_operands = 0 : i64, tpu.core_type = #tpu.core_type<tc>, window_params = [{transform_indices = @transform_0, window_bounds = array<i64: 392, 16>}, {transform_indices = @transform_1, window_bounds = array<i64: 16, 64>}, {pipeline_mode = #tpu.pipeline_mode<synchronous>, transform_indices = @transform_2, window_bounds = array<i64: 1, 64>}, {pipeline_mode = #tpu.pipeline_mode<synchronous>, transform_indices = @transform_3, window_bounds = array<i64: 1, 64>}, {pipeline_mode = #tpu.pipeline_mode<synchronous>, transform_indices = @transform_4, window_bounds = array<i64: 1, 64>}, {transform_indices = @transform_5, window_bounds = array<i64: 392, 64>}]} {
    %c0 = arith.constant 0 : index
    %c0_0 = arith.constant 0 : index
    %0 = vector.load %arg2[%c0, %c0_0] : memref<392x16xf32, #tpu.memory_space<vmem>>, vector<392x16xf32>
    %c0_1 = arith.constant 0 : index
    %c0_2 = arith.constant 0 : index
    %1 = vector.load %arg3[%c0_1, %c0_2] : memref<16x64xf32, #tpu.memory_space<vmem>>, vector<16x64xf32>
    %cst = arith.constant dense<0.000000e+00> : vector<392x64xf32>
    %2 = tpu.matmul %0, %1, %cst {dimension_numbers = #tpu.dot_dimension_numbers<[1], [0], [0], [1], [0, 0, 1, 1], [], []>} : vector<392x16xf32>, vector<16x64xf32>, vector<392x64xf32> -> vector<392x64xf32>
    %c0_i32 = arith.constant 0 : i32
    %3 = arith.cmpi eq, %arg1, %c0_i32 : i32
    %4 = arith.extui %3 : i1 to i32
    %c0_i32_3 = arith.constant 0 : i32
    %5 = arith.cmpi ne, %4, %c0_i32_3 : i32
    scf.if %5 {
      %c0_8 = arith.constant 0 : index
      %c0_9 = arith.constant 0 : index
      %12 = vector.load %arg7[%c0_8, %c0_9] : memref<392x64xf32, #tpu.memory_space<vmem>>, vector<392x64xf32>
      tpu.vector_store %arg7[%c0_8, %c0_9], %2 {strides = array<i32>} : memref<392x64xf32, #tpu.memory_space<vmem>>, vector<392x64xf32>,
    } else {
    }
    %c0_i32_4 = arith.constant 0 : i32
    %6 = arith.cmpi sgt, %arg1, %c0_i32_4 : i32
    %7 = arith.extui %6 : i1 to i32
    %c0_i32_5 = arith.constant 0 : i32
    %8 = arith.cmpi ne, %7, %c0_i32_5 : i32
    scf.if %8 {
      %c0_8 = arith.constant 0 : index
      %c0_9 = arith.constant 0 : index
      %12 = vector.load %arg7[%c0_8, %c0_9] : memref<392x64xf32, #tpu.memory_space<vmem>>, vector<392x64xf32>
      %13 = arith.addf %12, %2 : vector<392x64xf32>
      %c0_10 = arith.constant 0 : index
      %c0_11 = arith.constant 0 : index
      %14 = vector.load %arg7[%c0_10, %c0_11] : memref<392x64xf32, #tpu.memory_space<vmem>>, vector<392x64xf32>
      tpu.vector_store %arg7[%c0_10, %c0_11], %13 {strides = array<i32>} : memref<392x64xf32, #tpu.memory_space<vmem>>, vector<392x64xf32>,
    } else {
    }
    %c0_i32_6 = arith.constant 0 : i32
    %9 = arith.cmpi eq, %arg1, %c0_i32_6 : i32
    %10 = arith.extui %9 : i1 to i32
    %c0_i32_7 = arith.constant 0 : i32
    %11 = arith.cmpi ne, %10, %c0_i32_7 : i32
    scf.if %11 {
      %c0_8 = arith.constant 0 : index
      %c0_9 = arith.constant 0 : index
      %12 = vector.load %arg7[%c0_8, %c0_9] : memref<392x64xf32, #tpu.memory_space<vmem>>, vector<392x64xf32>
      %c0_10 = arith.constant 0 : index
      %c0_11 = arith.constant 0 : index
      %13 = vector.load %arg4[%c0_10, %c0_11] : memref<1x64xf32, #tpu.memory_space<vmem>>, vector<1x64xf32>
      %14 = vector.broadcast %13 : vector<1x64xf32> to vector<392x64xf32>
      %15 = arith.addf %12, %14 : vector<392x64xf32>
      %cst_12 = arith.constant 0.000000e+00 : f32
      %16 = vector.broadcast %cst_12 : f32 to vector<392x64xf32>
      %17 = arith.cmpf ogt, %15, %16 : vector<392x64xf32>
      %cst_13 = arith.constant 2.000000e-01 : f32
      %18 = vector.broadcast %cst_13 : f32 to vector<392x64xf32>
      %19 = arith.mulf %18, %15 : vector<392x64xf32>
      %20 = arith.select %17, %15, %19 : vector<392x64xi1>, vector<392x64xf32>
      %c0_14 = arith.constant 0 : index
      %c0_15 = arith.constant 0 : index
      %21 = vector.load %arg7[%c0_14, %c0_15] : memref<392x64xf32, #tpu.memory_space<vmem>>, vector<392x64xf32>
      tpu.vector_store %arg7[%c0_14, %c0_15], %20 {strides = array<i32>} : memref<392x64xf32, #tpu.memory_space<vmem>>, vector<392x64xf32>,
    } else {
    }
    return
  }
  func.func @transform_0(%arg0: i32, %arg1: i32) -> (i32, i32) {
    %c0_i32 = arith.constant 0 : i32
    return %arg0, %arg1 : i32, i32
  }
  func.func @transform_1(%arg0: i32, %arg1: i32) -> (i32, i32) {
    %c0_i32 = arith.constant 0 : i32
    %c0_i32_0 = arith.constant 0 : i32
    return %arg1, %c0_i32 : i32, i32
  }
  func.func @transform_2(%arg0: i32, %arg1: i32) -> (i32, i32) {
    %c0_i32 = arith.constant 0 : i32
    %c0_i32_0 = arith.constant 0 : i32
    %c0_i32_1 = arith.constant 0 : i32
    return %c0_i32, %c0_i32_0 : i32, i32
  }
  func.func @transform_3(%arg0: i32, %arg1: i32) -> (i32, i32) {
    %c0_i32 = arith.constant 0 : i32
    %c0_i32_0 = arith.constant 0 : i32
    %c0_i32_1 = arith.constant 0 : i32
    return %c0_i32, %c0_i32_0 : i32, i32
  }
  func.func @transform_4(%arg0: i32, %arg1: i32) -> (i32, i32) {
    %c0_i32 = arith.constant 0 : i32
    %c0_i32_0 = arith.constant 0 : i32
    %c0_i32_1 = arith.constant 0 : i32
    return %c0_i32, %c0_i32_0 : i32, i32
  }
  func.func @transform_5(%arg0: i32, %arg1: i32) -> (i32, i32) {
    %c0_i32 = arith.constant 0 : i32
    %c0_i32_0 = arith.constant 0 : i32
    return %arg0, %c0_i32 : i32, i32
  }
}

module attributes {stable_mosaic.version = 11 : i64} {
  func.func @_matmul_bn_act_kernel(%arg0: i32, %arg1: i32, %arg2: memref<98x256xf32, #tpu.memory_space<vmem>>, %arg3: memref<256x128xf32, #tpu.memory_space<vmem>>, %arg4: memref<1x128xf32, #tpu.memory_space<vmem>>, %arg5: memref<1x128xf32, #tpu.memory_space<vmem>>, %arg6: memref<1x128xf32, #tpu.memory_space<vmem>>, %arg7: memref<98x128xf32, #tpu.memory_space<vmem>>) attributes {dimension_semantics = [#tpu.dimension_semantics<parallel>, #tpu.dimension_semantics<arbitrary>], iteration_bounds = array<i64: 1, 4>, scalar_prefetch = 0 : i64, scratch_operands = 0 : i64, tpu.core_type = #tpu.core_type<tc>, window_params = [{transform_indices = @transform_0, window_bounds = array<i64: 98, 256>}, {transform_indices = @transform_1, window_bounds = array<i64: 256, 128>}, {pipeline_mode = #tpu.pipeline_mode<synchronous>, transform_indices = @transform_2, window_bounds = array<i64: 1, 128>}, {pipeline_mode = #tpu.pipeline_mode<synchronous>, transform_indices = @transform_3, window_bounds = array<i64: 1, 128>}, {pipeline_mode = #tpu.pipeline_mode<synchronous>, transform_indices = @transform_4, window_bounds = array<i64: 1, 128>}, {transform_indices = @transform_5, window_bounds = array<i64: 98, 128>}]} {
    %c0 = arith.constant 0 : index
    %c0_0 = arith.constant 0 : index
    %0 = vector.load %arg2[%c0, %c0_0] : memref<98x256xf32, #tpu.memory_space<vmem>>, vector<98x256xf32>
    %c0_1 = arith.constant 0 : index
    %c0_2 = arith.constant 0 : index
    %1 = vector.load %arg3[%c0_1, %c0_2] : memref<256x128xf32, #tpu.memory_space<vmem>>, vector<256x128xf32>
    %cst = arith.constant dense<0.000000e+00> : vector<98x128xf32>
    %2 = tpu.matmul %0, %1, %cst {dimension_numbers = #tpu.dot_dimension_numbers<[1], [0], [0], [1], [0, 0, 1, 1], [], []>} : vector<98x256xf32>, vector<256x128xf32>, vector<98x128xf32> -> vector<98x128xf32>
    %c0_i32 = arith.constant 0 : i32
    %3 = arith.cmpi eq, %arg1, %c0_i32 : i32
    %4 = arith.extui %3 : i1 to i32
    %c0_i32_3 = arith.constant 0 : i32
    %5 = arith.cmpi ne, %4, %c0_i32_3 : i32
    scf.if %5 {
      %c0_7 = arith.constant 0 : index
      %c0_8 = arith.constant 0 : index
      %12 = vector.load %arg7[%c0_7, %c0_8] : memref<98x128xf32, #tpu.memory_space<vmem>>, vector<98x128xf32>
      tpu.vector_store %arg7[%c0_7, %c0_8], %2 {strides = array<i32>} : memref<98x128xf32, #tpu.memory_space<vmem>>, vector<98x128xf32>,
    } else {
    }
    %c0_i32_4 = arith.constant 0 : i32
    %6 = arith.cmpi sgt, %arg1, %c0_i32_4 : i32
    %7 = arith.extui %6 : i1 to i32
    %c0_i32_5 = arith.constant 0 : i32
    %8 = arith.cmpi ne, %7, %c0_i32_5 : i32
    scf.if %8 {
      %c0_7 = arith.constant 0 : index
      %c0_8 = arith.constant 0 : index
      %12 = vector.load %arg7[%c0_7, %c0_8] : memref<98x128xf32, #tpu.memory_space<vmem>>, vector<98x128xf32>
      %13 = arith.addf %12, %2 : vector<98x128xf32>
      %c0_9 = arith.constant 0 : index
      %c0_10 = arith.constant 0 : index
      %14 = vector.load %arg7[%c0_9, %c0_10] : memref<98x128xf32, #tpu.memory_space<vmem>>, vector<98x128xf32>
      tpu.vector_store %arg7[%c0_9, %c0_10], %13 {strides = array<i32>} : memref<98x128xf32, #tpu.memory_space<vmem>>, vector<98x128xf32>,
    } else {
    }
    %c3_i32 = arith.constant 3 : i32
    %9 = arith.cmpi eq, %arg1, %c3_i32 : i32
    %10 = arith.extui %9 : i1 to i32
    %c0_i32_6 = arith.constant 0 : i32
    %11 = arith.cmpi ne, %10, %c0_i32_6 : i32
    scf.if %11 {
      %c0_7 = arith.constant 0 : index
      %c0_8 = arith.constant 0 : index
      %12 = vector.load %arg7[%c0_7, %c0_8] : memref<98x128xf32, #tpu.memory_space<vmem>>, vector<98x128xf32>
      %c0_9 = arith.constant 0 : index
      %c0_10 = arith.constant 0 : index
      %13 = vector.load %arg4[%c0_9, %c0_10] : memref<1x128xf32, #tpu.memory_space<vmem>>, vector<1x128xf32>
      %14 = vector.broadcast %13 : vector<1x128xf32> to vector<98x128xf32>
      %15 = arith.addf %12, %14 : vector<98x128xf32>
      %cst_11 = arith.constant dense<0.000000e+00> : vector<128xf32>
      %16 = vector.multi_reduction <add>, %15, %cst_11 [0] : vector<98x128xf32> to vector<128xf32>
      %17 = vector.shape_cast %16 : vector<128xf32> to vector<1x128xf32>
      %cst_12 = arith.constant 9.800000e+01 : f32
      %18 = vector.broadcast %cst_12 : f32 to vector<1x128xf32>
      %19 = arith.divf %17, %18 : vector<1x128xf32>
      %20 = vector.broadcast %19 : vector<1x128xf32> to vector<98x128xf32>
      %21 = arith.subf %15, %20 : vector<98x128xf32>
      %22 = vector.broadcast %19 : vector<1x128xf32> to vector<98x128xf32>
      %23 = arith.subf %15, %22 : vector<98x128xf32>
      %24 = arith.mulf %21, %23 : vector<98x128xf32>
      %cst_13 = arith.constant dense<0.000000e+00> : vector<128xf32>
      %25 = vector.multi_reduction <add>, %24, %cst_13 [0] : vector<98x128xf32> to vector<128xf32>
      %26 = vector.shape_cast %25 : vector<128xf32> to vector<1x128xf32>
      %cst_14 = arith.constant 9.800000e+01 : f32
      %27 = vector.broadcast %cst_14 : f32 to vector<1x128xf32>
      %28 = arith.divf %26, %27 : vector<1x128xf32>
      %29 = vector.broadcast %19 : vector<1x128xf32> to vector<98x128xf32>
      %30 = arith.subf %15, %29 : vector<98x128xf32>
      %cst_15 = arith.constant 9.99999974E-6 : f32
      %31 = vector.broadcast %cst_15 : f32 to vector<1x128xf32>
      %32 = arith.addf %28, %31 : vector<1x128xf32>
      %33 = math.rsqrt %32 : vector<1x128xf32>
      %34 = vector.broadcast %33 : vector<1x128xf32> to vector<98x128xf32>
      %35 = arith.mulf %30, %34 : vector<98x128xf32>
      %c0_16 = arith.constant 0 : index
      %c0_17 = arith.constant 0 : index
      %36 = vector.load %arg5[%c0_16, %c0_17] : memref<1x128xf32, #tpu.memory_space<vmem>>, vector<1x128xf32>
      %37 = vector.broadcast %36 : vector<1x128xf32> to vector<98x128xf32>
      %38 = arith.mulf %35, %37 : vector<98x128xf32>
      %c0_18 = arith.constant 0 : index
      %c0_19 = arith.constant 0 : index
      %39 = vector.load %arg6[%c0_18, %c0_19] : memref<1x128xf32, #tpu.memory_space<vmem>>, vector<1x128xf32>
      %40 = vector.broadcast %39 : vector<1x128xf32> to vector<98x128xf32>
      %41 = arith.addf %38, %40 : vector<98x128xf32>
      %cst_20 = arith.constant 0.000000e+00 : f32
      %42 = vector.broadcast %cst_20 : f32 to vector<98x128xf32>
      %43 = arith.cmpf ogt, %41, %42 : vector<98x128xf32>
      %cst_21 = arith.constant 2.000000e-01 : f32
      %44 = vector.broadcast %cst_21 : f32 to vector<98x128xf32>
      %45 = arith.mulf %44, %41 : vector<98x128xf32>
      %46 = arith.select %43, %41, %45 : vector<98x128xi1>, vector<98x128xf32>
      %c0_22 = arith.constant 0 : index
      %c0_23 = arith.constant 0 : index
      %47 = vector.load %arg7[%c0_22, %c0_23] : memref<98x128xf32, #tpu.memory_space<vmem>>, vector<98x128xf32>
      tpu.vector_store %arg7[%c0_22, %c0_23], %46 {strides = array<i32>} : memref<98x128xf32, #tpu.memory_space<vmem>>, vector<98x128xf32>,
    } else {
    }
    return
  }
  func.func @transform_0(%arg0: i32, %arg1: i32) -> (i32, i32) {
    %c0_i32 = arith.constant 0 : i32
    return %arg0, %arg1 : i32, i32
  }
  func.func @transform_1(%arg0: i32, %arg1: i32) -> (i32, i32) {
    %c0_i32 = arith.constant 0 : i32
    %c0_i32_0 = arith.constant 0 : i32
    return %arg1, %c0_i32 : i32, i32
  }
  func.func @transform_2(%arg0: i32, %arg1: i32) -> (i32, i32) {
    %c0_i32 = arith.constant 0 : i32
    %c0_i32_0 = arith.constant 0 : i32
    %c0_i32_1 = arith.constant 0 : i32
    return %c0_i32, %c0_i32_0 : i32, i32
  }
  func.func @transform_3(%arg0: i32, %arg1: i32) -> (i32, i32) {
    %c0_i32 = arith.constant 0 : i32
    %c0_i32_0 = arith.constant 0 : i32
    %c0_i32_1 = arith.constant 0 : i32
    return %c0_i32, %c0_i32_0 : i32, i32
  }
  func.func @transform_4(%arg0: i32, %arg1: i32) -> (i32, i32) {
    %c0_i32 = arith.constant 0 : i32
    %c0_i32_0 = arith.constant 0 : i32
    %c0_i32_1 = arith.constant 0 : i32
    return %c0_i32, %c0_i32_0 : i32, i32
  }
  func.func @transform_5(%arg0: i32, %arg1: i32) -> (i32, i32) {
    %c0_i32 = arith.constant 0 : i32
    %c0_i32_0 = arith.constant 0 : i32
    return %arg0, %c0_i32 : i32, i32
  }
}

module attributes {stable_mosaic.version = 11 : i64} {
  func.func @_fc_head_kernel(%arg0: i32, %arg1: memref<2x896xf32, #tpu.memory_space<vmem>>, %arg2: memref<896x1024xf32, #tpu.memory_space<vmem>>, %arg3: memref<1x1024xf32, #tpu.memory_space<vmem>>, %arg4: memref<1x1024xf32, #tpu.memory_space<vmem>>, %arg5: memref<1x1024xf32, #tpu.memory_space<vmem>>, %arg6: memref<1x1024xf32, #tpu.memory_space<vmem>>, %arg7: memref<1x1xf32, #tpu.memory_space<vmem>>, %arg8: memref<2x1xf32, #tpu.memory_space<vmem>>, %arg9: memref<2x1024xf32, #tpu.memory_space<vmem>>) attributes {dimension_semantics = [#tpu.dimension_semantics<arbitrary>], iteration_bounds = array<i64: 7>, scalar_prefetch = 0 : i64, scratch_operands = 1 : i64, tpu.core_type = #tpu.core_type<tc>, window_params = [{transform_indices = @transform_0, window_bounds = array<i64: 2, 896>}, {transform_indices = @transform_1, window_bounds = array<i64: 896, 1024>}, {pipeline_mode = #tpu.pipeline_mode<synchronous>, transform_indices = @transform_2, window_bounds = array<i64: 1, 1024>}, {pipeline_mode = #tpu.pipeline_mode<synchronous>, transform_indices = @transform_3, window_bounds = array<i64: 1, 1024>}, {pipeline_mode = #tpu.pipeline_mode<synchronous>, transform_indices = @transform_4, window_bounds = array<i64: 1, 1024>}, {pipeline_mode = #tpu.pipeline_mode<synchronous>, transform_indices = @transform_5, window_bounds = array<i64: 1, 1024>}, {pipeline_mode = #tpu.pipeline_mode<synchronous>, transform_indices = @transform_6, window_bounds = array<i64: 1, 1>}, {pipeline_mode = #tpu.pipeline_mode<synchronous>, transform_indices = @transform_7, window_bounds = array<i64: 2, 1>}]} {
    %c0 = arith.constant 0 : index
    %c0_0 = arith.constant 0 : index
    %0 = vector.load %arg1[%c0, %c0_0] : memref<2x896xf32, #tpu.memory_space<vmem>>, vector<2x896xf32>
    %c0_1 = arith.constant 0 : index
    %c0_2 = arith.constant 0 : index
    %1 = vector.load %arg2[%c0_1, %c0_2] : memref<896x1024xf32, #tpu.memory_space<vmem>>, vector<896x1024xf32>
    %cst = arith.constant dense<0.000000e+00> : vector<2x1024xf32>
    %2 = tpu.matmul %0, %1, %cst {dimension_numbers = #tpu.dot_dimension_numbers<[1], [0], [0], [1], [0, 0, 1, 1], [], []>} : vector<2x896xf32>, vector<896x1024xf32>, vector<2x1024xf32> -> vector<2x1024xf32>
    %c0_i32 = arith.constant 0 : i32
    %3 = arith.cmpi eq, %arg0, %c0_i32 : i32
    %4 = arith.extui %3 : i1 to i32
    %c0_i32_3 = arith.constant 0 : i32
    %5 = arith.cmpi ne, %4, %c0_i32_3 : i32
    scf.if %5 {
      %c0_7 = arith.constant 0 : index
      %c0_8 = arith.constant 0 : index
      %12 = vector.load %arg9[%c0_7, %c0_8] : memref<2x1024xf32, #tpu.memory_space<vmem>>, vector<2x1024xf32>
      tpu.vector_store %arg9[%c0_7, %c0_8], %2 {strides = array<i32>} : memref<2x1024xf32, #tpu.memory_space<vmem>>, vector<2x1024xf32>,
    } else {
    }
    %c0_i32_4 = arith.constant 0 : i32
    %6 = arith.cmpi sgt, %arg0, %c0_i32_4 : i32
    %7 = arith.extui %6 : i1 to i32
    %c0_i32_5 = arith.constant 0 : i32
    %8 = arith.cmpi ne, %7, %c0_i32_5 : i32
    scf.if %8 {
      %c0_7 = arith.constant 0 : index
      %c0_8 = arith.constant 0 : index
      %12 = vector.load %arg9[%c0_7, %c0_8] : memref<2x1024xf32, #tpu.memory_space<vmem>>, vector<2x1024xf32>
      %13 = arith.addf %12, %2 : vector<2x1024xf32>
      %c0_9 = arith.constant 0 : index
      %c0_10 = arith.constant 0 : index
      %14 = vector.load %arg9[%c0_9, %c0_10] : memref<2x1024xf32, #tpu.memory_space<vmem>>, vector<2x1024xf32>
      tpu.vector_store %arg9[%c0_9, %c0_10], %13 {strides = array<i32>} : memref<2x1024xf32, #tpu.memory_space<vmem>>, vector<2x1024xf32>,
    } else {
    }
    %c6_i32 = arith.constant 6 : i32
    %9 = arith.cmpi eq, %arg0, %c6_i32 : i32
    %10 = arith.extui %9 : i1 to i32
    %c0_i32_6 = arith.constant 0 : i32
    %11 = arith.cmpi ne, %10, %c0_i32_6 : i32
    scf.if %11 {
      %c0_7 = arith.constant 0 : index
      %c0_8 = arith.constant 0 : index
      %12 = vector.load %arg9[%c0_7, %c0_8] : memref<2x1024xf32, #tpu.memory_space<vmem>>, vector<2x1024xf32>
      %c0_9 = arith.constant 0 : index
      %c0_10 = arith.constant 0 : index
      %13 = vector.load %arg3[%c0_9, %c0_10] : memref<1x1024xf32, #tpu.memory_space<vmem>>, vector<1x1024xf32>
      %14 = vector.broadcast %13 : vector<1x1024xf32> to vector<2x1024xf32>
      %15 = arith.addf %12, %14 : vector<2x1024xf32>
      %cst_11 = arith.constant dense<0.000000e+00> : vector<1024xf32>
      %16 = vector.multi_reduction <add>, %15, %cst_11 [0] : vector<2x1024xf32> to vector<1024xf32>
      %17 = vector.shape_cast %16 : vector<1024xf32> to vector<1x1024xf32>
      %cst_12 = arith.constant 2.000000e+00 : f32
      %18 = vector.broadcast %cst_12 : f32 to vector<1x1024xf32>
      %19 = arith.divf %17, %18 : vector<1x1024xf32>
      %20 = vector.broadcast %19 : vector<1x1024xf32> to vector<2x1024xf32>
      %21 = arith.subf %15, %20 : vector<2x1024xf32>
      %22 = vector.broadcast %19 : vector<1x1024xf32> to vector<2x1024xf32>
      %23 = arith.subf %15, %22 : vector<2x1024xf32>
      %24 = arith.mulf %21, %23 : vector<2x1024xf32>
      %cst_13 = arith.constant dense<0.000000e+00> : vector<1024xf32>
      %25 = vector.multi_reduction <add>, %24, %cst_13 [0] : vector<2x1024xf32> to vector<1024xf32>
      %26 = vector.shape_cast %25 : vector<1024xf32> to vector<1x1024xf32>
      %cst_14 = arith.constant 2.000000e+00 : f32
      %27 = vector.broadcast %cst_14 : f32 to vector<1x1024xf32>
      %28 = arith.divf %26, %27 : vector<1x1024xf32>
      %29 = vector.broadcast %19 : vector<1x1024xf32> to vector<2x1024xf32>
      %30 = arith.subf %15, %29 : vector<2x1024xf32>
      %cst_15 = arith.constant 9.99999974E-6 : f32
      %31 = vector.broadcast %cst_15 : f32 to vector<1x1024xf32>
      %32 = arith.addf %28, %31 : vector<1x1024xf32>
      %33 = math.rsqrt %32 : vector<1x1024xf32>
      %34 = vector.broadcast %33 : vector<1x1024xf32> to vector<2x1024xf32>
      %35 = arith.mulf %30, %34 : vector<2x1024xf32>
      %c0_16 = arith.constant 0 : index
      %c0_17 = arith.constant 0 : index
      %36 = vector.load %arg4[%c0_16, %c0_17] : memref<1x1024xf32, #tpu.memory_space<vmem>>, vector<1x1024xf32>
      %37 = vector.broadcast %36 : vector<1x1024xf32> to vector<2x1024xf32>
      %38 = arith.mulf %35, %37 : vector<2x1024xf32>
      %c0_18 = arith.constant 0 : index
      %c0_19 = arith.constant 0 : index
      %39 = vector.load %arg5[%c0_18, %c0_19] : memref<1x1024xf32, #tpu.memory_space<vmem>>, vector<1x1024xf32>
      %40 = vector.broadcast %39 : vector<1x1024xf32> to vector<2x1024xf32>
      %41 = arith.addf %38, %40 : vector<2x1024xf32>
      %cst_20 = arith.constant 0.000000e+00 : f32
      %42 = vector.broadcast %cst_20 : f32 to vector<2x1024xf32>
      %43 = arith.cmpf ogt, %41, %42 : vector<2x1024xf32>
      %cst_21 = arith.constant 2.000000e-01 : f32
      %44 = vector.broadcast %cst_21 : f32 to vector<2x1024xf32>
      %45 = arith.mulf %44, %41 : vector<2x1024xf32>
      %46 = arith.select %43, %41, %45 : vector<2x1024xi1>, vector<2x1024xf32>
      %c0_22 = arith.constant 0 : index
      %c0_23 = arith.constant 0 : index
      %47 = vector.load %arg6[%c0_22, %c0_23] : memref<1x1024xf32, #tpu.memory_space<vmem>>, vector<1x1024xf32>
      %48 = vector.broadcast %47 : vector<1x1024xf32> to vector<2x1024xf32>
      %49 = arith.mulf %46, %48 : vector<2x1024xf32>
      %cst_24 = arith.constant dense<0.000000e+00> : vector<2xf32>
      %50 = vector.multi_reduction <add>, %49, %cst_24 [1] : vector<2x1024xf32> to vector<2xf32>
      %51 = vector.shape_cast %50 : vector<2xf32> to vector<2x1xf32>
      %c0_25 = arith.constant 0 : index
      %c0_26 = arith.constant 0 : index
      %52 = vector.load %arg7[%c0_25, %c0_26] : memref<1x1xf32, #tpu.memory_space<vmem>>, vector<1x1xf32>
      %53 = vector.broadcast %52 : vector<1x1xf32> to vector<2x1xf32>
      %54 = arith.addf %51, %53 : vector<2x1xf32>
      %cst_27 = arith.constant 0.000000e+00 : f32
      %55 = vector.broadcast %cst_27 : f32 to vector<2x1xf32>
      %56 = arith.subf %55, %54 : vector<2x1xf32>
      %57 = math.exp %56 : vector<2x1xf32>
      %cst_28 = arith.constant 1.000000e+00 : f32
      %58 = vector.broadcast %cst_28 : f32 to vector<2x1xf32>
      %59 = arith.addf %58, %57 : vector<2x1xf32>
      %60 = tpu.reciprocal %59 : vector<2x1xf32> -> vector<2x1xf32>
      %c0_29 = arith.constant 0 : index
      %c0_30 = arith.constant 0 : index
      %61 = vector.load %arg8[%c0_29, %c0_30] : memref<2x1xf32, #tpu.memory_space<vmem>>, vector<2x1xf32>
      tpu.vector_store %arg8[%c0_29, %c0_30], %60 {strides = array<i32>} : memref<2x1xf32, #tpu.memory_space<vmem>>, vector<2x1xf32>,
    } else {
    }
    return
  }
  func.func @transform_0(%arg0: i32) -> (i32, i32) {
    %c0_i32 = arith.constant 0 : i32
    %c0_i32_0 = arith.constant 0 : i32
    return %c0_i32, %arg0 : i32, i32
  }
  func.func @transform_1(%arg0: i32) -> (i32, i32) {
    %c0_i32 = arith.constant 0 : i32
    %c0_i32_0 = arith.constant 0 : i32
    return %arg0, %c0_i32 : i32, i32
  }
  func.func @transform_2(%arg0: i32) -> (i32, i32) {
    %c0_i32 = arith.constant 0 : i32
    %c0_i32_0 = arith.constant 0 : i32
    %c0_i32_1 = arith.constant 0 : i32
    return %c0_i32, %c0_i32_0 : i32, i32
  }
  func.func @transform_3(%arg0: i32) -> (i32, i32) {
    %c0_i32 = arith.constant 0 : i32
    %c0_i32_0 = arith.constant 0 : i32
    %c0_i32_1 = arith.constant 0 : i32
    return %c0_i32, %c0_i32_0 : i32, i32
  }
  func.func @transform_4(%arg0: i32) -> (i32, i32) {
    %c0_i32 = arith.constant 0 : i32
    %c0_i32_0 = arith.constant 0 : i32
    %c0_i32_1 = arith.constant 0 : i32
    return %c0_i32, %c0_i32_0 : i32, i32
  }
  func.func @transform_5(%arg0: i32) -> (i32, i32) {
    %c0_i32 = arith.constant 0 : i32
    %c0_i32_0 = arith.constant 0 : i32
    %c0_i32_1 = arith.constant 0 : i32
    return %c0_i32, %c0_i32_0 : i32, i32
  }
  func.func @transform_6(%arg0: i32) -> (i32, i32) {
    %c0_i32 = arith.constant 0 : i32
    %c0_i32_0 = arith.constant 0 : i32
    %c0_i32_1 = arith.constant 0 : i32
    return %c0_i32, %c0_i32_0 : i32, i32
  }
  func.func @transform_7(%arg0: i32) -> (i32, i32) {
    %c0_i32 = arith.constant 0 : i32
    %c0_i32_0 = arith.constant 0 : i32
    %c0_i32_1 = arith.constant 0 : i32
    return %c0_i32, %c0_i32_0 : i32, i32
  }
}

</mosaic_0001>

<llo_original>
// kernel: discriminator_forward.3
$region0: #{discriminator_forward.3}
  #allocation0 [shape = 'u32[]', space=smem, size = 0x4, offset = 0x4, fixed_abs, tag = 'smem constant byte address 0x4 - core index']
  #allocation1 [shape = 'u32[144,128]{1,0:T(1,128)}', space=vmem, size = 0x12000, scoped, tag = 'internal scratch']
  %s0 = inlined_call_operand.vmem [shape: f32[392,16], index: 0, kind: input, shape index: {}]
  %s1 = inlined_call_operand.hbm [shape: f32[16,64], index: 1, kind: input, shape index: {}]
  %s2 = inlined_call_operand.hbm [shape: f32[1,64], index: 2, kind: input, shape index: {}]
  %s3 = inlined_call_operand.vmem [shape: f32[1,64], index: 3, kind: input, shape index: {}]
  %s4 = inlined_call_operand.vmem [shape: f32[1,64], index: 4, kind: input, shape index: {}]
  %s5 = inlined_call_operand.vmem [shape: f32[392,64], index: 5, kind: output, shape index: {}]
  %s6 = sld [smem:[#allocation0]]
  $region50: #{discriminator_forward.3} parent=0
    _
  %s8 = ssub.s32 1, %s6
  %s9 = scalar_select 0, %s8, %s6
  $region1: #{discriminator_forward.3} parent=0
    #allocation2 [shape = 'u8[8192]{0}', space=vmem, size = 0x2000, scoped, tag = 'input window, operand 1, single buffered']
    #allocation3 [shape = 's32[1]{0}', space=sflag, size = 0x4, scoped, tag = 'scoped memory for discriminator_forward.3']
    #allocation4 [shape = 'u8[512]{0}', space=vmem, size = 0x400, scoped, tag = 'input window, operand 2, single buffered']
    #allocation5 [shape = 's32[1]{0}', space=sflag, size = 0x4, scoped, tag = 'scoped memory for discriminator_forward.3']
    %10 = vsyncpa [#allocation3], 0
    %11 = vsyncpa [#allocation5], 0
    // Predicated region
    $region2: #{discriminator_forward.3} parent=1 // pred_check
      _
    $region3: #{discriminator_forward.3} parent=1 // pred_check_branch
      %13 = sbr.rel (0) target = $region5
    $region4: #{discriminator_forward.3} parent=1 // pred_region
      _
    $region5: #{discriminator_forward.3} parent=1 // pred_fallthru
      _
    // Predicated region
    $region6: #{discriminator_forward.3} parent=1 // pred_check
      _
    $region7: #{discriminator_forward.3} parent=1 // pred_check_branch
      %15 = sbr.rel (0) target = $region9
    $region8: #{discriminator_forward.3} parent=1 // pred_region
      %s17 = ssub.s32 256, 256
      %18 = vsyncadd [#allocation3], %s17
      %s19 = sshll.u32 [#allocation2], 4
      %s20 = int_to_ptr.vmem [resolvable:$true] %s19
      %25 = dma.hbm_to_vmem [thread:$0]  %s1, 256, %s20, [#allocation3], 128, 128, 8
    $region9: #{discriminator_forward.3} parent=1 // pred_fallthru
      _
    // Predicated region
    $region10: #{discriminator_forward.3} parent=1 // pred_check
      _
    $region11: #{discriminator_forward.3} parent=1 // pred_check_branch
      %27 = sbr.rel (0) target = $region13
    $region12: #{discriminator_forward.3} parent=1 // pred_region
      %s29 = ssub.s32 16, 16
      %30 = vsyncadd [#allocation5], %s29
      %s32 = sshll.u32 [#allocation4], 4
      %s33 = int_to_ptr.vmem [resolvable:$true] %s32
      %35 = dma.hbm_to_vmem [thread:$0]  %s2, 16, %s33, [#allocation5]
    $region13: #{discriminator_forward.3} parent=1 // pred_fallthru
      _
    // Predicated region
    $region14: #{discriminator_forward.3} parent=1 // pred_check
      _
    $region15: #{discriminator_forward.3} parent=1 // pred_check_branch
      %37 = sbr.rel (0) target = $region17
    $region16: #{discriminator_forward.3} parent=1 // pred_region
      _
    $region17: #{discriminator_forward.3} parent=1 // pred_fallthru
      _
    // Predicated region
    $region18: #{discriminator_forward.3} parent=1 // pred_check
      _
    $region19: #{discriminator_forward.3} parent=1 // pred_check_branch
      %39 = sbr.rel (0) target = $region21
    $region20: #{discriminator_forward.3} parent=1 // pred_region
      _
    $region21: #{discriminator_forward.3} parent=1 // pred_fallthru
      _
    // Predicated region
    $region22: #{discriminator_forward.3} parent=1 // pred_check
      _
    $region23: #{discriminator_forward.3} parent=1 // pred_check_branch
      %41 = sbr.rel (0) target = $region25
    $region24: #{discriminator_forward.3} parent=1 // pred_region
      %42 = dma.done [#allocation3], 256
    $region25: #{discriminator_forward.3} parent=1 // pred_fallthru
      _
    // Predicated region
    $region26: #{discriminator_forward.3} parent=1 // pred_check
      _
    $region27: #{discriminator_forward.3} parent=1 // pred_check_branch
      %44 = sbr.rel (0) target = $region29
    $region28: #{discriminator_forward.3} parent=1 // pred_region
      %45 = dma.done [#allocation5], 16
    $region29: #{discriminator_forward.3} parent=1 // pred_fallthru
      _
    %v46 = vld [vmem:[%s0] sm:$0xff]
    %v47 = vld [vmem:[%s0 + $0x8] sm:$0xff]
    %v48 = vld [vmem:[%s0 + $0x10] sm:$0xff]
    %v49 = vld [vmem:[%s0 + $0x18] sm:$0xff]
    %v50 = vld [vmem:[%s0 + $0x20] sm:$0xff]
    %v51 = vld [vmem:[%s0 + $0x28] sm:$0xff]
    %v52 = vld [vmem:[%s0 + $0x30] sm:$0xff]
    %v53 = vld [vmem:[%s0 + $0x38] sm:$0xff]
    %v54 = vld [vmem:[%s0 + $0x40] sm:$0xff]
    %v55 = vld [vmem:[%s0 + $0x48] sm:$0xff]
    %v56 = vld [vmem:[%s0 + $0x50] sm:$0xff]
    %v57 = vld [vmem:[%s0 + $0x58] sm:$0xff]
    %v58 = vld [vmem:[%s0 + $0x60] sm:$0xff]
    %v59 = vld [vmem:[%s0 + $0x68] sm:$0xff]
    %v60 = vld [vmem:[%s0 + $0x70] sm:$0xff]
    %v61 = vld [vmem:[%s0 + $0x78] sm:$0xff]
    %v62 = vld [vmem:[%s0 + $0x80] sm:$0xff]
    %v63 = vld [vmem:[%s0 + $0x88] sm:$0xff]
    %v64 = vld [vmem:[%s0 + $0x90] sm:$0xff]
    %v65 = vld [vmem:[%s0 + $0x98] sm:$0xff]
    %v66 = vld [vmem:[%s0 + $0xa0] sm:$0xff]
    %v67 = vld [vmem:[%s0 + $0xa8] sm:$0xff]
    %v68 = vld [vmem:[%s0 + $0xb0] sm:$0xff]
    %v69 = vld [vmem:[%s0 + $0xb8] sm:$0xff]
    %v70 = vld [vmem:[%s0 + $0xc0] sm:$0xff]
    %v71 = vld [vmem:[%s0 + $0xc8] sm:$0xff]
    %v72 = vld [vmem:[%s0 + $0xd0] sm:$0xff]
    %v73 = vld [vmem:[%s0 + $0xd8] sm:$0xff]
    %v74 = vld [vmem:[%s0 + $0xe0] sm:$0xff]
    %v75 = vld [vmem:[%s0 + $0xe8] sm:$0xff]
    %v76 = vld [vmem:[%s0 + $0xf0] sm:$0xff]
    %v77 = vld [vmem:[%s0 + $0xf8] sm:$0xff]
    %v78 = vld [vmem:[%s0 + $0x100] sm:$0xff]
    %v79 = vld [vmem:[%s0 + $0x108] sm:$0xff]
    %v80 = vld [vmem:[%s0 + $0x110] sm:$0xff]
    %v81 = vld [vmem:[%s0 + $0x118] sm:$0xff]
    %v82 = vld [vmem:[%s0 + $0x120] sm:$0xff]
    %v83 = vld [vmem:[%s0 + $0x128] sm:$0xff]
    %v84 = vld [vmem:[%s0 + $0x130] sm:$0xff]
    %v85 = vld [vmem:[%s0 + $0x138] sm:$0xff]
    %v86 = vld [vmem:[%s0 + $0x140] sm:$0xff]
    %v87 = vld [vmem:[%s0 + $0x148] sm:$0xff]
    %v88 = vld [vmem:[%s0 + $0x150] sm:$0xff]
    %v89 = vld [vmem:[%s0 + $0x158] sm:$0xff]
    %v90 = vld [vmem:[%s0 + $0x160] sm:$0xff]
    %v91 = vld [vmem:[%s0 + $0x168] sm:$0xff]
    %v92 = vld [vmem:[%s0 + $0x170] sm:$0xff]
    %v93 = vld [vmem:[%s0 + $0x178] sm:$0xff]
    %v94 = vld [vmem:[%s0 + $0x180] sm:$0xff]
    %v95 = vld [vmem:[#allocation2] sm:$0xff]
    %v96 = vld [vmem:[#allocation2 + $0x8] sm:$0xff]
    %vm97 = vcmask 130048
    %v99 = vsel %vm97, %v46, 0
    %v102 = vsel %vm97, %v47, 0
    %v105 = vsel %vm97, %v48, 0
    %v108 = vsel %vm97, %v49, 0
    %v111 = vsel %vm97, %v50, 0
    %v114 = vsel %vm97, %v51, 0
    %v117 = vsel %vm97, %v52, 0
    %v120 = vsel %vm97, %v53, 0
    %v123 = vsel %vm97, %v54, 0
    %v126 = vsel %vm97, %v55, 0
    %v129 = vsel %vm97, %v56, 0
    %v132 = vsel %vm97, %v57, 0
    %v135 = vsel %vm97, %v58, 0
    %v138 = vsel %vm97, %v59, 0
    %v141 = vsel %vm97, %v60, 0
    %v144 = vsel %vm97, %v61, 0
    %v147 = vsel %vm97, %v62, 0
    %v150 = vsel %vm97, %v63, 0
    %v153 = vsel %vm97, %v64, 0
    %v156 = vsel %vm97, %v65, 0
    %v159 = vsel %vm97, %v66, 0
    %v162 = vsel %vm97, %v67, 0
    %v165 = vsel %vm97, %v68, 0
    %v168 = vsel %vm97, %v69, 0
    %v171 = vsel %vm97, %v70, 0
    %v174 = vsel %vm97, %v71, 0
    %v177 = vsel %vm97, %v72, 0
    %v180 = vsel %vm97, %v73, 0
    %v183 = vsel %vm97, %v74, 0
    %v186 = vsel %vm97, %v75, 0
    %v189 = vsel %vm97, %v76, 0
    %v192 = vsel %vm97, %v77, 0
    %v195 = vsel %vm97, %v78, 0
    %v198 = vsel %vm97, %v79, 0
    %v201 = vsel %vm97, %v80, 0
    %v204 = vsel %vm97, %v81, 0
    %v207 = vsel %vm97, %v82, 0
    %v210 = vsel %vm97, %v83, 0
    %v213 = vsel %vm97, %v84, 0
    %v216 = vsel %vm97, %v85, 0
    %v219 = vsel %vm97, %v86, 0
    %v222 = vsel %vm97, %v87, 0
    %v225 = vsel %vm97, %v88, 0
    %v228 = vsel %vm97, %v89, 0
    %v231 = vsel %vm97, %v90, 0
    %v234 = vsel %vm97, %v91, 0
    %v237 = vsel %vm97, %v92, 0
    %v240 = vsel %vm97, %v93, 0
    %v243 = vsel %vm97, %v94, 0
    %245 = vmatprep.subr.mxu0 0.0
    %246 = vmatpush1.msra.mxu0 %v95
    %247 = vmatprep.subr.mxu0 0.0
    %248 = vmatpush1.msra.mxu0 %v96
    %249 = vmatprep.subr.mxu0 0.0
    %250 = vmatpush1.msra.mxu0 0.0
    %251 = vmatprep.subr.mxu0 0.0
    %252 = vmatpush1.msra.mxu0 0.0
    %253 = vmatprep.subr.mxu0 0.0
    %254 = vmatpush1.msra.mxu0 0.0
    %255 = vmatprep.subr.mxu0 0.0
    %256 = vmatpush1.msra.mxu0 0.0
    %257 = vmatprep.subr.mxu0 0.0
    %258 = vmatpush1.msra.mxu0 0.0
    %259 = vmatprep.subr.mxu0 0.0
    %260 = vmatpush1.msra.mxu0 0.0
    %261 = vmatprep.subr.mxu0 0.0
    %262 = vmatpush1.msra.mxu0 0.0
    %263 = vmatprep.subr.mxu0 0.0
    %264 = vmatpush1.msra.mxu0 0.0
    %265 = vmatprep.subr.mxu0 0.0
    %266 = vmatpush1.msra.mxu0 0.0
    %267 = vmatprep.subr.mxu0 0.0
    %268 = vmatpush1.msra.mxu0 0.0
    %269 = vmatprep.subr.mxu0 0.0
    %270 = vmatpush1.msra.mxu0 0.0
    %271 = vmatprep.subr.mxu0 0.0
    %272 = vmatpush1.msra.mxu0 0.0
    %273 = vmatprep.subr.mxu0 0.0
    %274 = vmatpush1.msra.mxu0 0.0
    %275 = vmatprep.subr.mxu0 0.0
    %276 = vmatpush1.msra.mxu0 0.0
    %277 = vmatprep.subr.mxu0 0.0
    %278 = vmatpush1.msra.mxu0 0.0
    %279 = vmatprep.subr.mxu0 0.0
    %280 = vmatpush1.msra.mxu0 0.0
    %281 = vmatprep.subr.mxu0 0.0
    %282 = vmatpush1.msra.mxu0 0.0
    %283 = vmatprep.subr.mxu0 0.0
    %284 = vmatpush1.msra.mxu0 0.0
    %285 = vmatprep.subr.mxu0 0.0
    %286 = vmatpush1.msra.mxu0 0.0
    %287 = vmatprep.subr.mxu0 0.0
    %288 = vmatpush1.msra.mxu0 0.0
    %289 = vmatprep.subr.mxu0 0.0
    %290 = vmatpush1.msra.mxu0 0.0
    %291 = vmatprep.subr.mxu0 0.0
    %292 = vmatpush1.msra.mxu0 0.0
    %293 = vmatprep.subr.mxu0 0.0
    %294 = vmatpush1.msra.mxu0 0.0
    %295 = vmatprep.subr.mxu0 0.0
    %296 = vmatpush1.msra.mxu0 0.0
    %297 = vmatprep.subr.mxu0 0.0
    %298 = vmatpush1.msra.mxu0 0.0
    %299 = vmatprep.subr.mxu0 0.0
    %300 = vmatpush1.msra.mxu0 0.0
    %301 = vmatprep.subr.mxu0 0.0
    %302 = vmatpush1.msra.mxu0 0.0
    %303 = vmatprep.subr.mxu0 0.0
    %304 = vmatpush1.msra.mxu0 0.0
    %305 = vmatprep.subr.mxu0 0.0
    %306 = vmatpush1.msra.mxu0 0.0
    %307 = vmatprep.subr.mxu0 0.0
    %308 = vmatpush1.msra.mxu0 0.0
    %309 = vmatprep.mubr.f32.mxu0 0.0
    %310 = vmatmul.mubr.f32.gmra.mrb[0].mxu0 %v99
    %v311 = vpop.f32.mrb[0].mxu0
    %v312 = vadd.f32 0.0, %v311
    %v313 = vpop.f32.mrb[0].mxu0
    %314 = vmatprep.mubr.f32.mxu0 0.0
    %315 = vmatmul.mubr.f32.gmra.mrb[0].mxu0 %v102
    %v316 = vpop.f32.mrb[0].mxu0
    %v317 = vadd.f32 0.0, %v316
    %v318 = vpop.f32.mrb[0].mxu0
    %319 = vmatprep.mubr.f32.mxu0 0.0
    %320 = vmatmul.mubr.f32.gmra.mrb[0].mxu0 %v105
    %v321 = vpop.f32.mrb[0].mxu0
    %v322 = vadd.f32 0.0, %v321
    %v323 = vpop.f32.mrb[0].mxu0
    %324 = vmatprep.mubr.f32.mxu0 0.0
    %325 = vmatmul.mubr.f32.gmra.mrb[0].mxu0 %v108
    %v326 = vpop.f32.mrb[0].mxu0
    %v327 = vadd.f32 0.0, %v326
    %v328 = vpop.f32.mrb[0].mxu0
    %329 = vmatprep.mubr.f32.mxu0 0.0
    %330 = vmatmul.mubr.f32.gmra.mrb[0].mxu0 %v111
    %v331 = vpop.f32.mrb[0].mxu0
    %v332 = vadd.f32 0.0, %v331
    %v333 = vpop.f32.mrb[0].mxu0
    %334 = vmatprep.mubr.f32.mxu0 0.0
    %335 = vmatmul.mubr.f32.gmra.mrb[0].mxu0 %v114
    %v336 = vpop.f32.mrb[0].mxu0
    %v337 = vadd.f32 0.0, %v336
    %v338 = vpop.f32.mrb[0].mxu0
    %339 = vmatprep.mubr.f32.mxu0 0.0
    %340 = vmatmul.mubr.f32.gmra.mrb[0].mxu0 %v117
    %v341 = vpop.f32.mrb[0].mxu0
    %v342 = vadd.f32 0.0, %v341
    %v343 = vpop.f32.mrb[0].mxu0
    %344 = vmatprep.mubr.f32.mxu0 0.0
    %345 = vmatmul.mubr.f32.gmra.mrb[0].mxu0 %v120
    %v346 = vpop.f32.mrb[0].mxu0
    %v347 = vadd.f32 0.0, %v346
    %v348 = vpop.f32.mrb[0].mxu0
    %349 = vmatprep.mubr.f32.mxu0 0.0
    %350 = vmatmul.mubr.f32.gmra.mrb[0].mxu0 %v123
    %v351 = vpop.f32.mrb[0].mxu0
    %v352 = vadd.f32 0.0, %v351
    %v353 = vpop.f32.mrb[0].mxu0
    %354 = vmatprep.mubr.f32.mxu0 0.0
    %355 = vmatmul.mubr.f32.gmra.mrb[0].mxu0 %v126
    %v356 = vpop.f32.mrb[0].mxu0
    %v357 = vadd.f32 0.0, %v356
    %v358 = vpop.f32.mrb[0].mxu0
    %359 = vmatprep.mubr.f32.mxu0 0.0
    %360 = vmatmul.mubr.f32.gmra.mrb[0].mxu0 %v129
    %v361 = vpop.f32.mrb[0].mxu0
    %v362 = vadd.f32 0.0, %v361
    %v363 = vpop.f32.mrb[0].mxu0
    %364 = vmatprep.mubr.f32.mxu0 0.0
    %365 = vmatmul.mubr.f32.gmra.mrb[0].mxu0 %v132
    %v366 = vpop.f32.mrb[0].mxu0
    %v367 = vadd.f32 0.0, %v366
    %v368 = vpop.f32.mrb[0].mxu0
    %369 = vmatprep.mubr.f32.mxu0 0.0
    %370 = vmatmul.mubr.f32.gmra.mrb[0].mxu0 %v135
    %v371 = vpop.f32.mrb[0].mxu0
    %v372 = vadd.f32 0.0, %v371
    %v373 = vpop.f32.mrb[0].mxu0
    %374 = vmatprep.mubr.f32.mxu0 0.0
    %375 = vmatmul.mubr.f32.gmra.mrb[0].mxu0 %v138
    %v376 = vpop.f32.mrb[0].mxu0
    %v377 = vadd.f32 0.0, %v376
    %v378 = vpop.f32.mrb[0].mxu0
    %379 = vmatprep.mubr.f32.mxu0 0.0
    %380 = vmatmul.mubr.f32.gmra.mrb[0].mxu0 %v141
    %v381 = vpop.f32.mrb[0].mxu0
    %v382 = vadd.f32 0.0, %v381
    %v383 = vpop.f32.mrb[0].mxu0
    %384 = vmatprep.mubr.f32.mxu0 0.0
    %385 = vmatmul.mubr.f32.gmra.mrb[0].mxu0 %v144
    %v386 = vpop.f32.mrb[0].mxu0
    %v387 = vadd.f32 0.0, %v386
    %v388 = vpop.f32.mrb[0].mxu0
    %389 = vmatprep.mubr.f32.mxu0 0.0
    %390 = vmatmul.mubr.f32.gmra.mrb[0].mxu0 %v147
    %v391 = vpop.f32.mrb[0].mxu0
    %v392 = vadd.f32 0.0, %v391
    %v393 = vpop.f32.mrb[0].mxu0
    %394 = vmatprep.mubr.f32.mxu0 0.0
    %395 = vmatmul.mubr.f32.gmra.mrb[0].mxu0 %v150
    %v396 = vpop.f32.mrb[0].mxu0
    %v397 = vadd.f32 0.0, %v396
    %v398 = vpop.f32.mrb[0].mxu0
    %399 = vmatprep.mubr.f32.mxu0 0.0
    %400 = vmatmul.mubr.f32.gmra.mrb[0].mxu0 %v153
    %v401 = vpop.f32.mrb[0].mxu0
    %v402 = vadd.f32 0.0, %v401
    %v403 = vpop.f32.mrb[0].mxu0
    %404 = vmatprep.mubr.f32.mxu0 0.0
    %405 = vmatmul.mubr.f32.gmra.mrb[0].mxu0 %v156
    %v406 = vpop.f32.mrb[0].mxu0
    %v407 = vadd.f32 0.0, %v406
    %v408 = vpop.f32.mrb[0].mxu0
    %409 = vmatprep.mubr.f32.mxu0 0.0
    %410 = vmatmul.mubr.f32.gmra.mrb[0].mxu0 %v159
    %v411 = vpop.f32.mrb[0].mxu0
    %v412 = vadd.f32 0.0, %v411
    %v413 = vpop.f32.mrb[0].mxu0
    %414 = vmatprep.mubr.f32.mxu0 0.0
    %415 = vmatmul.mubr.f32.gmra.mrb[0].mxu0 %v162
    %v416 = vpop.f32.mrb[0].mxu0
    %v417 = vadd.f32 0.0, %v416
    %v418 = vpop.f32.mrb[0].mxu0
    %419 = vmatprep.mubr.f32.mxu0 0.0
    %420 = vmatmul.mubr.f32.gmra.mrb[0].mxu0 %v165
    %v421 = vpop.f32.mrb[0].mxu0
    %v422 = vadd.f32 0.0, %v421
    %v423 = vpop.f32.mrb[0].mxu0
    %424 = vmatprep.mubr.f32.mxu0 0.0
    %425 = vmatmul.mubr.f32.gmra.mrb[0].mxu0 %v168
    %v426 = vpop.f32.mrb[0].mxu0
    %v427 = vadd.f32 0.0, %v426
    %v428 = vpop.f32.mrb[0].mxu0
    %429 = vmatprep.mubr.f32.mxu0 0.0
    %430 = vmatmul.mubr.f32.gmra.mrb[0].mxu0 %v171
    %v431 = vpop.f32.mrb[0].mxu0
    %v432 = vadd.f32 0.0, %v431
    %v433 = vpop.f32.mrb[0].mxu0
    %434 = vmatprep.mubr.f32.mxu0 0.0
    %435 = vmatmul.mubr.f32.gmra.mrb[0].mxu0 %v174
    %v436 = vpop.f32.mrb[0].mxu0
    %v437 = vadd.f32 0.0, %v436
    %v438 = vpop.f32.mrb[0].mxu0
    %439 = vmatprep.mubr.f32.mxu0 0.0
    %440 = vmatmul.mubr.f32.gmra.mrb[0].mxu0 %v177
    %v441 = vpop.f32.mrb[0].mxu0
    %v442 = vadd.f32 0.0, %v441
    %v443 = vpop.f32.mrb[0].mxu0
    %444 = vmatprep.mubr.f32.mxu0 0.0
    %445 = vmatmul.mubr.f32.gmra.mrb[0].mxu0 %v180
    %v446 = vpop.f32.mrb[0].mxu0
    %v447 = vadd.f32 0.0, %v446
    %v448 = vpop.f32.mrb[0].mxu0
    %449 = vmatprep.mubr.f32.mxu0 0.0
    %450 = vmatmul.mubr.f32.gmra.mrb[0].mxu0 %v183
    %v451 = vpop.f32.mrb[0].mxu0
    %v452 = vadd.f32 0.0, %v451
    %v453 = vpop.f32.mrb[0].mxu0
    %454 = vmatprep.mubr.f32.mxu0 0.0
    %455 = vmatmul.mubr.f32.gmra.mrb[0].mxu0 %v186
    %v456 = vpop.f32.mrb[0].mxu0
    %v457 = vadd.f32 0.0, %v456
    %v458 = vpop.f32.mrb[0].mxu0
    %459 = vmatprep.mubr.f32.mxu0 0.0
    %460 = vmatmul.mubr.f32.gmra.mrb[0].mxu0 %v189
    %v461 = vpop.f32.mrb[0].mxu0
    %v462 = vadd.f32 0.0, %v461
    %v463 = vpop.f32.mrb[0].mxu0
    %464 = vmatprep.mubr.f32.mxu0 0.0
    %465 = vmatmul.mubr.f32.gmra.mrb[0].mxu0 %v192
    %v466 = vpop.f32.mrb[0].mxu0
    %v467 = vadd.f32 0.0, %v466
    %v468 = vpop.f32.mrb[0].mxu0
    %469 = vmatprep.mubr.f32.mxu0 0.0
    %470 = vmatmul.mubr.f32.gmra.mrb[0].mxu0 %v195
    %v471 = vpop.f32.mrb[0].mxu0
    %v472 = vadd.f32 0.0, %v471
    %v473 = vpop.f32.mrb[0].mxu0
    %474 = vmatprep.mubr.f32.mxu0 0.0
    %475 = vmatmul.mubr.f32.gmra.mrb[0].mxu0 %v198
    %v476 = vpop.f32.mrb[0].mxu0
    %v477 = vadd.f32 0.0, %v476
    %v478 = vpop.f32.mrb[0].mxu0
    %479 = vmatprep.mubr.f32.mxu0 0.0
    %480 = vmatmul.mubr.f32.gmra.mrb[0].mxu0 %v201
    %v481 = vpop.f32.mrb[0].mxu0
    %v482 = vadd.f32 0.0, %v481
    %v483 = vpop.f32.mrb[0].mxu0
    %484 = vmatprep.mubr.f32.mxu0 0.0
    %485 = vmatmul.mubr.f32.gmra.mrb[0].mxu0 %v204
    %v486 = vpop.f32.mrb[0].mxu0
    %v487 = vadd.f32 0.0, %v486
    %v488 = vpop.f32.mrb[0].mxu0
    %489 = vmatprep.mubr.f32.mxu0 0.0
    %490 = vmatmul.mubr.f32.gmra.mrb[0].mxu0 %v207
    %v491 = vpop.f32.mrb[0].mxu0
    %v492 = vadd.f32 0.0, %v491
    %v493 = vpop.f32.mrb[0].mxu0
    %494 = vmatprep.mubr.f32.mxu0 0.0
    %495 = vmatmul.mubr.f32.gmra.mrb[0].mxu0 %v210
    %v496 = vpop.f32.mrb[0].mxu0
    %v497 = vadd.f32 0.0, %v496
    %v498 = vpop.f32.mrb[0].mxu0
    %499 = vmatprep.mubr.f32.mxu0 0.0
    %500 = vmatmul.mubr.f32.gmra.mrb[0].mxu0 %v213
    %v501 = vpop.f32.mrb[0].mxu0
    %v502 = vadd.f32 0.0, %v501
    %v503 = vpop.f32.mrb[0].mxu0
    %504 = vmatprep.mubr.f32.mxu0 0.0
    %505 = vmatmul.mubr.f32.gmra.mrb[0].mxu0 %v216
    %v506 = vpop.f32.mrb[0].mxu0
    %v507 = vadd.f32 0.0, %v506
    %v508 = vpop.f32.mrb[0].mxu0
    %509 = vmatprep.mubr.f32.mxu0 0.0
    %510 = vmatmul.mubr.f32.gmra.mrb[0].mxu0 %v219
    %v511 = vpop.f32.mrb[0].mxu0
    %v512 = vadd.f32 0.0, %v511
    %v513 = vpop.f32.mrb[0].mxu0
    %514 = vmatprep.mubr.f32.mxu0 0.0
    %515 = vmatmul.mubr.f32.gmra.mrb[0].mxu0 %v222
    %v516 = vpop.f32.mrb[0].mxu0
    %v517 = vadd.f32 0.0, %v516
    %v518 = vpop.f32.mrb[0].mxu0
    %519 = vmatprep.mubr.f32.mxu0 0.0
    %520 = vmatmul.mubr.f32.gmra.mrb[0].mxu0 %v225
    %v521 = vpop.f32.mrb[0].mxu0
    %v522 = vadd.f32 0.0, %v521
    %v523 = vpop.f32.mrb[0].mxu0
    %524 = vmatprep.mubr.f32.mxu0 0.0
    %525 = vmatmul.mubr.f32.gmra.mrb[0].mxu0 %v228
    %v526 = vpop.f32.mrb[0].mxu0
    %v527 = vadd.f32 0.0, %v526
    %v528 = vpop.f32.mrb[0].mxu0
    %529 = vmatprep.mubr.f32.mxu0 0.0
    %530 = vmatmul.mubr.f32.gmra.mrb[0].mxu0 %v231
    %v531 = vpop.f32.mrb[0].mxu0
    %v532 = vadd.f32 0.0, %v531
    %v533 = vpop.f32.mrb[0].mxu0
    %534 = vmatprep.mubr.f32.mxu0 0.0
    %535 = vmatmul.mubr.f32.gmra.mrb[0].mxu0 %v234
    %v536 = vpop.f32.mrb[0].mxu0
    %v537 = vadd.f32 0.0, %v536
    %v538 = vpop.f32.mrb[0].mxu0
    %539 = vmatprep.mubr.f32.mxu0 0.0
    %540 = vmatmul.mubr.f32.gmra.mrb[0].mxu0 %v237
    %v541 = vpop.f32.mrb[0].mxu0
    %v542 = vadd.f32 0.0, %v541
    %v543 = vpop.f32.mrb[0].mxu0
    %544 = vmatprep.mubr.f32.mxu0 0.0
    %545 = vmatmul.mubr.f32.gmra.mrb[0].mxu0 %v240
    %v546 = vpop.f32.mrb[0].mxu0
    %v547 = vadd.f32 0.0, %v546
    %v548 = vpop.f32.mrb[0].mxu0
    %549 = vmatprep.mubr.f32.mxu0 0.0
    %550 = vmatmul.mubr.f32.gmra.mrb[0].mxu0 %v243
    %v551 = vpop.f32.mrb[0].mxu0
    %v552 = vadd.f32 0.0, %v551
    %v553 = vpop.f32.mrb[0].mxu0
    %554 = vdwg.mxu0
    %p555 = scmp.eq.s32.totalorder 0, 0
    // Predicated region
    $region30: #{discriminator_forward.3} parent=1 // pred_check
      %p556 = pneg %p555
    $region31: #{discriminator_forward.3} parent=1 // pred_check_branch
      %558 = sbr.rel (%p556) target = $region33
    $region32: #{discriminator_forward.3} parent=1 // pred_region
      %vm559 = vcmask 523264
      %560 = vst.msk [vmem:[%s5] sm:$0xff] %vm559, %v312
      %561 = vst.msk [vmem:[%s5 + $0x8] sm:$0xff] %vm559, %v317
      %562 = vst.msk [vmem:[%s5 + $0x10] sm:$0xff] %vm559, %v322
      %563 = vst.msk [vmem:[%s5 + $0x18] sm:$0xff] %vm559, %v327
      %564 = vst.msk [vmem:[%s5 + $0x20] sm:$0xff] %vm559, %v332
      %565 = vst.msk [vmem:[%s5 + $0x28] sm:$0xff] %vm559, %v337
      %566 = vst.msk [vmem:[%s5 + $0x30] sm:$0xff] %vm559, %v342
      %567 = vst.msk [vmem:[%s5 + $0x38] sm:$0xff] %vm559, %v347
      %568 = vst.msk [vmem:[%s5 + $0x40] sm:$0xff] %vm559, %v352
      %569 = vst.msk [vmem:[%s5 + $0x48] sm:$0xff] %vm559, %v357
      %570 = vst.msk [vmem:[%s5 + $0x50] sm:$0xff] %vm559, %v362
      %571 = vst.msk [vmem:[%s5 + $0x58] sm:$0xff] %vm559, %v367
      %572 = vst.msk [vmem:[%s5 + $0x60] sm:$0xff] %vm559, %v372
      %573 = vst.msk [vmem:[%s5 + $0x68] sm:$0xff] %vm559, %v377
      %574 = vst.msk [vmem:[%s5 + $0x70] sm:$0xff] %vm559, %v382
      %575 = vst.msk [vmem:[%s5 + $0x78] sm:$0xff] %vm559, %v387
      %576 = vst.msk [vmem:[%s5 + $0x80] sm:$0xff] %vm559, %v392
      %577 = vst.msk [vmem:[%s5 + $0x88] sm:$0xff] %vm559, %v397
      %578 = vst.msk [vmem:[%s5 + $0x90] sm:$0xff] %vm559, %v402
      %579 = vst.msk [vmem:[%s5 + $0x98] sm:$0xff] %vm559, %v407
      %580 = vst.msk [vmem:[%s5 + $0xa0] sm:$0xff] %vm559, %v412
      %581 = vst.msk [vmem:[%s5 + $0xa8] sm:$0xff] %vm559, %v417
      %582 = vst.msk [vmem:[%s5 + $0xb0] sm:$0xff] %vm559, %v422
      %583 = vst.msk [vmem:[%s5 + $0xb8] sm:$0xff] %vm559, %v427
      %584 = vst.msk [vmem:[%s5 + $0xc0] sm:$0xff] %vm559, %v432
      %585 = vst.msk [vmem:[%s5 + $0xc8] sm:$0xff] %vm559, %v437
      %586 = vst.msk [vmem:[%s5 + $0xd0] sm:$0xff] %vm559, %v442
      %587 = vst.msk [vmem:[%s5 + $0xd8] sm:$0xff] %vm559, %v447
      %588 = vst.msk [vmem:[%s5 + $0xe0] sm:$0xff] %vm559, %v452
      %589 = vst.msk [vmem:[%s5 + $0xe8] sm:$0xff] %vm559, %v457
      %590 = vst.msk [vmem:[%s5 + $0xf0] sm:$0xff] %vm559, %v462
      %591 = vst.msk [vmem:[%s5 + $0xf8] sm:$0xff] %vm559, %v467
      %592 = vst.msk [vmem:[%s5 + $0x100] sm:$0xff] %vm559, %v472
      %593 = vst.msk [vmem:[%s5 + $0x108] sm:$0xff] %vm559, %v477
      %594 = vst.msk [vmem:[%s5 + $0x110] sm:$0xff] %vm559, %v482
      %595 = vst.msk [vmem:[%s5 + $0x118] sm:$0xff] %vm559, %v487
      %596 = vst.msk [vmem:[%s5 + $0x120] sm:$0xff] %vm559, %v492
      %597 = vst.msk [vmem:[%s5 + $0x128] sm:$0xff] %vm559, %v497
      %598 = vst.msk [vmem:[%s5 + $0x130] sm:$0xff] %vm559, %v502
      %599 = vst.msk [vmem:[%s5 + $0x138] sm:$0xff] %vm559, %v507
      %600 = vst.msk [vmem:[%s5 + $0x140] sm:$0xff] %vm559, %v512
      %601 = vst.msk [vmem:[%s5 + $0x148] sm:$0xff] %vm559, %v517
      %602 = vst.msk [vmem:[%s5 + $0x150] sm:$0xff] %vm559, %v522
      %603 = vst.msk [vmem:[%s5 + $0x158] sm:$0xff] %vm559, %v527
      %604 = vst.msk [vmem:[%s5 + $0x160] sm:$0xff] %vm559, %v532
      %605 = vst.msk [vmem:[%s5 + $0x168] sm:$0xff] %vm559, %v537
      %606 = vst.msk [vmem:[%s5 + $0x170] sm:$0xff] %vm559, %v542
      %607 = vst.msk [vmem:[%s5 + $0x178] sm:$0xff] %vm559, %v547
      %608 = vst.msk [vmem:[%s5 + $0x180] sm:$0xff] %vm559, %v552
    $region33: #{discriminator_forward.3} parent=1 // pred_fallthru
      _
    %p609 = scmp.gt.s32.totalorder 0, 0
    // Predicated region
    $region34: #{discriminator_forward.3} parent=1 // pred_check
      %p610 = pneg %p609
    $region35: #{discriminator_forward.3} parent=1 // pred_check_branch
      %612 = sbr.rel (%p610) target = $region37
    $region36: #{discriminator_forward.3} parent=1 // pred_region
      %v613 = vld [vmem:[%s5] sm:$0xff]
      %v614 = vld [vmem:[%s5 + $0x8] sm:$0xff]
      %v615 = vld [vmem:[%s5 + $0x10] sm:$0xff]
      %v616 = vld [vmem:[%s5 + $0x18] sm:$0xff]
      %v617 = vld [vmem:[%s5 + $0x20] sm:$0xff]
      %v618 = vld [vmem:[%s5 + $0x28] sm:$0xff]
      %v619 = vld [vmem:[%s5 + $0x30] sm:$0xff]
      %v620 = vld [vmem:[%s5 + $0x38] sm:$0xff]
      %v621 = vld [vmem:[%s5 + $0x40] sm:$0xff]
      %v622 = vld [vmem:[%s5 + $0x48] sm:$0xff]
      %v623 = vld [vmem:[%s5 + $0x50] sm:$0xff]
      %v624 = vld [vmem:[%s5 + $0x58] sm:$0xff]
      %v625 = vld [vmem:[%s5 + $0x60] sm:$0xff]
      %v626 = vld [vmem:[%s5 + $0x68] sm:$0xff]
      %v627 = vld [vmem:[%s5 + $0x70] sm:$0xff]
      %v628 = vld [vmem:[%s5 + $0x78] sm:$0xff]
      %v629 = vld [vmem:[%s5 + $0x80] sm:$0xff]
      %v630 = vld [vmem:[%s5 + $0x88] sm:$0xff]
      %v631 = vld [vmem:[%s5 + $0x90] sm:$0xff]
      %v632 = vld [vmem:[%s5 + $0x98] sm:$0xff]
      %v633 = vld [vmem:[%s5 + $0xa0] sm:$0xff]
      %v634 = vld [vmem:[%s5 + $0xa8] sm:$0xff]
      %v635 = vld [vmem:[%s5 + $0xb0] sm:$0xff]
      %v636 = vld [vmem:[%s5 + $0xb8] sm:$0xff]
      %v637 = vld [vmem:[%s5 + $0xc0] sm:$0xff]
      %v638 = vld [vmem:[%s5 + $0xc8] sm:$0xff]
      %v639 = vld [vmem:[%s5 + $0xd0] sm:$0xff]
      %v640 = vld [vmem:[%s5 + $0xd8] sm:$0xff]
      %v641 = vld [vmem:[%s5 + $0xe0] sm:$0xff]
      %v642 = vld [vmem:[%s5 + $0xe8] sm:$0xff]
      %v643 = vld [vmem:[%s5 + $0xf0] sm:$0xff]
      %v644 = vld [vmem:[%s5 + $0xf8] sm:$0xff]
      %v645 = vld [vmem:[%s5 + $0x100] sm:$0xff]
      %v646 = vld [vmem:[%s5 + $0x108] sm:$0xff]
      %v647 = vld [vmem:[%s5 + $0x110] sm:$0xff]
      %v648 = vld [vmem:[%s5 + $0x118] sm:$0xff]
      %v649 = vld [vmem:[%s5 + $0x120] sm:$0xff]
      %v650 = vld [vmem:[%s5 + $0x128] sm:$0xff]
      %v651 = vld [vmem:[%s5 + $0x130] sm:$0xff]
      %v652 = vld [vmem:[%s5 + $0x138] sm:$0xff]
      %v653 = vld [vmem:[%s5 + $0x140] sm:$0xff]
      %v654 = vld [vmem:[%s5 + $0x148] sm:$0xff]
      %v655 = vld [vmem:[%s5 + $0x150] sm:$0xff]
      %v656 = vld [vmem:[%s5 + $0x158] sm:$0xff]
      %v657 = vld [vmem:[%s5 + $0x160] sm:$0xff]
      %v658 = vld [vmem:[%s5 + $0x168] sm:$0xff]
      %v659 = vld [vmem:[%s5 + $0x170] sm:$0xff]
      %v660 = vld [vmem:[%s5 + $0x178] sm:$0xff]
      %v661 = vld [vmem:[%s5 + $0x180] sm:$0xff]
      %v662 = vadd.f32 %v613, %v312
      %v663 = vadd.f32 %v614, %v317
      %v664 = vadd.f32 %v615, %v322
      %v665 = vadd.f32 %v616, %v327
      %v666 = vadd.f32 %v617, %v332
      %v667 = vadd.f32 %v618, %v337
      %v668 = vadd.f32 %v619, %v342
      %v669 = vadd.f32 %v620, %v347
      %v670 = vadd.f32 %v621, %v352
      %v671 = vadd.f32 %v622, %v357
      %v672 = vadd.f32 %v623, %v362
      %v673 = vadd.f32 %v624, %v367
      %v674 = vadd.f32 %v625, %v372
      %v675 = vadd.f32 %v626, %v377
      %v676 = vadd.f32 %v627, %v382
      %v677 = vadd.f32 %v628, %v387
      %v678 = vadd.f32 %v629, %v392
      %v679 = vadd.f32 %v630, %v397
      %v680 = vadd.f32 %v631, %v402
      %v681 = vadd.f32 %v632, %v407
      %v682 = vadd.f32 %v633, %v412
      %v683 = vadd.f32 %v634, %v417
      %v684 = vadd.f32 %v635, %v422
      %v685 = vadd.f32 %v636, %v427
      %v686 = vadd.f32 %v637, %v432
      %v687 = vadd.f32 %v638, %v437
      %v688 = vadd.f32 %v639, %v442
      %v689 = vadd.f32 %v640, %v447
      %v690 = vadd.f32 %v641, %v452
      %v691 = vadd.f32 %v642, %v457
      %v692 = vadd.f32 %v643, %v462
      %v693 = vadd.f32 %v644, %v467
      %v694 = vadd.f32 %v645, %v472
      %v695 = vadd.f32 %v646, %v477
      %v696 = vadd.f32 %v647, %v482
      %v697 = vadd.f32 %v648, %v487
      %v698 = vadd.f32 %v649, %v492
      %v699 = vadd.f32 %v650, %v497
      %v700 = vadd.f32 %v651, %v502
      %v701 = vadd.f32 %v652, %v507
      %v702 = vadd.f32 %v653, %v512
      %v703 = vadd.f32 %v654, %v517
      %v704 = vadd.f32 %v655, %v522
      %v705 = vadd.f32 %v656, %v527
      %v706 = vadd.f32 %v657, %v532
      %v707 = vadd.f32 %v658, %v537
      %v708 = vadd.f32 %v659, %v542
      %v709 = vadd.f32 %v660, %v547
      %v710 = vadd.f32 %v661, %v552
      %vm711 = vcmask 523264
      %712 = vst.msk [vmem:[%s5] sm:$0xff] %vm711, %v662
      %713 = vst.msk [vmem:[%s5 + $0x8] sm:$0xff] %vm711, %v663
      %714 = vst.msk [vmem:[%s5 + $0x10] sm:$0xff] %vm711, %v664
      %715 = vst.msk [vmem:[%s5 + $0x18] sm:$0xff] %vm711, %v665
      %716 = vst.msk [vmem:[%s5 + $0x20] sm:$0xff] %vm711, %v666
      %717 = vst.msk [vmem:[%s5 + $0x28] sm:$0xff] %vm711, %v667
      %718 = vst.msk [vmem:[%s5 + $0x30] sm:$0xff] %vm711, %v668
      %719 = vst.msk [vmem:[%s5 + $0x38] sm:$0xff] %vm711, %v669
      %720 = vst.msk [vmem:[%s5 + $0x40] sm:$0xff] %vm711, %v670
      %721 = vst.msk [vmem:[%s5 + $0x48] sm:$0xff] %vm711, %v671
      %722 = vst.msk [vmem:[%s5 + $0x50] sm:$0xff] %vm711, %v672
      %723 = vst.msk [vmem:[%s5 + $0x58] sm:$0xff] %vm711, %v673
      %724 = vst.msk [vmem:[%s5 + $0x60] sm:$0xff] %vm711, %v674
      %725 = vst.msk [vmem:[%s5 + $0x68] sm:$0xff] %vm711, %v675
      %726 = vst.msk [vmem:[%s5 + $0x70] sm:$0xff] %vm711, %v676
      %727 = vst.msk [vmem:[%s5 + $0x78] sm:$0xff] %vm711, %v677
      %728 = vst.msk [vmem:[%s5 + $0x80] sm:$0xff] %vm711, %v678
      %729 = vst.msk [vmem:[%s5 + $0x88] sm:$0xff] %vm711, %v679
      %730 = vst.msk [vmem:[%s5 + $0x90] sm:$0xff] %vm711, %v680
      %731 = vst.msk [vmem:[%s5 + $0x98] sm:$0xff] %vm711, %v681
      %732 = vst.msk [vmem:[%s5 + $0xa0] sm:$0xff] %vm711, %v682
      %733 = vst.msk [vmem:[%s5 + $0xa8] sm:$0xff] %vm711, %v683
      %734 = vst.msk [vmem:[%s5 + $0xb0] sm:$0xff] %vm711, %v684
      %735 = vst.msk [vmem:[%s5 + $0xb8] sm:$0xff] %vm711, %v685
      %736 = vst.msk [vmem:[%s5 + $0xc0] sm:$0xff] %vm711, %v686
      %737 = vst.msk [vmem:[%s5 + $0xc8] sm:$0xff] %vm711, %v687
      %738 = vst.msk [vmem:[%s5 + $0xd0] sm:$0xff] %vm711, %v688
      %739 = vst.msk [vmem:[%s5 + $0xd8] sm:$0xff] %vm711, %v689
      %740 = vst.msk [vmem:[%s5 + $0xe0] sm:$0xff] %vm711, %v690
      %741 = vst.msk [vmem:[%s5 + $0xe8] sm:$0xff] %vm711, %v691
      %742 = vst.msk [vmem:[%s5 + $0xf0] sm:$0xff] %vm711, %v692
      %743 = vst.msk [vmem:[%s5 + $0xf8] sm:$0xff] %vm711, %v693
      %744 = vst.msk [vmem:[%s5 + $0x100] sm:$0xff] %vm711, %v694
      %745 = vst.msk [vmem:[%s5 + $0x108] sm:$0xff] %vm711, %v695
      %746 = vst.msk [vmem:[%s5 + $0x110] sm:$0xff] %vm711, %v696
      %747 = vst.msk [vmem:[%s5 + $0x118] sm:$0xff] %vm711, %v697
      %748 = vst.msk [vmem:[%s5 + $0x120] sm:$0xff] %vm711, %v698
      %749 = vst.msk [vmem:[%s5 + $0x128] sm:$0xff] %vm711, %v699
      %750 = vst.msk [vmem:[%s5 + $0x130] sm:$0xff] %vm711, %v700
      %751 = vst.msk [vmem:[%s5 + $0x138] sm:$0xff] %vm711, %v701
      %752 = vst.msk [vmem:[%s5 + $0x140] sm:$0xff] %vm711, %v702
      %753 = vst.msk [vmem:[%s5 + $0x148] sm:$0xff] %vm711, %v703
      %754 = vst.msk [vmem:[%s5 + $0x150] sm:$0xff] %vm711, %v704
      %755 = vst.msk [vmem:[%s5 + $0x158] sm:$0xff] %vm711, %v705
      %756 = vst.msk [vmem:[%s5 + $0x160] sm:$0xff] %vm711, %v706
      %757 = vst.msk [vmem:[%s5 + $0x168] sm:$0xff] %vm711, %v707
      %758 = vst.msk [vmem:[%s5 + $0x170] sm:$0xff] %vm711, %v708
      %759 = vst.msk [vmem:[%s5 + $0x178] sm:$0xff] %vm711, %v709
      %760 = vst.msk [vmem:[%s5 + $0x180] sm:$0xff] %vm711, %v710
    $region37: #{discriminator_forward.3} parent=1 // pred_fallthru
      _
    // Predicated region
    $region38: #{discriminator_forward.3} parent=1 // pred_check
      %p761 = pneg %p555
    $region39: #{discriminator_forward.3} parent=1 // pred_check_branch
      %763 = sbr.rel (%p761) target = $region41
    $region40: #{discriminator_forward.3} parent=1 // pred_region
      %v764 = vld [vmem:[%s5] sm:$0xff]
      %v765 = vld [vmem:[%s5 + $0x8] sm:$0xff]
      %v766 = vld [vmem:[%s5 + $0x10] sm:$0xff]
      %v767 = vld [vmem:[%s5 + $0x18] sm:$0xff]
      %v768 = vld [vmem:[%s5 + $0x20] sm:$0xff]
      %v769 = vld [vmem:[%s5 + $0x28] sm:$0xff]
      %v770 = vld [vmem:[%s5 + $0x30] sm:$0xff]
      %v771 = vld [vmem:[%s5 + $0x38] sm:$0xff]
      %v772 = vld [vmem:[%s5 + $0x40] sm:$0xff]
      %v773 = vld [vmem:[%s5 + $0x48] sm:$0xff]
      %v774 = vld [vmem:[%s5 + $0x50] sm:$0xff]
      %v775 = vld [vmem:[%s5 + $0x58] sm:$0xff]
      %v776 = vld [vmem:[%s5 + $0x60] sm:$0xff]
      %v777 = vld [vmem:[%s5 + $0x68] sm:$0xff]
      %v778 = vld [vmem:[%s5 + $0x70] sm:$0xff]
      %v779 = vld [vmem:[%s5 + $0x78] sm:$0xff]
      %v780 = vld [vmem:[%s5 + $0x80] sm:$0xff]
      %v781 = vld [vmem:[%s5 + $0x88] sm:$0xff]
      %v782 = vld [vmem:[%s5 + $0x90] sm:$0xff]
      %v783 = vld [vmem:[%s5 + $0x98] sm:$0xff]
      %v784 = vld [vmem:[%s5 + $0xa0] sm:$0xff]
      %v785 = vld [vmem:[%s5 + $0xa8] sm:$0xff]
      %v786 = vld [vmem:[%s5 + $0xb0] sm:$0xff]
      %v787 = vld [vmem:[%s5 + $0xb8] sm:$0xff]
      %v788 = vld [vmem:[%s5 + $0xc0] sm:$0xff]
      %v789 = vld [vmem:[%s5 + $0xc8] sm:$0xff]
      %v790 = vld [vmem:[%s5 + $0xd0] sm:$0xff]
      %v791 = vld [vmem:[%s5 + $0xd8] sm:$0xff]
      %v792 = vld [vmem:[%s5 + $0xe0] sm:$0xff]
      %v793 = vld [vmem:[%s5 + $0xe8] sm:$0xff]
      %v794 = vld [vmem:[%s5 + $0xf0] sm:$0xff]
      %v795 = vld [vmem:[%s5 + $0xf8] sm:$0xff]
      %v796 = vld [vmem:[%s5 + $0x100] sm:$0xff]
      %v797 = vld [vmem:[%s5 + $0x108] sm:$0xff]
      %v798 = vld [vmem:[%s5 + $0x110] sm:$0xff]
      %v799 = vld [vmem:[%s5 + $0x118] sm:$0xff]
      %v800 = vld [vmem:[%s5 + $0x120] sm:$0xff]
      %v801 = vld [vmem:[%s5 + $0x128] sm:$0xff]
      %v802 = vld [vmem:[%s5 + $0x130] sm:$0xff]
      %v803 = vld [vmem:[%s5 + $0x138] sm:$0xff]
      %v804 = vld [vmem:[%s5 + $0x140] sm:$0xff]
      %v805 = vld [vmem:[%s5 + $0x148] sm:$0xff]
      %v806 = vld [vmem:[%s5 + $0x150] sm:$0xff]
      %v807 = vld [vmem:[%s5 + $0x158] sm:$0xff]
      %v808 = vld [vmem:[%s5 + $0x160] sm:$0xff]
      %v809 = vld [vmem:[%s5 + $0x168] sm:$0xff]
      %v810 = vld [vmem:[%s5 + $0x170] sm:$0xff]
      %v811 = vld [vmem:[%s5 + $0x178] sm:$0xff]
      %v812 = vld [vmem:[%s5 + $0x180] sm:$0xff]
      %v813 = vld [vmem:[#allocation4] sm:$0x1]
      %v815 = vlaneseq
      %v816 = vshrl.u32 %v815, 7
      %v817 = vsub.s32 0, %v816
      %v818 = vrot.slane %v813, %v817
      %v820 = vadd.f32 %v764, %v818
      %v821 = vadd.f32 %v765, %v818
      %v822 = vadd.f32 %v766, %v818
      %v823 = vadd.f32 %v767, %v818
      %v824 = vadd.f32 %v768, %v818
      %v825 = vadd.f32 %v769, %v818
      %v826 = vadd.f32 %v770, %v818
      %v827 = vadd.f32 %v771, %v818
      %v828 = vadd.f32 %v772, %v818
      %v829 = vadd.f32 %v773, %v818
      %v830 = vadd.f32 %v774, %v818
      %v831 = vadd.f32 %v775, %v818
      %v832 = vadd.f32 %v776, %v818
      %v833 = vadd.f32 %v777, %v818
      %v834 = vadd.f32 %v778, %v818
      %v835 = vadd.f32 %v779, %v818
      %v836 = vadd.f32 %v780, %v818
      %v837 = vadd.f32 %v781, %v818
      %v838 = vadd.f32 %v782, %v818
      %v839 = vadd.f32 %v783, %v818
      %v840 = vadd.f32 %v784, %v818
      %v841 = vadd.f32 %v785, %v818
      %v842 = vadd.f32 %v786, %v818
      %v843 = vadd.f32 %v787, %v818
      %v844 = vadd.f32 %v788, %v818
      %v845 = vadd.f32 %v789, %v818
      %v846 = vadd.f32 %v790, %v818
      %v847 = vadd.f32 %v791, %v818
      %v848 = vadd.f32 %v792, %v818
      %v849 = vadd.f32 %v793, %v818
      %v850 = vadd.f32 %v794, %v818
      %v851 = vadd.f32 %v795, %v818
      %v852 = vadd.f32 %v796, %v818
      %v853 = vadd.f32 %v797, %v818
      %v854 = vadd.f32 %v798, %v818
      %v855 = vadd.f32 %v799, %v818
      %v856 = vadd.f32 %v800, %v818
      %v857 = vadd.f32 %v801, %v818
      %v858 = vadd.f32 %v802, %v818
      %v859 = vadd.f32 %v803, %v818
      %v860 = vadd.f32 %v804, %v818
      %v861 = vadd.f32 %v805, %v818
      %v862 = vadd.f32 %v806, %v818
      %v863 = vadd.f32 %v807, %v818
      %v864 = vadd.f32 %v808, %v818
      %v865 = vadd.f32 %v809, %v818
      %v866 = vadd.f32 %v810, %v818
      %v867 = vadd.f32 %v811, %v818
      %v868 = vadd.f32 %v812, %v818
      %vm869 = vcmp.gt.f32.partialorder %v820, 0.0
      %vm870 = vcmp.gt.f32.partialorder %v821, 0.0
      %vm871 = vcmp.gt.f32.partialorder %v822, 0.0
      %vm872 = vcmp.gt.f32.partialorder %v823, 0.0
      %vm873 = vcmp.gt.f32.partialorder %v824, 0.0
      %vm874 = vcmp.gt.f32.partialorder %v825, 0.0
      %vm875 = vcmp.gt.f32.partialorder %v826, 0.0
      %vm876 = vcmp.gt.f32.partialorder %v827, 0.0
      %vm877 = vcmp.gt.f32.partialorder %v828, 0.0
      %vm878 = vcmp.gt.f32.partialorder %v829, 0.0
      %vm879 = vcmp.gt.f32.partialorder %v830, 0.0
      %vm880 = vcmp.gt.f32.partialorder %v831, 0.0
      %vm881 = vcmp.gt.f32.partialorder %v832, 0.0
      %vm882 = vcmp.gt.f32.partialorder %v833, 0.0
      %vm883 = vcmp.gt.f32.partialorder %v834, 0.0
      %vm884 = vcmp.gt.f32.partialorder %v835, 0.0
      %vm885 = vcmp.gt.f32.partialorder %v836, 0.0
      %vm886 = vcmp.gt.f32.partialorder %v837, 0.0
      %vm887 = vcmp.gt.f32.partialorder %v838, 0.0
      %vm888 = vcmp.gt.f32.partialorder %v839, 0.0
      %vm889 = vcmp.gt.f32.partialorder %v840, 0.0
      %vm890 = vcmp.gt.f32.partialorder %v841, 0.0
      %vm891 = vcmp.gt.f32.partialorder %v842, 0.0
      %vm892 = vcmp.gt.f32.partialorder %v843, 0.0
      %vm893 = vcmp.gt.f32.partialorder %v844, 0.0
      %vm894 = vcmp.gt.f32.partialorder %v845, 0.0
      %vm895 = vcmp.gt.f32.partialorder %v846, 0.0
      %vm896 = vcmp.gt.f32.partialorder %v847, 0.0
      %vm897 = vcmp.gt.f32.partialorder %v848, 0.0
      %vm898 = vcmp.gt.f32.partialorder %v849, 0.0
      %vm899 = vcmp.gt.f32.partialorder %v850, 0.0
      %vm900 = vcmp.gt.f32.partialorder %v851, 0.0
      %vm901 = vcmp.gt.f32.partialorder %v852, 0.0
      %vm902 = vcmp.gt.f32.partialorder %v853, 0.0
      %vm903 = vcmp.gt.f32.partialorder %v854, 0.0
      %vm904 = vcmp.gt.f32.partialorder %v855, 0.0
      %vm905 = vcmp.gt.f32.partialorder %v856, 0.0
      %vm906 = vcmp.gt.f32.partialorder %v857, 0.0
      %vm907 = vcmp.gt.f32.partialorder %v858, 0.0
      %vm908 = vcmp.gt.f32.partialorder %v859, 0.0
      %vm909 = vcmp.gt.f32.partialorder %v860, 0.0
      %vm910 = vcmp.gt.f32.partialorder %v861, 0.0
      %vm911 = vcmp.gt.f32.partialorder %v862, 0.0
      %vm912 = vcmp.gt.f32.partialorder %v863, 0.0
      %vm913 = vcmp.gt.f32.partialorder %v864, 0.0
      %vm914 = vcmp.gt.f32.partialorder %v865, 0.0
      %vm915 = vcmp.gt.f32.partialorder %v866, 0.0
      %vm916 = vcmp.gt.f32.partialorder %v867, 0.0
      %vm917 = vcmp.gt.f32.partialorder %v868, 0.0
      %v918 = vmul.f32 %v820, 0.2
      %v919 = vmul.f32 %v821, 0.2
      %v920 = vmul.f32 %v822, 0.2
      %v921 = vmul.f32 %v823, 0.2
      %v922 = vmul.f32 %v824, 0.2
      %v923 = vmul.f32 %v825, 0.2
      %v924 = vmul.f32 %v826, 0.2
      %v925 = vmul.f32 %v827, 0.2
      %v926 = vmul.f32 %v828, 0.2
      %v927 = vmul.f32 %v829, 0.2
      %v928 = vmul.f32 %v830, 0.2
      %v929 = vmul.f32 %v831, 0.2
      %v930 = vmul.f32 %v832, 0.2
      %v931 = vmul.f32 %v833, 0.2
      %v932 = vmul.f32 %v834, 0.2
      %v933 = vmul.f32 %v835, 0.2
      %v934 = vmul.f32 %v836, 0.2
      %v935 = vmul.f32 %v837, 0.2
      %v936 = vmul.f32 %v838, 0.2
      %v937 = vmul.f32 %v839, 0.2
      %v938 = vmul.f32 %v840, 0.2
      %v939 = vmul.f32 %v841, 0.2
      %v940 = vmul.f32 %v842, 0.2
      %v941 = vmul.f32 %v843, 0.2
      %v942 = vmul.f32 %v844, 0.2
      %v943 = vmul.f32 %v845, 0.2
      %v944 = vmul.f32 %v846, 0.2
      %v945 = vmul.f32 %v847, 0.2
      %v946 = vmul.f32 %v848, 0.2
      %v947 = vmul.f32 %v849, 0.2
      %v948 = vmul.f32 %v850, 0.2
      %v949 = vmul.f32 %v851, 0.2
      %v950 = vmul.f32 %v852, 0.2
      %v951 = vmul.f32 %v853, 0.2
      %v952 = vmul.f32 %v854, 0.2
      %v953 = vmul.f32 %v855, 0.2
      %v954 = vmul.f32 %v856, 0.2
      %v955 = vmul.f32 %v857, 0.2
      %v956 = vmul.f32 %v858, 0.2
      %v957 = vmul.f32 %v859, 0.2
      %v958 = vmul.f32 %v860, 0.2
      %v959 = vmul.f32 %v861, 0.2
      %v960 = vmul.f32 %v862, 0.2
      %v961 = vmul.f32 %v863, 0.2
      %v962 = vmul.f32 %v864, 0.2
      %v963 = vmul.f32 %v865, 0.2
      %v964 = vmul.f32 %v866, 0.2
      %v965 = vmul.f32 %v867, 0.2
      %v966 = vmul.f32 %v868, 0.2
      %v967 = vsel %vm869, %v820, %v918
      %v968 = vsel %vm870, %v821, %v919
      %v969 = vsel %vm871, %v822, %v920
      %v970 = vsel %vm872, %v823, %v921
      %v971 = vsel %vm873, %v824, %v922
      %v972 = vsel %vm874, %v825, %v923
      %v973 = vsel %vm875, %v826, %v924
      %v974 = vsel %vm876, %v827, %v925
      %v975 = vsel %vm877, %v828, %v926
      %v976 = vsel %vm878, %v829, %v927
      %v977 = vsel %vm879, %v830, %v928
      %v978 = vsel %vm880, %v831, %v929
      %v979 = vsel %vm881, %v832, %v930
      %v980 = vsel %vm882, %v833, %v931
      %v981 = vsel %vm883, %v834, %v932
      %v982 = vsel %vm884, %v835, %v933
      %v983 = vsel %vm885, %v836, %v934
      %v984 = vsel %vm886, %v837, %v935
      %v985 = vsel %vm887, %v838, %v936
      %v986 = vsel %vm888, %v839, %v937
      %v987 = vsel %vm889, %v840, %v938
      %v988 = vsel %vm890, %v841, %v939
      %v989 = vsel %vm891, %v842, %v940
      %v990 = vsel %vm892, %v843, %v941
      %v991 = vsel %vm893, %v844, %v942
      %v992 = vsel %vm894, %v845, %v943
      %v993 = vsel %vm895, %v846, %v944
      %v994 = vsel %vm896, %v847, %v945
      %v995 = vsel %vm897, %v848, %v946
      %v996 = vsel %vm898, %v849, %v947
      %v997 = vsel %vm899, %v850, %v948
      %v998 = vsel %vm900, %v851, %v949
      %v999 = vsel %vm901, %v852, %v950
      %v1000 = vsel %vm902, %v853, %v951
      %v1001 = vsel %vm903, %v854, %v952
      %v1002 = vsel %vm904, %v855, %v953
      %v1003 = vsel %vm905, %v856, %v954
      %v1004 = vsel %vm906, %v857, %v955
      %v1005 = vsel %vm907, %v858, %v956
      %v1006 = vsel %vm908, %v859, %v957
      %v1007 = vsel %vm909, %v860, %v958
      %v1008 = vsel %vm910, %v861, %v959
      %v1009 = vsel %vm911, %v862, %v960
      %v1010 = vsel %vm912, %v863, %v961
      %v1011 = vsel %vm913, %v864, %v962
      %v1012 = vsel %vm914, %v865, %v963
      %v1013 = vsel %vm915, %v866, %v964
      %v1014 = vsel %vm916, %v867, %v965
      %v1015 = vsel %vm917, %v868, %v966
      %vm1016 = vcmask 523264
      %1017 = vst.msk [vmem:[%s5] sm:$0xff] %vm1016, %v967
      %1018 = vst.msk [vmem:[%s5 + $0x8] sm:$0xff] %vm1016, %v968
      %1019 = vst.msk [vmem:[%s5 + $0x10] sm:$0xff] %vm1016, %v969
      %1020 = vst.msk [vmem:[%s5 + $0x18] sm:$0xff] %vm1016, %v970
      %1021 = vst.msk [vmem:[%s5 + $0x20] sm:$0xff] %vm1016, %v971
      %1022 = vst.msk [vmem:[%s5 + $0x28] sm:$0xff] %vm1016, %v972
      %1023 = vst.msk [vmem:[%s5 + $0x30] sm:$0xff] %vm1016, %v973
      %1024 = vst.msk [vmem:[%s5 + $0x38] sm:$0xff] %vm1016, %v974
      %1025 = vst.msk [vmem:[%s5 + $0x40] sm:$0xff] %vm1016, %v975
      %1026 = vst.msk [vmem:[%s5 + $0x48] sm:$0xff] %vm1016, %v976
      %1027 = vst.msk [vmem:[%s5 + $0x50] sm:$0xff] %vm1016, %v977
      %1028 = vst.msk [vmem:[%s5 + $0x58] sm:$0xff] %vm1016, %v978
      %1029 = vst.msk [vmem:[%s5 + $0x60] sm:$0xff] %vm1016, %v979
      %1030 = vst.msk [vmem:[%s5 + $0x68] sm:$0xff] %vm1016, %v980
      %1031 = vst.msk [vmem:[%s5 + $0x70] sm:$0xff] %vm1016, %v981
      %1032 = vst.msk [vmem:[%s5 + $0x78] sm:$0xff] %vm1016, %v982
      %1033 = vst.msk [vmem:[%s5 + $0x80] sm:$0xff] %vm1016, %v983
      %1034 = vst.msk [vmem:[%s5 + $0x88] sm:$0xff] %vm1016, %v984
      %1035 = vst.msk [vmem:[%s5 + $0x90] sm:$0xff] %vm1016, %v985
      %1036 = vst.msk [vmem:[%s5 + $0x98] sm:$0xff] %vm1016, %v986
      %1037 = vst.msk [vmem:[%s5 + $0xa0] sm:$0xff] %vm1016, %v987
      %1038 = vst.msk [vmem:[%s5 + $0xa8] sm:$0xff] %vm1016, %v988
      %1039 = vst.msk [vmem:[%s5 + $0xb0] sm:$0xff] %vm1016, %v989
      %1040 = vst.msk [vmem:[%s5 + $0xb8] sm:$0xff] %vm1016, %v990
      %1041 = vst.msk [vmem:[%s5 + $0xc0] sm:$0xff] %vm1016, %v991
      %1042 = vst.msk [vmem:[%s5 + $0xc8] sm:$0xff] %vm1016, %v992
      %1043 = vst.msk [vmem:[%s5 + $0xd0] sm:$0xff] %vm1016, %v993
      %1044 = vst.msk [vmem:[%s5 + $0xd8] sm:$0xff] %vm1016, %v994
      %1045 = vst.msk [vmem:[%s5 + $0xe0] sm:$0xff] %vm1016, %v995
      %1046 = vst.msk [vmem:[%s5 + $0xe8] sm:$0xff] %vm1016, %v996
      %1047 = vst.msk [vmem:[%s5 + $0xf0] sm:$0xff] %vm1016, %v997
      %1048 = vst.msk [vmem:[%s5 + $0xf8] sm:$0xff] %vm1016, %v998
      %1049 = vst.msk [vmem:[%s5 + $0x100] sm:$0xff] %vm1016, %v999
      %1050 = vst.msk [vmem:[%s5 + $0x108] sm:$0xff] %vm1016, %v1000
      %1051 = vst.msk [vmem:[%s5 + $0x110] sm:$0xff] %vm1016, %v1001
      %1052 = vst.msk [vmem:[%s5 + $0x118] sm:$0xff] %vm1016, %v1002
      %1053 = vst.msk [vmem:[%s5 + $0x120] sm:$0xff] %vm1016, %v1003
      %1054 = vst.msk [vmem:[%s5 + $0x128] sm:$0xff] %vm1016, %v1004
      %1055 = vst.msk [vmem:[%s5 + $0x130] sm:$0xff] %vm1016, %v1005
      %1056 = vst.msk [vmem:[%s5 + $0x138] sm:$0xff] %vm1016, %v1006
      %1057 = vst.msk [vmem:[%s5 + $0x140] sm:$0xff] %vm1016, %v1007
      %1058 = vst.msk [vmem:[%s5 + $0x148] sm:$0xff] %vm1016, %v1008
      %1059 = vst.msk [vmem:[%s5 + $0x150] sm:$0xff] %vm1016, %v1009
      %1060 = vst.msk [vmem:[%s5 + $0x158] sm:$0xff] %vm1016, %v1010
      %1061 = vst.msk [vmem:[%s5 + $0x160] sm:$0xff] %vm1016, %v1011
      %1062 = vst.msk [vmem:[%s5 + $0x168] sm:$0xff] %vm1016, %v1012
      %1063 = vst.msk [vmem:[%s5 + $0x170] sm:$0xff] %vm1016, %v1013
      %1064 = vst.msk [vmem:[%s5 + $0x178] sm:$0xff] %vm1016, %v1014
      %1065 = vst.msk [vmem:[%s5 + $0x180] sm:$0xff] %vm1016, %v1015
    $region41: #{discriminator_forward.3} parent=1 // pred_fallthru
      _
    // Predicated region
    $region42: #{discriminator_forward.3} parent=1 // pred_check
      _
    $region43: #{discriminator_forward.3} parent=1 // pred_check_branch
      %1067 = sbr.rel (0) target = $region45
    $region44: #{discriminator_forward.3} parent=1 // pred_region
      _
    $region45: #{discriminator_forward.3} parent=1 // pred_fallthru
      _
    // Predicated region
    $region46: #{discriminator_forward.3} parent=1 // pred_check
      _
    $region47: #{discriminator_forward.3} parent=1 // pred_check_branch
      %1069 = sbr.rel (0) target = $region49
    $region48: #{discriminator_forward.3} parent=1 // pred_region
      _
    $region49: #{discriminator_forward.3} parent=1 // pred_fallthru
      _
    %1070 = vsyncpa [#allocation3], 1
    %1071 = vsyncpa [#allocation5], 1

// kernel: discriminator_forward.4
$region0: #{discriminator_forward.4}
  #allocation0 [shape = 'u32[]', space=smem, size = 0x4, offset = 0x4, fixed_abs, tag = 'smem constant byte address 0x4 - core index']
  #allocation1 [shape = 'u32[144,128]{1,0:T(1,128)}', space=vmem, size = 0x12000, scoped, tag = 'internal scratch']
  %s0 = inlined_call_operand.vmem [shape: f32[98,1024], index: 0, kind: input, shape index: {}]
  %s1 = inlined_call_operand.hbm [shape: f32[1024,128], index: 1, kind: input, shape index: {}]
  %s2 = inlined_call_operand.hbm [shape: f32[1,128], index: 2, kind: input, shape index: {}]
  %s3 = inlined_call_operand.hbm [shape: f32[1,128], index: 3, kind: input, shape index: {}]
  %s4 = inlined_call_operand.hbm [shape: f32[1,128], index: 4, kind: input, shape index: {}]
  %s5 = inlined_call_operand.vmem [shape: f32[98,128], index: 5, kind: output, shape index: {}]
  %s6 = sld [smem:[#allocation0]]
  $region104: #{discriminator_forward.4} parent=0
    _
  %s8 = ssub.s32 1, %s6
  %s9 = scalar_select 0, %s8, %s6
  $region1: #{discriminator_forward.4} parent=0
    #allocation2 [shape = 'u8[212992]{0}', space=vmem, size = 0x34000, scoped, tag = 'input window, operand 0']
    #allocation3 [shape = 'u8[262144]{0}', space=vmem, size = 0x40000, scoped, tag = 'input window, operand 1']
    #allocation4 [shape = 's32[2]{0}', space=sflag, size = 0x8, scoped, tag = 'scoped memory for discriminator_forward.4']
    #allocation5 [shape = 'u8[512]{0}', space=vmem, size = 0x400, scoped, tag = 'input window, operand 2, single buffered']
    #allocation6 [shape = 's32[1]{0}', space=sflag, size = 0x4, scoped, tag = 'scoped memory for discriminator_forward.4']
    #allocation7 [shape = 'u8[512]{0}', space=vmem, size = 0x400, scoped, tag = 'input window, operand 3, single buffered']
    #allocation8 [shape = 'u8[512]{0}', space=vmem, size = 0x400, scoped, tag = 'input window, operand 4, single buffered']
    #allocation9 [shape = 's32[1]{0}', space=sflag, size = 0x4, scoped, tag = 'scoped memory for discriminator_forward.4']
    %10 = vsyncpa [#allocation4], 0
    %s11 = scalar_lea.sflag [#allocation4], 1
    %12 = vsyncpa %s11, 0
    %13 = vsyncpa [#allocation6], 0
    %14 = vsyncpa [#allocation9], 0
    loop: start=0, step=1, limit=6
    $region2: #{discriminator_forward.4} parent=1 // loop_pre_header
      _
    $region3: #{discriminator_forward.4} parent=1 // loop_header
      %s16 = sphi 0, %s20
      %p17 = scmp.ge.s32.totalorder %s16, 6
      %s23 = sphi 0, %s35
      %s24 = sphi 0, %s31
      %s25 = sphi 0, %s23
      %s26 = sphi 0, %s24
      %s27 = sphi 0, %s25
      %s28 = sphi 0, %s26
      %s40 = sphi 0, %s42
      %s43 = sphi 0, %s40
      %s44 = sphi 0, %s43
      %s60 = sphi 0, %s44
      %s66 = sphi 0, %s68
      %s69 = sphi 0, %s66
      %s70 = sphi 0, %s69
      %s86 = sphi 0, %s70
      %s90 = sphi 0, %s90
      %s92 = sphi 0, %s90
      %s93 = sphi 0, %s92
      %s107 = sphi 0, %s93
      %s111 = sphi 0, %s111
      %s113 = sphi 0, %s111
      %s114 = sphi 0, %s113
      %s128 = sphi 0, %s114
      %s132 = sphi 0, %s132
      %s134 = sphi 0, %s132
      %s135 = sphi 0, %s134
      %s149 = sphi 0, %s135
      %s155 = sphi 0, %s157
      %s158 = sphi 0, %s155
      %s159 = sphi 0, %s158
      %s175 = sphi 0, %s159
    $region4: #{discriminator_forward.4} parent=1 // loop_header_branch
      %19 = sbr.rel (%p17) target = $region8
    $region5: #{discriminator_forward.4} parent=1 // loop_body
      %s21 = ssub.s32 %s16, 1
      %s22 = ssub.s32 %s16, 2
      %s29 = sadd.s32 1, %s24
      %p30 = scmp.ge.s32.totalorder %s29, 4
      %s31 = scalar_select %p30, 0, %s29
      %s32 = sadd.s32 1, %s23
      %s33 = scalar_select %p30, %s32, %s23
      %p34 = scmp.ge.s32.totalorder %s33, 1
      %s35 = scalar_select %p34, 0, %s33
      %s36 = ssub.s32 %s23, %s35
      %s37 = ssub.s32 %s24, %s31
      %s38 = sor.u32 %s36, %s37
      %p39 = scmp.eq.s32.totalorder %s38, 0
      %s41 = sadd.s32 %s40, 1
      %s42 = scalar_select %p39, %s40, %s41
      %p45 = pneg %p39
      %p46 = scmp.eq.s32.totalorder %s16, 3
      %p47 = por %p45, %p46
      %p48 = scmp.ne.s32.totalorder %s40, %s43
      %p49 = scmp.eq.s32.totalorder %s16, 0
      %p50 = por %p48, %p49
      %p51 = scmp.ne.s32.totalorder %s40, %s43
      %p52 = scmp.eq.s32.totalorder %s21, 3
      %p53 = por %p51, %p52
      %p54 = scmp.ne.s32.totalorder %s43, %s44
      %p55 = scmp.eq.s32.totalorder %s21, 0
      %p56 = por %p54, %p55
      %p57 = scmp.ne.s32.totalorder %s43, %s44
      %p58 = scmp.eq.s32.totalorder %s22, 3
      %p59 = por %p57, %p58
      %p61 = scmp.ne.s32.totalorder %s44, %s60
      %p62 = scmp.eq.s32.totalorder %s22, 0
      %p63 = por %p61, %p62
      %s64 = ssub.s32 %s24, %s31
      %p65 = scmp.eq.s32.totalorder %s64, 0
      %s67 = sadd.s32 %s66, 1
      %s68 = scalar_select %p65, %s66, %s67
      %p71 = pneg %p65
      %p72 = scmp.eq.s32.totalorder %s16, 3
      %p73 = por %p71, %p72
      %p74 = scmp.ne.s32.totalorder %s66, %s69
      %p75 = scmp.eq.s32.totalorder %s16, 0
      %p76 = por %p74, %p75
      %p77 = scmp.ne.s32.totalorder %s66, %s69
      %p78 = scmp.eq.s32.totalorder %s21, 3
      %p79 = por %p77, %p78
      %p80 = scmp.ne.s32.totalorder %s69, %s70
      %p81 = scmp.eq.s32.totalorder %s21, 0
      %p82 = por %p80, %p81
      %p83 = scmp.ne.s32.totalorder %s69, %s70
      %p84 = scmp.eq.s32.totalorder %s22, 3
      %p85 = por %p83, %p84
      %p87 = scmp.ne.s32.totalorder %s70, %s86
      %p88 = scmp.eq.s32.totalorder %s22, 0
      %p89 = por %p87, %p88
      %s91 = sadd.s32 %s90, 1
      %p94 = scmp.eq.s32.totalorder %s16, 3
      %p95 = scmp.ne.s32.totalorder %s90, %s92
      %p96 = scmp.eq.s32.totalorder %s16, 0
      %p97 = por %p95, %p96
      %p98 = scmp.ne.s32.totalorder %s90, %s92
      %p99 = scmp.eq.s32.totalorder %s21, 3
      %p100 = por %p98, %p99
      %p101 = scmp.ne.s32.totalorder %s92, %s93
      %p102 = scmp.eq.s32.totalorder %s21, 0
      %p103 = por %p101, %p102
      %p104 = scmp.ne.s32.totalorder %s92, %s93
      %p105 = scmp.eq.s32.totalorder %s22, 3
      %p106 = por %p104, %p105
      %p108 = scmp.ne.s32.totalorder %s93, %s107
      %p109 = scmp.eq.s32.totalorder %s22, 0
      %p110 = por %p108, %p109
      %s112 = sadd.s32 %s111, 1
      %p115 = scmp.eq.s32.totalorder %s16, 3
      %p116 = scmp.ne.s32.totalorder %s111, %s113
      %p117 = scmp.eq.s32.totalorder %s16, 0
      %p118 = por %p116, %p117
      %p119 = scmp.ne.s32.totalorder %s111, %s113
      %p120 = scmp.eq.s32.totalorder %s21, 3
      %p121 = por %p119, %p120
      %p122 = scmp.ne.s32.totalorder %s113, %s114
      %p123 = scmp.eq.s32.totalorder %s21, 0
      %p124 = por %p122, %p123
      %p125 = scmp.ne.s32.totalorder %s113, %s114
      %p126 = scmp.eq.s32.totalorder %s22, 3
      %p127 = por %p125, %p126
      %p129 = scmp.ne.s32.totalorder %s114, %s128
      %p130 = scmp.eq.s32.totalorder %s22, 0
      %p131 = por %p129, %p130
      %s133 = sadd.s32 %s132, 1
      %p136 = scmp.eq.s32.totalorder %s16, 3
      %p137 = scmp.ne.s32.totalorder %s132, %s134
      %p138 = scmp.eq.s32.totalorder %s16, 0
      %p139 = por %p137, %p138
      %p140 = scmp.ne.s32.totalorder %s132, %s134
      %p141 = scmp.eq.s32.totalorder %s21, 3
      %p142 = por %p140, %p141
      %p143 = scmp.ne.s32.totalorder %s134, %s135
      %p144 = scmp.eq.s32.totalorder %s21, 0
      %p145 = por %p143, %p144
      %p146 = scmp.ne.s32.totalorder %s134, %s135
      %p147 = scmp.eq.s32.totalorder %s22, 3
      %p148 = por %p146, %p147
      %p150 = scmp.ne.s32.totalorder %s135, %s149
      %p151 = scmp.eq.s32.totalorder %s22, 0
      %p152 = por %p150, %p151
      %s153 = ssub.s32 %s23, %s35
      %p154 = scmp.eq.s32.totalorder %s153, 0
      %s156 = sadd.s32 %s155, 1
      %s157 = scalar_select %p154, %s155, %s156
      %p160 = pneg %p154
      %p161 = scmp.eq.s32.totalorder %s16, 3
      %p162 = por %p160, %p161
      %p163 = scmp.ne.s32.totalorder %s155, %s158
      %p164 = scmp.eq.s32.totalorder %s16, 0
      %p165 = por %p163, %p164
      %p166 = scmp.ne.s32.totalorder %s155, %s158
      %p167 = scmp.eq.s32.totalorder %s21, 3
      %p168 = por %p166, %p167
      %p169 = scmp.ne.s32.totalorder %s158, %s159
      %p170 = scmp.eq.s32.totalorder %s21, 0
      %p171 = por %p169, %p170
      %p172 = scmp.ne.s32.totalorder %s158, %s159
      %p173 = scmp.eq.s32.totalorder %s22, 3
      %p174 = por %p172, %p173
      %p176 = scmp.ne.s32.totalorder %s159, %s175
      %p177 = scmp.eq.s32.totalorder %s22, 0
      %p178 = por %p176, %p177
      %p179 = scmp.le.s32.totalorder 1, %s16
      %p180 = scmp.lt.s32.totalorder %s16, 5
      %p181 = pnand %p179, %p180
      %p182 = pneg %p181
      // Predicated region
      $region9: #{discriminator_forward.4} parent=5 // pred_check
        _
      $region10: #{discriminator_forward.4} parent=5 // pred_check_branch
        %184 = sbr.rel (%p181) target = $region12
      $region11: #{discriminator_forward.4} parent=5 // pred_region
        %s185 = ssub.s32 %s16, 1
        // Predicated region
        $region13: #{discriminator_forward.4} parent=11 // pred_check
          %p186 = pneg %p103
        $region14: #{discriminator_forward.4} parent=11 // pred_check_branch
          %188 = sbr.rel (%p186) target = $region16
        $region15: #{discriminator_forward.4} parent=11 // pred_region
          %s190 = ssub.s32 16, 16
          %191 = vsyncadd [#allocation6], %s190
          %s193 = sshll.u32 [#allocation5], 4
          %s194 = int_to_ptr.vmem [resolvable:$true] %s193
          %196 = dma.hbm_to_vmem [thread:$0]  %s2, 16, %s194, [#allocation6]
        $region16: #{discriminator_forward.4} parent=11 // pred_fallthru
          _
        // Predicated region
        $region17: #{discriminator_forward.4} parent=11 // pred_check
          %p197 = pneg %p124
        $region18: #{discriminator_forward.4} parent=11 // pred_check_branch
          %199 = sbr.rel (%p197) target = $region20
        $region19: #{discriminator_forward.4} parent=11 // pred_region
          %s201 = ssub.s32 16, 16
          %202 = vsyncadd [#allocation6], %s201
          %s204 = sshll.u32 [#allocation7], 4
          %s205 = int_to_ptr.vmem [resolvable:$true] %s204
          %207 = dma.hbm_to_vmem [thread:$0]  %s3, 16, %s205, [#allocation6]
        $region20: #{discriminator_forward.4} parent=11 // pred_fallthru
          _
        // Predicated region
        $region21: #{discriminator_forward.4} parent=11 // pred_check
          %p208 = pneg %p145
        $region22: #{discriminator_forward.4} parent=11 // pred_check_branch
          %210 = sbr.rel (%p208) target = $region24
        $region23: #{discriminator_forward.4} parent=11 // pred_region
          %s212 = ssub.s32 16, 16
          %213 = vsyncadd [#allocation9], %s212
          %s215 = sshll.u32 [#allocation8], 4
          %s216 = int_to_ptr.vmem [resolvable:$true] %s215
          %218 = dma.hbm_to_vmem [thread:$0]  %s4, 16, %s216, [#allocation9]
        $region24: #{discriminator_forward.4} parent=11 // pred_fallthru
          _
      $region12: #{discriminator_forward.4} parent=5 // pred_fallthru
        _
      %p219 = scmp.lt.s32.totalorder %s16, 4
      // Predicated region
      $region25: #{discriminator_forward.4} parent=5 // pred_check
        %p220 = pneg %p219
      $region26: #{discriminator_forward.4} parent=5 // pred_check_branch
        %222 = sbr.rel (%p220) target = $region28
      $region27: #{discriminator_forward.4} parent=5 // pred_region
        // Predicated region
        $region29: #{discriminator_forward.4} parent=27 // pred_check
          %p223 = pneg %p50
        $region30: #{discriminator_forward.4} parent=27 // pred_check_branch
          %225 = sbr.rel (%p223) target = $region32
        $region31: #{discriminator_forward.4} parent=27 // pred_region
          %s226 = sand.u32 %s40, 1
          %s227 = sand.u32 %s40, 1
          %s228 = smul.addr %s227, 208
          %s229 = scalar_lea.vmem [#allocation2], %s228
          %s230 = smul.u32 13, %s23
          %s231 = smul.u32 2, %s24
          %s232 = smul.addr %s230, 8
          %s233 = sadd.s32 %s231, %s232
          %s234 = smul.addr %s233, 8
          %s235 = scalar_lea.vmem %s0, %s234
          // Predicated region
          $region33: #{discriminator_forward.4} parent=31 // pred_check
            _
          $region34: #{discriminator_forward.4} parent=31 // pred_check_branch
            %237 = sbr.rel (0) target = $region36
          $region35: #{discriminator_forward.4} parent=31 // pred_region
            // Predicated region
            $region37: #{discriminator_forward.4} parent=35 // pred_check
              _
            $region38: #{discriminator_forward.4} parent=35 // pred_check_branch
              %239 = sbr.rel (0) target = $region40
            $region39: #{discriminator_forward.4} parent=35 // pred_region
              loop: start=0, step=1, limit=1
              $region41: #{discriminator_forward.4} parent=39 // loop_pre_header
                _
              $region42: #{discriminator_forward.4} parent=39 // loop_header
                %s241 = sphi 0, %s245
                %p242 = scmp.ge.s32.totalorder %s241, 1
                %s246 = sphi %s235, %s235
                %s247 = sphi %s229, %s229
              $region43: #{discriminator_forward.4} parent=39 // loop_header_branch
                %244 = sbr.rel (%p242) target = $region47
              $region44: #{discriminator_forward.4} parent=39 // loop_body
                %v248 = vld [vmem:[%s246] sm:$0xff]
                %249 = vst [vmem:[%s247] sm:$0xff] %v248
                %v250 = vld [vmem:[%s246 + $0x8] sm:$0xff]
                %251 = vst [vmem:[%s247 + $0x8] sm:$0xff] %v250
                %v252 = vld [vmem:[%s246 + $0x40] sm:$0xff]
                %253 = vst [vmem:[%s247 + $0x10] sm:$0xff] %v252
                %v254 = vld [vmem:[%s246 + $0x48] sm:$0xff]
                %255 = vst [vmem:[%s247 + $0x18] sm:$0xff] %v254
                %v256 = vld [vmem:[%s246 + $0x80] sm:$0xff]
                %257 = vst [vmem:[%s247 + $0x20] sm:$0xff] %v256
                %v258 = vld [vmem:[%s246 + $0x88] sm:$0xff]
                %259 = vst [vmem:[%s247 + $0x28] sm:$0xff] %v258
                %v260 = vld [vmem:[%s246 + $0xc0] sm:$0xff]
                %261 = vst [vmem:[%s247 + $0x30] sm:$0xff] %v260
                %v262 = vld [vmem:[%s246 + $0xc8] sm:$0xff]
                %263 = vst [vmem:[%s247 + $0x38] sm:$0xff] %v262
                %v264 = vld [vmem:[%s246 + $0x100] sm:$0xff]
                %265 = vst [vmem:[%s247 + $0x40] sm:$0xff] %v264
                %v266 = vld [vmem:[%s246 + $0x108] sm:$0xff]
                %267 = vst [vmem:[%s247 + $0x48] sm:$0xff] %v266
                %v268 = vld [vmem:[%s246 + $0x140] sm:$0xff]
                %269 = vst [vmem:[%s247 + $0x50] sm:$0xff] %v268
                %v270 = vld [vmem:[%s246 + $0x148] sm:$0xff]
                %271 = vst [vmem:[%s247 + $0x58] sm:$0xff] %v270
                %v272 = vld [vmem:[%s246 + $0x180] sm:$0xff]
                %273 = vst [vmem:[%s247 + $0x60] sm:$0xff] %v272
                %v274 = vld [vmem:[%s246 + $0x188] sm:$0xff]
                %275 = vst [vmem:[%s247 + $0x68] sm:$0xff] %v274
                %v276 = vld [vmem:[%s246 + $0x1c0] sm:$0xff]
                %277 = vst [vmem:[%s247 + $0x70] sm:$0xff] %v276
                %v278 = vld [vmem:[%s246 + $0x1c8] sm:$0xff]
                %279 = vst [vmem:[%s247 + $0x78] sm:$0xff] %v278
                %v280 = vld [vmem:[%s246 + $0x200] sm:$0xff]
                %281 = vst [vmem:[%s247 + $0x80] sm:$0xff] %v280
                %v282 = vld [vmem:[%s246 + $0x208] sm:$0xff]
                %283 = vst [vmem:[%s247 + $0x88] sm:$0xff] %v282
                %v284 = vld [vmem:[%s246 + $0x240] sm:$0xff]
                %285 = vst [vmem:[%s247 + $0x90] sm:$0xff] %v284
                %v286 = vld [vmem:[%s246 + $0x248] sm:$0xff]
                %287 = vst [vmem:[%s247 + $0x98] sm:$0xff] %v286
                %v288 = vld [vmem:[%s246 + $0x280] sm:$0xff]
                %289 = vst [vmem:[%s247 + $0xa0] sm:$0xff] %v288
                %v290 = vld [vmem:[%s246 + $0x288] sm:$0xff]
                %291 = vst [vmem:[%s247 + $0xa8] sm:$0xff] %v290
                %v292 = vld [vmem:[%s246 + $0x2c0] sm:$0xff]
                %293 = vst [vmem:[%s247 + $0xb0] sm:$0xff] %v292
                %v294 = vld [vmem:[%s246 + $0x2c8] sm:$0xff]
                %295 = vst [vmem:[%s247 + $0xb8] sm:$0xff] %v294
                %v296 = vld [vmem:[%s246 + $0x300] sm:$0xff]
                %297 = vst [vmem:[%s247 + $0xc0] sm:$0xff] %v296
                %v298 = vld [vmem:[%s246 + $0x308] sm:$0xff]
                %299 = vst [vmem:[%s247 + $0xc8] sm:$0xff] %v298
              $region45: #{discriminator_forward.4} parent=39 // loop_footer
                %s245 = sadd.s32 1, %s241
              $region46: #{discriminator_forward.4} parent=39 // loop_footer_branch
                %240 = sbr.rel target = $region42
              $region47: #{discriminator_forward.4} parent=39 // loop_exit
                _
            $region40: #{discriminator_forward.4} parent=35 // pred_fallthru
              _
            // Predicated region
            $region48: #{discriminator_forward.4} parent=35 // pred_check
              _
            $region49: #{discriminator_forward.4} parent=35 // pred_check_branch
              %301 = sbr.rel target = $region51
            $region50: #{discriminator_forward.4} parent=35 // pred_region
              _
            $region51: #{discriminator_forward.4} parent=35 // pred_fallthru
              _
          $region36: #{discriminator_forward.4} parent=31 // pred_fallthru
            _
          %302 = vnop
        $region32: #{discriminator_forward.4} parent=27 // pred_fallthru
          _
        // Predicated region
        $region52: #{discriminator_forward.4} parent=27 // pred_check
          %p303 = pneg %p76
        $region53: #{discriminator_forward.4} parent=27 // pred_check_branch
          %305 = sbr.rel (%p303) target = $region55
        $region54: #{discriminator_forward.4} parent=27 // pred_region
          %s306 = sand.u32 %s66, 1
          %s307 = scalar_lea.sflag [#allocation4], %s306
          %s308 = sand.u32 %s66, 1
          %s309 = smul.addr %s308, 256
          %s310 = scalar_lea.vmem [#allocation3], %s309
          %s311 = smul.u32 32, %s24
          %s313 = ssub.s32 4096, 4096
          %314 = vsyncadd %s307, %s313
          %s315 = smul.addr %s311, 128
          %s316 = scalar_lea.hbm %s1, %s315
          %s317 = sshll.u32 %s310, 4
          %s318 = int_to_ptr.vmem [resolvable:$true] %s317
          %323 = dma.hbm_to_vmem [thread:$0]  %s316, 4096, %s318, %s307, 128, 128, 8
        $region55: #{discriminator_forward.4} parent=27 // pred_fallthru
          _
      $region28: #{discriminator_forward.4} parent=5 // pred_fallthru
        _
      %p324 = scmp.le.s32.totalorder 1, %s16
      %p325 = scmp.lt.s32.totalorder %s16, 5
      %p326 = pnand %p324, %p325
      %p327 = pneg %p326
      // Predicated region
      $region56: #{discriminator_forward.4} parent=5 // pred_check
        _
      $region57: #{discriminator_forward.4} parent=5 // pred_check_branch
        %329 = sbr.rel (%p326) target = $region59
      $region58: #{discriminator_forward.4} parent=5 // pred_region
        %s330 = ssub.s32 %s16, 1
        %s331 = sand.u32 %s43, 1
        %s332 = sand.u32 %s43, 1
        %s333 = smul.addr %s332, 208
        %s334 = scalar_lea.vmem [#allocation2], %s333
        // Predicated region
        $region60: #{discriminator_forward.4} parent=58 // pred_check
          %p335 = pneg %p56
        $region61: #{discriminator_forward.4} parent=58 // pred_check_branch
          %337 = sbr.rel (%p335) target = $region63
        $region62: #{discriminator_forward.4} parent=58 // pred_region
          _
        $region63: #{discriminator_forward.4} parent=58 // pred_fallthru
          _
        %s338 = sand.u32 %s69, 1
        %s339 = scalar_lea.sflag [#allocation4], %s338
        %s340 = sand.u32 %s69, 1
        %s341 = smul.addr %s340, 256
        %s342 = scalar_lea.vmem [#allocation3], %s341
        // Predicated region
        $region64: #{discriminator_forward.4} parent=58 // pred_check
          %p343 = pneg %p82
        $region65: #{discriminator_forward.4} parent=58 // pred_check_branch
          %345 = sbr.rel (%p343) target = $region67
        $region66: #{discriminator_forward.4} parent=58 // pred_region
          %346 = dma.done %s339, 4096
        $region67: #{discriminator_forward.4} parent=58 // pred_fallthru
          _
        // Predicated region
        $region68: #{discriminator_forward.4} parent=58 // pred_check
          %p347 = pneg %p103
        $region69: #{discriminator_forward.4} parent=58 // pred_check_branch
          %349 = sbr.rel (%p347) target = $region71
        $region70: #{discriminator_forward.4} parent=58 // pred_region
          %350 = dma.done [#allocation6], 16
        $region71: #{discriminator_forward.4} parent=58 // pred_fallthru
          _
        // Predicated region
        $region72: #{discriminator_forward.4} parent=58 // pred_check
          %p351 = pneg %p124
        $region73: #{discriminator_forward.4} parent=58 // pred_check_branch
          %353 = sbr.rel (%p351) target = $region75
        $region74: #{discriminator_forward.4} parent=58 // pred_region
          %354 = dma.done [#allocation6], 16
        $region75: #{discriminator_forward.4} parent=58 // pred_fallthru
          _
        // Predicated region
        $region76: #{discriminator_forward.4} parent=58 // pred_check
          %p355 = pneg %p145
        $region77: #{discriminator_forward.4} parent=58 // pred_check_branch
          %357 = sbr.rel (%p355) target = $region79
        $region78: #{discriminator_forward.4} parent=58 // pred_region
          %358 = dma.done [#allocation9], 16
        $region79: #{discriminator_forward.4} parent=58 // pred_fallthru
          _
        %s359 = sand.u32 %s43, 1
        %s360 = sand.u32 %s43, 1
        %s361 = smul.addr %s360, 208
        %s362 = scalar_lea.vmem [#allocation2], %s361
        %p363 = pneg %p56
        %p364 = pneg %p53
        %s365 = sand.u32 %s69, 1
        %s366 = scalar_lea.sflag [#allocation4], %s365
        %s367 = sand.u32 %s69, 1
        %s368 = smul.addr %s367, 256
        %s369 = scalar_lea.vmem [#allocation3], %s368
        %p370 = pneg %p82
        %p371 = pneg %p79
        %p372 = pneg %p103
        %p373 = pneg %p100
        %p374 = pneg %p124
        %p375 = pneg %p121
        %p376 = pneg %p145
        %p377 = pneg %p142
        %p378 = pneg %p171
        %p379 = pneg %p168
        %s380 = smul.u32 13, %s25
        %p381 = scmp.lt.s32.totalorder %s380, 12
        %s382 = scalar_select %p381, %s380, 12
        %s383 = smul.addr %s382, 8
        %s384 = scalar_lea.vmem %s5, %s383
        %s385 = smul.u32 13, %s25
        %s386 = smul.u32 2, %s26
        %s387 = smul.u32 32, %s26
        %s388 = smul.u32 13, %s25
        %p389 = scmp.lt.s32.totalorder %s388, 12
        %s390 = scalar_select %p389, %s388, 12
        %s391 = smul.addr %s390, 8
        %s392 = scalar_lea.vmem %s5, %s391
        %s393 = smul.u32 13, %s25
        %v394 = vld [vmem:[%s334] sm:$0xff]
        %v395 = vld [vmem:[%s334 + $0x8] sm:$0xff]
        %v396 = vld [vmem:[%s334 + $0x10] sm:$0xff]
        %v397 = vld [vmem:[%s334 + $0x18] sm:$0xff]
        %v398 = vld [vmem:[%s334 + $0x20] sm:$0xff]
        %v399 = vld [vmem:[%s334 + $0x28] sm:$0xff]
        %v400 = vld [vmem:[%s334 + $0x30] sm:$0xff]
        %v401 = vld [vmem:[%s334 + $0x38] sm:$0xff]
        %v402 = vld [vmem:[%s334 + $0x40] sm:$0xff]
        %v403 = vld [vmem:[%s334 + $0x48] sm:$0xff]
        %v404 = vld [vmem:[%s334 + $0x50] sm:$0xff]
        %v405 = vld [vmem:[%s334 + $0x58] sm:$0xff]
        %v406 = vld [vmem:[%s334 + $0x60] sm:$0xff]
        %v407 = vld [vmem:[%s334 + $0x68] sm:$0xff]
        %v408 = vld [vmem:[%s334 + $0x70] sm:$0xff]
        %v409 = vld [vmem:[%s334 + $0x78] sm:$0xff]
        %v410 = vld [vmem:[%s334 + $0x80] sm:$0xff]
        %v411 = vld [vmem:[%s334 + $0x88] sm:$0xff]
        %v412 = vld [vmem:[%s334 + $0x90] sm:$0xff]
        %v413 = vld [vmem:[%s334 + $0x98] sm:$0xff]
        %v414 = vld [vmem:[%s334 + $0xa0] sm:$0xff]
        %v415 = vld [vmem:[%s334 + $0xa8] sm:$0xff]
        %v416 = vld [vmem:[%s334 + $0xb0] sm:$0xff]
        %v417 = vld [vmem:[%s334 + $0xb8] sm:$0xff]
        %v418 = vld [vmem:[%s334 + $0xc0] sm:$0x3]
        %v419 = vld [vmem:[%s334 + $0xc8] sm:$0x3]
        %v420 = vld [vmem:[%s342] sm:$0xff]
        %v421 = vld [vmem:[%s342 + $0x8] sm:$0xff]
        %v422 = vld [vmem:[%s342 + $0x10] sm:$0xff]
        %v423 = vld [vmem:[%s342 + $0x18] sm:$0xff]
        %v424 = vld [vmem:[%s342 + $0x20] sm:$0xff]
        %v425 = vld [vmem:[%s342 + $0x28] sm:$0xff]
        %v426 = vld [vmem:[%s342 + $0x30] sm:$0xff]
        %v427 = vld [vmem:[%s342 + $0x38] sm:$0xff]
        %v428 = vld [vmem:[%s342 + $0x40] sm:$0xff]
        %v429 = vld [vmem:[%s342 + $0x48] sm:$0xff]
        %v430 = vld [vmem:[%s342 + $0x50] sm:$0xff]
        %v431 = vld [vmem:[%s342 + $0x58] sm:$0xff]
        %v432 = vld [vmem:[%s342 + $0x60] sm:$0xff]
        %v433 = vld [vmem:[%s342 + $0x68] sm:$0xff]
        %v434 = vld [vmem:[%s342 + $0x70] sm:$0xff]
        %v435 = vld [vmem:[%s342 + $0x78] sm:$0xff]
        %v436 = vld [vmem:[%s342 + $0x80] sm:$0xff]
        %v437 = vld [vmem:[%s342 + $0x88] sm:$0xff]
        %v438 = vld [vmem:[%s342 + $0x90] sm:$0xff]
        %v439 = vld [vmem:[%s342 + $0x98] sm:$0xff]
        %v440 = vld [vmem:[%s342 + $0xa0] sm:$0xff]
        %v441 = vld [vmem:[%s342 + $0xa8] sm:$0xff]
        %v442 = vld [vmem:[%s342 + $0xb0] sm:$0xff]
        %v443 = vld [vmem:[%s342 + $0xb8] sm:$0xff]
        %v444 = vld [vmem:[%s342 + $0xc0] sm:$0xff]
        %v445 = vld [vmem:[%s342 + $0xc8] sm:$0xff]
        %v446 = vld [vmem:[%s342 + $0xd0] sm:$0xff]
        %v447 = vld [vmem:[%s342 + $0xd8] sm:$0xff]
        %v448 = vld [vmem:[%s342 + $0xe0] sm:$0xff]
        %v449 = vld [vmem:[%s342 + $0xe8] sm:$0xff]
        %v450 = vld [vmem:[%s342 + $0xf0] sm:$0xff]
        %v451 = vld [vmem:[%s342 + $0xf8] sm:$0xff]
        %452 = vmatprep.subr.mxu0 0.0
        %453 = vmatpush1.msra.mxu0 %v420
        %454 = vmatprep.subr.mxu0 0.0
        %455 = vmatpush1.msra.mxu0 %v421
        %456 = vmatprep.subr.mxu0 0.0
        %457 = vmatpush1.msra.mxu0 %v422
        %458 = vmatprep.subr.mxu0 0.0
        %459 = vmatpush1.msra.mxu0 %v423
        %460 = vmatprep.subr.mxu0 0.0
        %461 = vmatpush1.msra.mxu0 %v424
        %462 = vmatprep.subr.mxu0 0.0
        %463 = vmatpush1.msra.mxu0 %v425
        %464 = vmatprep.subr.mxu0 0.0
        %465 = vmatpush1.msra.mxu0 %v426
        %466 = vmatprep.subr.mxu0 0.0
        %467 = vmatpush1.msra.mxu0 %v427
        %468 = vmatprep.subr.mxu0 0.0
        %469 = vmatpush1.msra.mxu0 %v428
        %470 = vmatprep.subr.mxu0 0.0
        %471 = vmatpush1.msra.mxu0 %v429
        %472 = vmatprep.subr.mxu0 0.0
        %473 = vmatpush1.msra.mxu0 %v430
        %474 = vmatprep.subr.mxu0 0.0
        %475 = vmatpush1.msra.mxu0 %v431
        %476 = vmatprep.subr.mxu0 0.0
        %477 = vmatpush1.msra.mxu0 %v432
        %478 = vmatprep.subr.mxu0 0.0
        %479 = vmatpush1.msra.mxu0 %v433
        %480 = vmatprep.subr.mxu0 0.0
        %481 = vmatpush1.msra.mxu0 %v434
        %482 = vmatprep.subr.mxu0 0.0
        %483 = vmatpush1.msra.mxu0 %v435
        %484 = vmatprep.subr.mxu0 0.0
        %485 = vmatpush1.msra.mxu0 %v436
        %486 = vmatprep.subr.mxu0 0.0
        %487 = vmatpush1.msra.mxu0 %v437
        %488 = vmatprep.subr.mxu0 0.0
        %489 = vmatpush1.msra.mxu0 %v438
        %490 = vmatprep.subr.mxu0 0.0
        %491 = vmatpush1.msra.mxu0 %v439
        %492 = vmatprep.subr.mxu0 0.0
        %493 = vmatpush1.msra.mxu0 %v440
        %494 = vmatprep.subr.mxu0 0.0
        %495 = vmatpush1.msra.mxu0 %v441
        %496 = vmatprep.subr.mxu0 0.0
        %497 = vmatpush1.msra.mxu0 %v442
        %498 = vmatprep.subr.mxu0 0.0
        %499 = vmatpush1.msra.mxu0 %v443
        %500 = vmatprep.subr.mxu0 0.0
        %501 = vmatpush1.msra.mxu0 %v444
        %502 = vmatprep.subr.mxu0 0.0
        %503 = vmatpush1.msra.mxu0 %v445
        %504 = vmatprep.subr.mxu0 0.0
        %505 = vmatpush1.msra.mxu0 %v446
        %506 = vmatprep.subr.mxu0 0.0
        %507 = vmatpush1.msra.mxu0 %v447
        %508 = vmatprep.subr.mxu0 0.0
        %509 = vmatpush1.msra.mxu0 %v448
        %510 = vmatprep.subr.mxu0 0.0
        %511 = vmatpush1.msra.mxu0 %v449
        %512 = vmatprep.subr.mxu0 0.0
        %513 = vmatpush1.msra.mxu0 %v450
        %514 = vmatprep.subr.mxu0 0.0
        %515 = vmatpush1.msra.mxu0 %v451
        %516 = vmatprep.mubr.f32.mxu0 %v395
        %517 = vmatmul.mubr.f32.gmra.mrb[0].mxu0 %v394
        %v518 = vpop.f32.mrb[0].mxu0
        %v519 = vadd.f32 0.0, %v518
        %v520 = vpop.f32.mrb[0].mxu0
        %521 = vmatprep.mubr.f32.mxu0 %v397
        %522 = vmatmul.mubr.f32.gmra.mrb[0].mxu0 %v396
        %v523 = vpop.f32.mrb[0].mxu0
        %v524 = vadd.f32 0.0, %v523
        %v525 = vpop.f32.mrb[0].mxu0
        %526 = vmatprep.mubr.f32.mxu0 %v399
        %527 = vmatmul.mubr.f32.gmra.mrb[0].mxu0 %v398
        %v528 = vpop.f32.mrb[0].mxu0
        %v529 = vadd.f32 0.0, %v528
        %v530 = vpop.f32.mrb[0].mxu0
        %531 = vmatprep.mubr.f32.mxu0 %v401
        %532 = vmatmul.mubr.f32.gmra.mrb[0].mxu0 %v400
        %v533 = vpop.f32.mrb[0].mxu0
        %v534 = vadd.f32 0.0, %v533
        %v535 = vpop.f32.mrb[0].mxu0
        %536 = vmatprep.mubr.f32.mxu0 %v403
        %537 = vmatmul.mubr.f32.gmra.mrb[0].mxu0 %v402
        %v538 = vpop.f32.mrb[0].mxu0
        %v539 = vadd.f32 0.0, %v538
        %v540 = vpop.f32.mrb[0].mxu0
        %541 = vmatprep.mubr.f32.mxu0 %v405
        %542 = vmatmul.mubr.f32.gmra.mrb[0].mxu0 %v404
        %v543 = vpop.f32.mrb[0].mxu0
        %v544 = vadd.f32 0.0, %v543
        %v545 = vpop.f32.mrb[0].mxu0
        %546 = vmatprep.mubr.f32.mxu0 %v407
        %547 = vmatmul.mubr.f32.gmra.mrb[0].mxu0 %v406
        %v548 = vpop.f32.mrb[0].mxu0
        %v549 = vadd.f32 0.0, %v548
        %v550 = vpop.f32.mrb[0].mxu0
        %551 = vmatprep.mubr.f32.mxu0 %v409
        %552 = vmatmul.mubr.f32.gmra.mrb[0].mxu0 %v408
        %v553 = vpop.f32.mrb[0].mxu0
        %v554 = vadd.f32 0.0, %v553
        %v555 = vpop.f32.mrb[0].mxu0
        %556 = vmatprep.mubr.f32.mxu0 %v411
        %557 = vmatmul.mubr.f32.gmra.mrb[0].mxu0 %v410
        %v558 = vpop.f32.mrb[0].mxu0
        %v559 = vadd.f32 0.0, %v558
        %v560 = vpop.f32.mrb[0].mxu0
        %561 = vmatprep.mubr.f32.mxu0 %v413
        %562 = vmatmul.mubr.f32.gmra.mrb[0].mxu0 %v412
        %v563 = vpop.f32.mrb[0].mxu0
        %v564 = vadd.f32 0.0, %v563
        %v565 = vpop.f32.mrb[0].mxu0
        %566 = vmatprep.mubr.f32.mxu0 %v415
        %567 = vmatmul.mubr.f32.gmra.mrb[0].mxu0 %v414
        %v568 = vpop.f32.mrb[0].mxu0
        %v569 = vadd.f32 0.0, %v568
        %v570 = vpop.f32.mrb[0].mxu0
        %571 = vmatprep.mubr.f32.mxu0 %v417
        %572 = vmatmul.mubr.f32.gmra.mrb[0].mxu0 %v416
        %v573 = vpop.f32.mrb[0].mxu0
        %v574 = vadd.f32 0.0, %v573
        %v575 = vpop.f32.mrb[0].mxu0
        %576 = vmatprep.mubr.f32.mxu0 %v419
        %577 = vmatmul.mubr.f32.gmra.mrb[0].mxu0 %v418
        %v578 = vpop.f32.mrb[0].mxu0
        %v579 = vadd.f32 0.0, %v578
        %v580 = vpop.f32.mrb[0].mxu0
        %581 = vdwg.mxu0
        %p582 = scmp.eq.s32.totalorder %s26, 0
        // Predicated region
        $region80: #{discriminator_forward.4} parent=58 // pred_check
          %p583 = pneg %p582
        $region81: #{discriminator_forward.4} parent=58 // pred_check_branch
          %585 = sbr.rel (%p583) target = $region83
        $region82: #{discriminator_forward.4} parent=58 // pred_region
          %586 = vst [vmem:[%s392] sm:$0xff] %v519
          %587 = vst [vmem:[%s392 + $0x8] sm:$0xff] %v524
          %588 = vst [vmem:[%s392 + $0x10] sm:$0xff] %v529
          %589 = vst [vmem:[%s392 + $0x18] sm:$0xff] %v534
          %590 = vst [vmem:[%s392 + $0x20] sm:$0xff] %v539
          %591 = vst [vmem:[%s392 + $0x28] sm:$0xff] %v544
          %592 = vst [vmem:[%s392 + $0x30] sm:$0xff] %v549
          %593 = vst [vmem:[%s392 + $0x38] sm:$0xff] %v554
          %594 = vst [vmem:[%s392 + $0x40] sm:$0xff] %v559
          %595 = vst [vmem:[%s392 + $0x48] sm:$0xff] %v564
          %596 = vst [vmem:[%s392 + $0x50] sm:$0xff] %v569
          %597 = vst [vmem:[%s392 + $0x58] sm:$0xff] %v574
          %598 = vst [vmem:[%s392 + $0x60] sm:$0x3] %v579
        $region83: #{discriminator_forward.4} parent=58 // pred_fallthru
          _
        %p599 = scmp.gt.s32.totalorder %s26, 0
        // Predicated region
        $region84: #{discriminator_forward.4} parent=58 // pred_check
          %p600 = pneg %p599
        $region85: #{discriminator_forward.4} parent=58 // pred_check_branch
          %602 = sbr.rel (%p600) target = $region87
        $region86: #{discriminator_forward.4} parent=58 // pred_region
          %v603 = vld [vmem:[%s392] sm:$0xff]
          %v604 = vld [vmem:[%s392 + $0x8] sm:$0xff]
          %v605 = vld [vmem:[%s392 + $0x10] sm:$0xff]
          %v606 = vld [vmem:[%s392 + $0x18] sm:$0xff]
          %v607 = vld [vmem:[%s392 + $0x20] sm:$0xff]
          %v608 = vld [vmem:[%s392 + $0x28] sm:$0xff]
          %v609 = vld [vmem:[%s392 + $0x30] sm:$0xff]
          %v610 = vld [vmem:[%s392 + $0x38] sm:$0xff]
          %v611 = vld [vmem:[%s392 + $0x40] sm:$0xff]
          %v612 = vld [vmem:[%s392 + $0x48] sm:$0xff]
          %v613 = vld [vmem:[%s392 + $0x50] sm:$0xff]
          %v614 = vld [vmem:[%s392 + $0x58] sm:$0xff]
          %v615 = vld [vmem:[%s392 + $0x60] sm:$0x3]
          %v616 = vadd.f32 %v603, %v519
          %v617 = vadd.f32 %v604, %v524
          %v618 = vadd.f32 %v605, %v529
          %v619 = vadd.f32 %v606, %v534
          %v620 = vadd.f32 %v607, %v539
          %v621 = vadd.f32 %v608, %v544
          %v622 = vadd.f32 %v609, %v549
          %v623 = vadd.f32 %v610, %v554
          %v624 = vadd.f32 %v611, %v559
          %v625 = vadd.f32 %v612, %v564
          %v626 = vadd.f32 %v613, %v569
          %v627 = vadd.f32 %v614, %v574
          %v628 = vadd.f32 %v615, %v579
          %629 = vst [vmem:[%s392] sm:$0xff] %v616
          %630 = vst [vmem:[%s392 + $0x8] sm:$0xff] %v617
          %631 = vst [vmem:[%s392 + $0x10] sm:$0xff] %v618
          %632 = vst [vmem:[%s392 + $0x18] sm:$0xff] %v619
          %633 = vst [vmem:[%s392 + $0x20] sm:$0xff] %v620
          %634 = vst [vmem:[%s392 + $0x28] sm:$0xff] %v621
          %635 = vst [vmem:[%s392 + $0x30] sm:$0xff] %v622
          %636 = vst [vmem:[%s392 + $0x38] sm:$0xff] %v623
          %637 = vst [vmem:[%s392 + $0x40] sm:$0xff] %v624
          %638 = vst [vmem:[%s392 + $0x48] sm:$0xff] %v625
          %639 = vst [vmem:[%s392 + $0x50] sm:$0xff] %v626
          %640 = vst [vmem:[%s392 + $0x58] sm:$0xff] %v627
          %641 = vst [vmem:[%s392 + $0x60] sm:$0x3] %v628
        $region87: #{discriminator_forward.4} parent=58 // pred_fallthru
          _
        %p642 = scmp.eq.s32.totalorder %s26, 3
        // Predicated region
        $region88: #{discriminator_forward.4} parent=58 // pred_check
          %p643 = pneg %p642
        $region89: #{discriminator_forward.4} parent=58 // pred_check_branch
          %645 = sbr.rel (%p643) target = $region91
        $region90: #{discriminator_forward.4} parent=58 // pred_region
          %v646 = vld [vmem:[%s392] sm:$0xff]
          %v647 = vld [vmem:[%s392 + $0x8] sm:$0xff]
          %v648 = vld [vmem:[%s392 + $0x10] sm:$0xff]
          %v649 = vld [vmem:[%s392 + $0x18] sm:$0xff]
          %v650 = vld [vmem:[%s392 + $0x20] sm:$0xff]
          %v651 = vld [vmem:[%s392 + $0x28] sm:$0xff]
          %v652 = vld [vmem:[%s392 + $0x30] sm:$0xff]
          %v653 = vld [vmem:[%s392 + $0x38] sm:$0xff]
          %v654 = vld [vmem:[%s392 + $0x40] sm:$0xff]
          %v655 = vld [vmem:[%s392 + $0x48] sm:$0xff]
          %v656 = vld [vmem:[%s392 + $0x50] sm:$0xff]
          %v657 = vld [vmem:[%s392 + $0x58] sm:$0xff]
          %v658 = vld [vmem:[%s392 + $0x60] sm:$0x3]
          %v659 = vld [vmem:[#allocation5] sm:$0x1]
          %v661 = vlaneseq
          %v662 = vshrl.u32 %v661, 7
          %v663 = vsub.s32 0, %v662
          %v664 = vrot.slane %v659, %v663
          %v666 = vadd.f32 %v646, %v664
          %v667 = vadd.f32 %v647, %v664
          %v668 = vadd.f32 %v648, %v664
          %v669 = vadd.f32 %v649, %v664
          %v670 = vadd.f32 %v650, %v664
          %v671 = vadd.f32 %v651, %v664
          %v672 = vadd.f32 %v652, %v664
          %v673 = vadd.f32 %v653, %v664
          %v674 = vadd.f32 %v654, %v664
          %v675 = vadd.f32 %v655, %v664
          %v676 = vadd.f32 %v656, %v664
          %v677 = vadd.f32 %v657, %v664
          %v678 = vadd.f32 %v658, %v664
          %v679 = vadd.f32 %v666, %v667
          %v680 = vadd.f32 %v679, %v668
          %v681 = vadd.f32 %v680, %v669
          %v682 = vadd.f32 %v681, %v670
          %v683 = vadd.f32 %v682, %v671
          %v684 = vadd.f32 %v683, %v672
          %v685 = vadd.f32 %v684, %v673
          %v686 = vadd.f32 %v685, %v674
          %v687 = vadd.f32 %v686, %v675
          %v688 = vadd.f32 %v687, %v676
          %v689 = vadd.f32 %v688, %v677
          %vm690 = vcmask 1041408
          %v691 = vsel %vm690, %v678, 0.0
          %v692 = vadd.f32 %v689, %v691
          %v693 = vrot.slane %v692, 4
          %v694 = vadd.f32 %v692, %v693
          %v695 = vrot.slane %v694, 2
          %v696 = vadd.f32 %v694, %v695
          %v697 = vrot.slane %v696, 1
          %v698 = vadd.f32 %v696, %v697
          %v699 = vrcp.pop 98.0
          %v700 = vmul.f32 %v698, %v699
          %v701 = vsub.f32 %v666, %v700
          %v702 = vsub.f32 %v667, %v700
          %v703 = vsub.f32 %v668, %v700
          %v704 = vsub.f32 %v669, %v700
          %v705 = vsub.f32 %v670, %v700
          %v706 = vsub.f32 %v671, %v700
          %v707 = vsub.f32 %v672, %v700
          %v708 = vsub.f32 %v673, %v700
          %v709 = vsub.f32 %v674, %v700
          %v710 = vsub.f32 %v675, %v700
          %v711 = vsub.f32 %v676, %v700
          %v712 = vsub.f32 %v677, %v700
          %v713 = vsub.f32 %v678, %v700
          %v714 = vmul.f32 %v701, %v701
          %v715 = vmul.f32 %v702, %v702
          %v716 = vmul.f32 %v703, %v703
          %v717 = vmul.f32 %v704, %v704
          %v718 = vmul.f32 %v705, %v705
          %v719 = vmul.f32 %v706, %v706
          %v720 = vmul.f32 %v707, %v707
          %v721 = vmul.f32 %v708, %v708
          %v722 = vmul.f32 %v709, %v709
          %v723 = vmul.f32 %v710, %v710
          %v724 = vmul.f32 %v711, %v711
          %v725 = vmul.f32 %v712, %v712
          %v726 = vmul.f32 %v713, %v713
          %v727 = vadd.f32 %v714, %v715
          %v728 = vadd.f32 %v727, %v716
          %v729 = vadd.f32 %v728, %v717
          %v730 = vadd.f32 %v729, %v718
          %v731 = vadd.f32 %v730, %v719
          %v732 = vadd.f32 %v731, %v720
          %v733 = vadd.f32 %v732, %v721
          %v734 = vadd.f32 %v733, %v722
          %v735 = vadd.f32 %v734, %v723
          %v736 = vadd.f32 %v735, %v724
          %v737 = vadd.f32 %v736, %v725
          %v738 = vsel %vm690, %v726, 0.0
          %v739 = vadd.f32 %v737, %v738
          %v740 = vrot.slane %v739, 4
          %v741 = vadd.f32 %v739, %v740
          %v742 = vrot.slane %v741, 2
          %v743 = vadd.f32 %v741, %v742
          %v744 = vrot.slane %v743, 1
          %v745 = vadd.f32 %v743, %v744
          %v746 = vmul.f32 %v745, %v699
          %v747 = vadd.f32 %v746, 1e-05
          %v748 = vrsqrt.pop %v747
          %v749 = vmul.f32 %v701, %v748
          %v750 = vmul.f32 %v702, %v748
          %v751 = vmul.f32 %v703, %v748
          %v752 = vmul.f32 %v704, %v748
          %v753 = vmul.f32 %v705, %v748
          %v754 = vmul.f32 %v706, %v748
          %v755 = vmul.f32 %v707, %v748
          %v756 = vmul.f32 %v708, %v748
          %v757 = vmul.f32 %v709, %v748
          %v758 = vmul.f32 %v710, %v748
          %v759 = vmul.f32 %v711, %v748
          %v760 = vmul.f32 %v712, %v748
          %v761 = vmul.f32 %v713, %v748
          %v762 = vld [vmem:[#allocation7] sm:$0x1]
          %v764 = vlaneseq
          %v765 = vshrl.u32 %v764, 7
          %v766 = vsub.s32 0, %v765
          %v767 = vrot.slane %v762, %v766
          %v769 = vmul.f32 %v749, %v767
          %v770 = vmul.f32 %v750, %v767
          %v771 = vmul.f32 %v751, %v767
          %v772 = vmul.f32 %v752, %v767
          %v773 = vmul.f32 %v753, %v767
          %v774 = vmul.f32 %v754, %v767
          %v775 = vmul.f32 %v755, %v767
          %v776 = vmul.f32 %v756, %v767
          %v777 = vmul.f32 %v757, %v767
          %v778 = vmul.f32 %v758, %v767
          %v779 = vmul.f32 %v759, %v767
          %v780 = vmul.f32 %v760, %v767
          %v781 = vmul.f32 %v761, %v767
          %v782 = vld [vmem:[#allocation8] sm:$0x1]
          %v784 = vlaneseq
          %v785 = vshrl.u32 %v784, 7
          %v786 = vsub.s32 0, %v785
          %v787 = vrot.slane %v782, %v786
          %v789 = vadd.f32 %v769, %v787
          %v790 = vadd.f32 %v770, %v787
          %v791 = vadd.f32 %v771, %v787
          %v792 = vadd.f32 %v772, %v787
          %v793 = vadd.f32 %v773, %v787
          %v794 = vadd.f32 %v774, %v787
          %v795 = vadd.f32 %v775, %v787
          %v796 = vadd.f32 %v776, %v787
          %v797 = vadd.f32 %v777, %v787
          %v798 = vadd.f32 %v778, %v787
          %v799 = vadd.f32 %v779, %v787
          %v800 = vadd.f32 %v780, %v787
          %v801 = vadd.f32 %v781, %v787
          %vm802 = vcmp.gt.f32.partialorder %v789, 0.0
          %vm803 = vcmp.gt.f32.partialorder %v790, 0.0
          %vm804 = vcmp.gt.f32.partialorder %v791, 0.0
          %vm805 = vcmp.gt.f32.partialorder %v792, 0.0
          %vm806 = vcmp.gt.f32.partialorder %v793, 0.0
          %vm807 = vcmp.gt.f32.partialorder %v794, 0.0
          %vm808 = vcmp.gt.f32.partialorder %v795, 0.0
          %vm809 = vcmp.gt.f32.partialorder %v796, 0.0
          %vm810 = vcmp.gt.f32.partialorder %v797, 0.0
          %vm811 = vcmp.gt.f32.partialorder %v798, 0.0
          %vm812 = vcmp.gt.f32.partialorder %v799, 0.0
          %vm813 = vcmp.gt.f32.partialorder %v800, 0.0
          %vm814 = vcmp.gt.f32.partialorder %v801, 0.0
          %v815 = vmul.f32 %v789, 0.2
          %v816 = vmul.f32 %v790, 0.2
          %v817 = vmul.f32 %v791, 0.2
          %v818 = vmul.f32 %v792, 0.2
          %v819 = vmul.f32 %v793, 0.2
          %v820 = vmul.f32 %v794, 0.2
          %v821 = vmul.f32 %v795, 0.2
          %v822 = vmul.f32 %v796, 0.2
          %v823 = vmul.f32 %v797, 0.2
          %v824 = vmul.f32 %v798, 0.2
          %v825 = vmul.f32 %v799, 0.2
          %v826 = vmul.f32 %v800, 0.2
          %v827 = vmul.f32 %v801, 0.2
          %v828 = vsel %vm802, %v789, %v815
          %v829 = vsel %vm803, %v790, %v816
          %v830 = vsel %vm804, %v791, %v817
          %v831 = vsel %vm805, %v792, %v818
          %v832 = vsel %vm806, %v793, %v819
          %v833 = vsel %vm807, %v794, %v820
          %v834 = vsel %vm808, %v795, %v821
          %v835 = vsel %vm809, %v796, %v822
          %v836 = vsel %vm810, %v797, %v823
          %v837 = vsel %vm811, %v798, %v824
          %v838 = vsel %vm812, %v799, %v825
          %v839 = vsel %vm813, %v800, %v826
          %v840 = vsel %vm814, %v801, %v827
          %841 = vst [vmem:[%s392] sm:$0xff] %v828
          %842 = vst [vmem:[%s392 + $0x8] sm:$0xff] %v829
          %843 = vst [vmem:[%s392 + $0x10] sm:$0xff] %v830
          %844 = vst [vmem:[%s392 + $0x18] sm:$0xff] %v831
          %845 = vst [vmem:[%s392 + $0x20] sm:$0xff] %v832
          %846 = vst [vmem:[%s392 + $0x28] sm:$0xff] %v833
          %847 = vst [vmem:[%s392 + $0x30] sm:$0xff] %v834
          %848 = vst [vmem:[%s392 + $0x38] sm:$0xff] %v835
          %849 = vst [vmem:[%s392 + $0x40] sm:$0xff] %v836
          %850 = vst [vmem:[%s392 + $0x48] sm:$0xff] %v837
          %851 = vst [vmem:[%s392 + $0x50] sm:$0xff] %v838
          %852 = vst [vmem:[%s392 + $0x58] sm:$0xff] %v839
          %853 = vst [vmem:[%s392 + $0x60] sm:$0x3] %v840
        $region91: #{discriminator_forward.4} parent=58 // pred_fallthru
          _
        %s854 = smul.u32 13, %s25
        %p855 = scmp.lt.s32.totalorder %s854, 12
        %s856 = scalar_select %p855, %s854, 12
        %s857 = smul.addr %s856, 8
        %s858 = scalar_lea.vmem %s5, %s857
        // Predicated region
        $region92: #{discriminator_forward.4} parent=58 // pred_check
          %p859 = pneg %p168
        $region93: #{discriminator_forward.4} parent=58 // pred_check_branch
          %861 = sbr.rel (%p859) target = $region95
        $region94: #{discriminator_forward.4} parent=58 // pred_region
          %s862 = smul.u32 13, %s25
        $region95: #{discriminator_forward.4} parent=58 // pred_fallthru
          _
        // Predicated region
        $region96: #{discriminator_forward.4} parent=58 // pred_check
          %p863 = pneg %p168
        $region97: #{discriminator_forward.4} parent=58 // pred_check_branch
          %865 = sbr.rel (%p863) target = $region99
        $region98: #{discriminator_forward.4} parent=58 // pred_region
          %s866 = smul.u32 13, %s25
          %p867 = scmp.lt.s32.totalorder %s866, 12
          %s868 = scalar_select %p867, %s866, 12
          %s869 = smul.addr %s868, 8
          %s870 = scalar_lea.vmem %s5, %s869
        $region99: #{discriminator_forward.4} parent=58 // pred_fallthru
          _
      $region59: #{discriminator_forward.4} parent=5 // pred_fallthru
        _
      %p871 = scmp.le.s32.totalorder 2, %s16
      // Predicated region
      $region100: #{discriminator_forward.4} parent=5 // pred_check
        %p872 = pneg %p871
      $region101: #{discriminator_forward.4} parent=5 // pred_check_branch
        %874 = sbr.rel (%p872) target = $region103
      $region102: #{discriminator_forward.4} parent=5 // pred_region
        %s875 = ssub.s32 %s16, 2
      $region103: #{discriminator_forward.4} parent=5 // pred_fallthru
        _
    $region6: #{discriminator_forward.4} parent=1 // loop_footer
      %s20 = sadd.s32 1, %s16
    $region7: #{discriminator_forward.4} parent=1 // loop_footer_branch
      %15 = sbr.rel target = $region3
    $region8: #{discriminator_forward.4} parent=1 // loop_exit
      _
    %876 = vsyncpa [#allocation4], 1
    %s877 = scalar_lea.sflag [#allocation4], 1
    %878 = vsyncpa %s877, 1
    %879 = vsyncpa [#allocation6], 1
    %880 = vsyncpa [#allocation9], 1

// kernel: discriminator_forward.5
$region0: #{discriminator_forward.5}
  #allocation0 [shape = 'u32[]', space=smem, size = 0x4, offset = 0x4, fixed_abs, tag = 'smem constant byte address 0x4 - core index']
  #allocation1 [shape = 'u32[144,128]{1,0:T(1,128)}', space=vmem, size = 0x12000, scoped, tag = 'internal scratch']
  #allocation2 [shape = 'f32[2,1024]{1,0:T(2,128)}', space=vmem, size = 0x2000, scoped, tag = 'scratch operand']
  #allocation3 [shape = 'f32[1,1]{1,0:T(1,128)S(1)}', space=vmem, size = 0x200, scoped, tag = 'scoped memory for discriminator_forward.5']
  %s0 = inlined_call_operand.vmem [shape: f32[2,6272], index: 0, kind: input, shape index: {}]
  %s1 = inlined_call_operand.hbm [shape: f32[6272,1024], index: 1, kind: input, shape index: {}]
  %s2 = inlined_call_operand.hbm [shape: f32[1,1024], index: 2, kind: input, shape index: {}]
  %s3 = inlined_call_operand.hbm [shape: f32[1,1024], index: 3, kind: input, shape index: {}]
  %s4 = inlined_call_operand.hbm [shape: f32[1,1024], index: 4, kind: input, shape index: {}]
  %s5 = inlined_call_operand.hbm [shape: f32[1,1024], index: 5, kind: input, shape index: {}]
  %s6 = inlined_call_operand.<no memory space> [shape: f32[1,1], index: 6, kind: input, shape index: {}]
  %s7 = inlined_call_operand.vmem [shape: f32[2,1], index: 7, kind: output, shape index: {}]
  %s8 = sld [smem:[#allocation0]]
  $region93: #{discriminator_forward.5} parent=0
    _
  %s10 = ssub.s32 1, %s8
  %s11 = scalar_select 0, %s10, %s8
  %v12 = vstv %s6
  %13 = vst [vmem:[#allocation3] sm:$0x1] %v12
  $region1: #{discriminator_forward.5} parent=0
    #allocation4 [shape = 'u8[7340032]{0}', space=vmem, size = 0x700000, scoped, tag = 'input window, operand 1']
    #allocation5 [shape = 's32[2]{0}', space=sflag, size = 0x8, scoped, tag = 'scoped memory for discriminator_forward.5']
    #allocation6 [shape = 'u8[4096]{0}', space=vmem, size = 0x1000, scoped, tag = 'input window, operand 2, single buffered']
    #allocation7 [shape = 's32[1]{0}', space=sflag, size = 0x4, scoped, tag = 'scoped memory for discriminator_forward.5']
    #allocation8 [shape = 'u8[4096]{0}', space=vmem, size = 0x1000, scoped, tag = 'input window, operand 3, single buffered']
    #allocation9 [shape = 'u8[4096]{0}', space=vmem, size = 0x1000, scoped, tag = 'input window, operand 4, single buffered']
    #allocation10 [shape = 's32[1]{0}', space=sflag, size = 0x4, scoped, tag = 'scoped memory for discriminator_forward.5']
    #allocation11 [shape = 'u8[4096]{0}', space=vmem, size = 0x1000, scoped, tag = 'input window, operand 5, single buffered']
    %14 = vsyncpa [#allocation5], 0
    %s15 = scalar_lea.sflag [#allocation5], 1
    %16 = vsyncpa %s15, 0
    %17 = vsyncpa [#allocation7], 0
    %18 = vsyncpa [#allocation10], 0
    loop: start=0, step=1, limit=9
    $region2: #{discriminator_forward.5} parent=1 // loop_pre_header
      _
    $region3: #{discriminator_forward.5} parent=1 // loop_header
      %s20 = sphi 0, %s24
      %p21 = scmp.ge.s32.totalorder %s20, 9
      %s30 = sphi 0, %s32
      %s33 = sphi 0, %s30
      %s34 = sphi 0, %s33
      %s50 = sphi 0, %s34
      %s56 = sphi 0, %s58
      %s59 = sphi 0, %s56
      %s60 = sphi 0, %s59
      %s76 = sphi 0, %s60
      %s80 = sphi 0, %s80
      %s82 = sphi 0, %s80
      %s83 = sphi 0, %s82
      %s97 = sphi 0, %s83
      %s101 = sphi 0, %s101
      %s103 = sphi 0, %s101
      %s104 = sphi 0, %s103
      %s118 = sphi 0, %s104
      %s122 = sphi 0, %s122
      %s124 = sphi 0, %s122
      %s125 = sphi 0, %s124
      %s139 = sphi 0, %s125
      %s143 = sphi 0, %s143
      %s145 = sphi 0, %s143
      %s146 = sphi 0, %s145
      %s160 = sphi 0, %s146
      %s164 = sphi 0, %s164
      %s166 = sphi 0, %s164
      %s167 = sphi 0, %s166
      %s181 = sphi 0, %s167
      %s185 = sphi 0, %s185
      %s187 = sphi 0, %s185
      %s188 = sphi 0, %s187
      %s202 = sphi 0, %s188
    $region4: #{discriminator_forward.5} parent=1 // loop_header_branch
      %23 = sbr.rel (%p21) target = $region8
    $region5: #{discriminator_forward.5} parent=1 // loop_body
      %s25 = ssub.s32 %s20, 1
      %s26 = ssub.s32 %s20, 2
      %s27 = sadd.s32 %s20, 1
      %s28 = ssub.s32 %s20, %s27
      %p29 = scmp.eq.s32.totalorder %s28, 0
      %s31 = sadd.s32 %s30, 1
      %s32 = scalar_select %p29, %s30, %s31
      %p35 = pneg %p29
      %p36 = scmp.eq.s32.totalorder %s20, 6
      %p37 = por %p35, %p36
      %p38 = scmp.ne.s32.totalorder %s30, %s33
      %p39 = scmp.eq.s32.totalorder %s20, 0
      %p40 = por %p38, %p39
      %p41 = scmp.ne.s32.totalorder %s30, %s33
      %p42 = scmp.eq.s32.totalorder %s25, 6
      %p43 = por %p41, %p42
      %p44 = scmp.ne.s32.totalorder %s33, %s34
      %p45 = scmp.eq.s32.totalorder %s25, 0
      %p46 = por %p44, %p45
      %p47 = scmp.ne.s32.totalorder %s33, %s34
      %p48 = scmp.eq.s32.totalorder %s26, 6
      %p49 = por %p47, %p48
      %p51 = scmp.ne.s32.totalorder %s34, %s50
      %p52 = scmp.eq.s32.totalorder %s26, 0
      %p53 = por %p51, %p52
      %s54 = ssub.s32 %s20, %s27
      %p55 = scmp.eq.s32.totalorder %s54, 0
      %s57 = sadd.s32 %s56, 1
      %s58 = scalar_select %p55, %s56, %s57
      %p61 = pneg %p55
      %p62 = scmp.eq.s32.totalorder %s20, 6
      %p63 = por %p61, %p62
      %p64 = scmp.ne.s32.totalorder %s56, %s59
      %p65 = scmp.eq.s32.totalorder %s20, 0
      %p66 = por %p64, %p65
      %p67 = scmp.ne.s32.totalorder %s56, %s59
      %p68 = scmp.eq.s32.totalorder %s25, 6
      %p69 = por %p67, %p68
      %p70 = scmp.ne.s32.totalorder %s59, %s60
      %p71 = scmp.eq.s32.totalorder %s25, 0
      %p72 = por %p70, %p71
      %p73 = scmp.ne.s32.totalorder %s59, %s60
      %p74 = scmp.eq.s32.totalorder %s26, 6
      %p75 = por %p73, %p74
      %p77 = scmp.ne.s32.totalorder %s60, %s76
      %p78 = scmp.eq.s32.totalorder %s26, 0
      %p79 = por %p77, %p78
      %s81 = sadd.s32 %s80, 1
      %p84 = scmp.eq.s32.totalorder %s20, 6
      %p85 = scmp.ne.s32.totalorder %s80, %s82
      %p86 = scmp.eq.s32.totalorder %s20, 0
      %p87 = por %p85, %p86
      %p88 = scmp.ne.s32.totalorder %s80, %s82
      %p89 = scmp.eq.s32.totalorder %s25, 6
      %p90 = por %p88, %p89
      %p91 = scmp.ne.s32.totalorder %s82, %s83
      %p92 = scmp.eq.s32.totalorder %s25, 0
      %p93 = por %p91, %p92
      %p94 = scmp.ne.s32.totalorder %s82, %s83
      %p95 = scmp.eq.s32.totalorder %s26, 6
      %p96 = por %p94, %p95
      %p98 = scmp.ne.s32.totalorder %s83, %s97
      %p99 = scmp.eq.s32.totalorder %s26, 0
      %p100 = por %p98, %p99
      %s102 = sadd.s32 %s101, 1
      %p105 = scmp.eq.s32.totalorder %s20, 6
      %p106 = scmp.ne.s32.totalorder %s101, %s103
      %p107 = scmp.eq.s32.totalorder %s20, 0
      %p108 = por %p106, %p107
      %p109 = scmp.ne.s32.totalorder %s101, %s103
      %p110 = scmp.eq.s32.totalorder %s25, 6
      %p111 = por %p109, %p110
      %p112 = scmp.ne.s32.totalorder %s103, %s104
      %p113 = scmp.eq.s32.totalorder %s25, 0
      %p114 = por %p112, %p113
      %p115 = scmp.ne.s32.totalorder %s103, %s104
      %p116 = scmp.eq.s32.totalorder %s26, 6
      %p117 = por %p115, %p116
      %p119 = scmp.ne.s32.totalorder %s104, %s118
      %p120 = scmp.eq.s32.totalorder %s26, 0
      %p121 = por %p119, %p120
      %s123 = sadd.s32 %s122, 1
      %p126 = scmp.eq.s32.totalorder %s20, 6
      %p127 = scmp.ne.s32.totalorder %s122, %s124
      %p128 = scmp.eq.s32.totalorder %s20, 0
      %p129 = por %p127, %p128
      %p130 = scmp.ne.s32.totalorder %s122, %s124
      %p131 = scmp.eq.s32.totalorder %s25, 6
      %p132 = por %p130, %p131
      %p133 = scmp.ne.s32.totalorder %s124, %s125
      %p134 = scmp.eq.s32.totalorder %s25, 0
      %p135 = por %p133, %p134
      %p136 = scmp.ne.s32.totalorder %s124, %s125
      %p137 = scmp.eq.s32.totalorder %s26, 6
      %p138 = por %p136, %p137
      %p140 = scmp.ne.s32.totalorder %s125, %s139
      %p141 = scmp.eq.s32.totalorder %s26, 0
      %p142 = por %p140, %p141
      %s144 = sadd.s32 %s143, 1
      %p147 = scmp.eq.s32.totalorder %s20, 6
      %p148 = scmp.ne.s32.totalorder %s143, %s145
      %p149 = scmp.eq.s32.totalorder %s20, 0
      %p150 = por %p148, %p149
      %p151 = scmp.ne.s32.totalorder %s143, %s145
      %p152 = scmp.eq.s32.totalorder %s25, 6
      %p153 = por %p151, %p152
      %p154 = scmp.ne.s32.totalorder %s145, %s146
      %p155 = scmp.eq.s32.totalorder %s25, 0
      %p156 = por %p154, %p155
      %p157 = scmp.ne.s32.totalorder %s145, %s146
      %p158 = scmp.eq.s32.totalorder %s26, 6
      %p159 = por %p157, %p158
      %p161 = scmp.ne.s32.totalorder %s146, %s160
      %p162 = scmp.eq.s32.totalorder %s26, 0
      %p163 = por %p161, %p162
      %s165 = sadd.s32 %s164, 1
      %p168 = scmp.eq.s32.totalorder %s20, 6
      %p169 = scmp.ne.s32.totalorder %s164, %s166
      %p170 = scmp.eq.s32.totalorder %s20, 0
      %p171 = por %p169, %p170
      %p172 = scmp.ne.s32.totalorder %s164, %s166
      %p173 = scmp.eq.s32.totalorder %s25, 6
      %p174 = por %p172, %p173
      %p175 = scmp.ne.s32.totalorder %s166, %s167
      %p176 = scmp.eq.s32.totalorder %s25, 0
      %p177 = por %p175, %p176
      %p178 = scmp.ne.s32.totalorder %s166, %s167
      %p179 = scmp.eq.s32.totalorder %s26, 6
      %p180 = por %p178, %p179
      %p182 = scmp.ne.s32.totalorder %s167, %s181
      %p183 = scmp.eq.s32.totalorder %s26, 0
      %p184 = por %p182, %p183
      %s186 = sadd.s32 %s185, 1
      %p189 = scmp.eq.s32.totalorder %s20, 6
      %p190 = scmp.ne.s32.totalorder %s185, %s187
      %p191 = scmp.eq.s32.totalorder %s20, 0
      %p192 = por %p190, %p191
      %p193 = scmp.ne.s32.totalorder %s185, %s187
      %p194 = scmp.eq.s32.totalorder %s25, 6
      %p195 = por %p193, %p194
      %p196 = scmp.ne.s32.totalorder %s187, %s188
      %p197 = scmp.eq.s32.totalorder %s25, 0
      %p198 = por %p196, %p197
      %p199 = scmp.ne.s32.totalorder %s187, %s188
      %p200 = scmp.eq.s32.totalorder %s26, 6
      %p201 = por %p199, %p200
      %p203 = scmp.ne.s32.totalorder %s188, %s202
      %p204 = scmp.eq.s32.totalorder %s26, 0
      %p205 = por %p203, %p204
      %p206 = scmp.le.s32.totalorder 1, %s20
      %p207 = scmp.lt.s32.totalorder %s20, 8
      %p208 = pnand %p206, %p207
      %p209 = pneg %p208
      // Predicated region
      $region9: #{discriminator_forward.5} parent=5 // pred_check
        _
      $region10: #{discriminator_forward.5} parent=5 // pred_check_branch
        %211 = sbr.rel (%p208) target = $region12
      $region11: #{discriminator_forward.5} parent=5 // pred_region
        %s212 = ssub.s32 %s20, 1
        // Predicated region
        $region13: #{discriminator_forward.5} parent=11 // pred_check
          %p213 = pneg %p93
        $region14: #{discriminator_forward.5} parent=11 // pred_check_branch
          %215 = sbr.rel (%p213) target = $region16
        $region15: #{discriminator_forward.5} parent=11 // pred_region
          %s217 = ssub.s32 128, 128
          %218 = vsyncadd [#allocation7], %s217
          %s220 = sshll.u32 [#allocation6], 4
          %s221 = int_to_ptr.vmem [resolvable:$true] %s220
          %223 = dma.hbm_to_vmem [thread:$0]  %s2, 128, %s221, [#allocation7]
        $region16: #{discriminator_forward.5} parent=11 // pred_fallthru
          _
        // Predicated region
        $region17: #{discriminator_forward.5} parent=11 // pred_check
          %p224 = pneg %p114
        $region18: #{discriminator_forward.5} parent=11 // pred_check_branch
          %226 = sbr.rel (%p224) target = $region20
        $region19: #{discriminator_forward.5} parent=11 // pred_region
          %s228 = ssub.s32 128, 128
          %229 = vsyncadd [#allocation7], %s228
          %s231 = sshll.u32 [#allocation8], 4
          %s232 = int_to_ptr.vmem [resolvable:$true] %s231
          %234 = dma.hbm_to_vmem [thread:$0]  %s3, 128, %s232, [#allocation7]
        $region20: #{discriminator_forward.5} parent=11 // pred_fallthru
          _
        // Predicated region
        $region21: #{discriminator_forward.5} parent=11 // pred_check
          %p235 = pneg %p135
        $region22: #{discriminator_forward.5} parent=11 // pred_check_branch
          %237 = sbr.rel (%p235) target = $region24
        $region23: #{discriminator_forward.5} parent=11 // pred_region
          %s239 = ssub.s32 128, 128
          %240 = vsyncadd [#allocation10], %s239
          %s242 = sshll.u32 [#allocation9], 4
          %s243 = int_to_ptr.vmem [resolvable:$true] %s242
          %245 = dma.hbm_to_vmem [thread:$0]  %s4, 128, %s243, [#allocation10]
        $region24: #{discriminator_forward.5} parent=11 // pred_fallthru
          _
        // Predicated region
        $region25: #{discriminator_forward.5} parent=11 // pred_check
          %p246 = pneg %p156
        $region26: #{discriminator_forward.5} parent=11 // pred_check_branch
          %248 = sbr.rel (%p246) target = $region28
        $region27: #{discriminator_forward.5} parent=11 // pred_region
          %s250 = ssub.s32 128, 128
          %251 = vsyncadd [#allocation10], %s250
          %s253 = sshll.u32 [#allocation11], 4
          %s254 = int_to_ptr.vmem [resolvable:$true] %s253
          %256 = dma.hbm_to_vmem [thread:$0]  %s5, 128, %s254, [#allocation10]
        $region28: #{discriminator_forward.5} parent=11 // pred_fallthru
          _
        // Predicated region
        $region29: #{discriminator_forward.5} parent=11 // pred_check
          %p257 = pneg %p177
        $region30: #{discriminator_forward.5} parent=11 // pred_check_branch
          %259 = sbr.rel (%p257) target = $region32
        $region31: #{discriminator_forward.5} parent=11 // pred_region
          _
        $region32: #{discriminator_forward.5} parent=11 // pred_fallthru
          _
      $region12: #{discriminator_forward.5} parent=5 // pred_fallthru
        _
      %p260 = scmp.lt.s32.totalorder %s20, 7
      // Predicated region
      $region33: #{discriminator_forward.5} parent=5 // pred_check
        %p261 = pneg %p260
      $region34: #{discriminator_forward.5} parent=5 // pred_check_branch
        %263 = sbr.rel (%p261) target = $region36
      $region35: #{discriminator_forward.5} parent=5 // pred_region
        // Predicated region
        $region37: #{discriminator_forward.5} parent=35 // pred_check
          %p264 = pneg %p40
        $region38: #{discriminator_forward.5} parent=35 // pred_check_branch
          %266 = sbr.rel (%p264) target = $region40
        $region39: #{discriminator_forward.5} parent=35 // pred_region
          %s267 = smul.u32 7, %s20
          %p268 = scmp.lt.s32.totalorder %s267, 48
          %s269 = scalar_select %p268, %s267, 48
          %s270 = smul.addr %s269, 2
          %s271 = scalar_lea.vmem %s0, %s270
          %s272 = smul.u32 7, %s20
        $region40: #{discriminator_forward.5} parent=35 // pred_fallthru
          _
        // Predicated region
        $region41: #{discriminator_forward.5} parent=35 // pred_check
          %p273 = pneg %p66
        $region42: #{discriminator_forward.5} parent=35 // pred_check_branch
          %275 = sbr.rel (%p273) target = $region44
        $region43: #{discriminator_forward.5} parent=35 // pred_region
          %s276 = sand.u32 %s56, 1
          %s277 = scalar_lea.sflag [#allocation5], %s276
          %s278 = sand.u32 %s56, 1
          %s279 = smul.addr %s278, 7168
          %s280 = scalar_lea.vmem [#allocation4], %s279
          %s281 = smul.u32 112, %s20
          %s283 = ssub.s32 114688, 114688
          %284 = vsyncadd %s277, %s283
          %s285 = smul.addr %s281, 8
          %s286 = smul.addr %s285, 128
          %s287 = scalar_lea.hbm %s1, %s286
          %s288 = sshll.u32 %s280, 4
          %s289 = int_to_ptr.vmem [resolvable:$true] %s288
          %294 = dma.hbm_to_vmem [thread:$0]  %s287, 114688, %s289, %s277, 1024, 1024, 64
        $region44: #{discriminator_forward.5} parent=35 // pred_fallthru
          _
      $region36: #{discriminator_forward.5} parent=5 // pred_fallthru
        _
      %p295 = scmp.le.s32.totalorder 1, %s20
      %p296 = scmp.lt.s32.totalorder %s20, 8
      %p297 = pnand %p295, %p296
      %p298 = pneg %p297
      // Predicated region
      $region45: #{discriminator_forward.5} parent=5 // pred_check
        _
      $region46: #{discriminator_forward.5} parent=5 // pred_check_branch
        %300 = sbr.rel (%p297) target = $region48
      $region47: #{discriminator_forward.5} parent=5 // pred_region
        %s301 = ssub.s32 %s20, 1
        %s302 = sand.u32 %s59, 1
        %s303 = scalar_lea.sflag [#allocation5], %s302
        %s304 = sand.u32 %s59, 1
        %s305 = smul.addr %s304, 7168
        %s306 = scalar_lea.vmem [#allocation4], %s305
        // Predicated region
        $region49: #{discriminator_forward.5} parent=47 // pred_check
          %p307 = pneg %p72
        $region50: #{discriminator_forward.5} parent=47 // pred_check_branch
          %309 = sbr.rel (%p307) target = $region52
        $region51: #{discriminator_forward.5} parent=47 // pred_region
          %310 = dma.done %s303, 114688
        $region52: #{discriminator_forward.5} parent=47 // pred_fallthru
          _
        // Predicated region
        $region53: #{discriminator_forward.5} parent=47 // pred_check
          %p311 = pneg %p93
        $region54: #{discriminator_forward.5} parent=47 // pred_check_branch
          %313 = sbr.rel (%p311) target = $region56
        $region55: #{discriminator_forward.5} parent=47 // pred_region
          %314 = dma.done [#allocation7], 128
        $region56: #{discriminator_forward.5} parent=47 // pred_fallthru
          _
        // Predicated region
        $region57: #{discriminator_forward.5} parent=47 // pred_check
          %p315 = pneg %p114
        $region58: #{discriminator_forward.5} parent=47 // pred_check_branch
          %317 = sbr.rel (%p315) target = $region60
        $region59: #{discriminator_forward.5} parent=47 // pred_region
          %318 = dma.done [#allocation7], 128
        $region60: #{discriminator_forward.5} parent=47 // pred_fallthru
          _
        // Predicated region
        $region61: #{discriminator_forward.5} parent=47 // pred_check
          %p319 = pneg %p135
        $region62: #{discriminator_forward.5} parent=47 // pred_check_branch
          %321 = sbr.rel (%p319) target = $region64
        $region63: #{discriminator_forward.5} parent=47 // pred_region
          %322 = dma.done [#allocation10], 128
        $region64: #{discriminator_forward.5} parent=47 // pred_fallthru
          _
        // Predicated region
        $region65: #{discriminator_forward.5} parent=47 // pred_check
          %p323 = pneg %p156
        $region66: #{discriminator_forward.5} parent=47 // pred_check_branch
          %325 = sbr.rel (%p323) target = $region68
        $region67: #{discriminator_forward.5} parent=47 // pred_region
          %326 = dma.done [#allocation10], 128
        $region68: #{discriminator_forward.5} parent=47 // pred_fallthru
          _
        %s327 = smul.u32 7, %s25
        %p328 = scmp.lt.s32.totalorder %s327, 48
        %s329 = scalar_select %p328, %s327, 48
        %s330 = smul.addr %s329, 2
        %s331 = scalar_lea.vmem %s0, %s330
        %p332 = pneg %p46
        %p333 = pneg %p43
        %s334 = sand.u32 %s59, 1
        %s335 = scalar_lea.sflag [#allocation5], %s334
        %s336 = sand.u32 %s59, 1
        %s337 = smul.addr %s336, 7168
        %s338 = scalar_lea.vmem [#allocation4], %s337
        %p339 = pneg %p72
        %p340 = pneg %p69
        %p341 = pneg %p93
        %p342 = pneg %p90
        %p343 = pneg %p114
        %p344 = pneg %p111
        %p345 = pneg %p135
        %p346 = pneg %p132
        %p347 = pneg %p156
        %p348 = pneg %p153
        %p349 = pneg %p177
        %p350 = pneg %p174
        %p351 = pneg %p198
        %p352 = pneg %p195
        %s353 = smul.u32 7, %s25
        %p354 = scmp.lt.s32.totalorder %s353, 48
        %s355 = scalar_select %p354, %s353, 48
        %s356 = smul.addr %s355, 2
        %s357 = scalar_lea.vmem %s0, %s356
        %s358 = smul.u32 7, %s25
        %s359 = smul.u32 112, %s25
        %v360 = vld [vmem:[%s357] sm:$0xff]
        %v361 = vld [vmem:[%s357 + $0x8] sm:$0x3f]
        %v362 = vld [vmem:[%s306] sm:$0xff]
        %v363 = vld [vmem:[%s306 + $0x8] sm:$0xff]
        %v364 = vld [vmem:[%s306 + $0x10] sm:$0xff]
        %v365 = vld [vmem:[%s306 + $0x18] sm:$0xff]
        %v366 = vld [vmem:[%s306 + $0x20] sm:$0xff]
        %v367 = vld [vmem:[%s306 + $0x28] sm:$0xff]
        %v368 = vld [vmem:[%s306 + $0x30] sm:$0xff]
        %v369 = vld [vmem:[%s306 + $0x38] sm:$0xff]
        %v370 = vld [vmem:[%s306 + $0x40] sm:$0xff]
        %v371 = vld [vmem:[%s306 + $0x48] sm:$0xff]
        %v372 = vld [vmem:[%s306 + $0x50] sm:$0xff]
        %v373 = vld [vmem:[%s306 + $0x58] sm:$0xff]
        %v374 = vld [vmem:[%s306 + $0x60] sm:$0xff]
        %v375 = vld [vmem:[%s306 + $0x68] sm:$0xff]
        %v376 = vld [vmem:[%s306 + $0x70] sm:$0xff]
        %v377 = vld [vmem:[%s306 + $0x78] sm:$0xff]
        %v378 = vld [vmem:[%s306 + $0x80] sm:$0xff]
        %v379 = vld [vmem:[%s306 + $0x88] sm:$0xff]
        %v380 = vld [vmem:[%s306 + $0x90] sm:$0xff]
        %v381 = vld [vmem:[%s306 + $0x98] sm:$0xff]
        %v382 = vld [vmem:[%s306 + $0xa0] sm:$0xff]
        %v383 = vld [vmem:[%s306 + $0xa8] sm:$0xff]
        %v384 = vld [vmem:[%s306 + $0xb0] sm:$0xff]
        %v385 = vld [vmem:[%s306 + $0xb8] sm:$0xff]
        %v386 = vld [vmem:[%s306 + $0xc0] sm:$0xff]
        %v387 = vld [vmem:[%s306 + $0xc8] sm:$0xff]
        %v388 = vld [vmem:[%s306 + $0xd0] sm:$0xff]
        %v389 = vld [vmem:[%s306 + $0xd8] sm:$0xff]
        %v390 = vld [vmem:[%s306 + $0xe0] sm:$0xff]
        %v391 = vld [vmem:[%s306 + $0xe8] sm:$0xff]
        %v392 = vld [vmem:[%s306 + $0xf0] sm:$0xff]
        %v393 = vld [vmem:[%s306 + $0xf8] sm:$0xff]
        %v394 = vld [vmem:[%s306 + $0x100] sm:$0xff]
        %v395 = vld [vmem:[%s306 + $0x108] sm:$0xff]
        %v396 = vld [vmem:[%s306 + $0x110] sm:$0xff]
        %v397 = vld [vmem:[%s306 + $0x118] sm:$0xff]
        %v398 = vld [vmem:[%s306 + $0x120] sm:$0xff]
        %v399 = vld [vmem:[%s306 + $0x128] sm:$0xff]
        %v400 = vld [vmem:[%s306 + $0x130] sm:$0xff]
        %v401 = vld [vmem:[%s306 + $0x138] sm:$0xff]
        %v402 = vld [vmem:[%s306 + $0x140] sm:$0xff]
        %v403 = vld [vmem:[%s306 + $0x148] sm:$0xff]
        %v404 = vld [vmem:[%s306 + $0x150] sm:$0xff]
        %v405 = vld [vmem:[%s306 + $0x158] sm:$0xff]
        %v406 = vld [vmem:[%s306 + $0x160] sm:$0xff]
        %v407 = vld [vmem:[%s306 + $0x168] sm:$0xff]
        %v408 = vld [vmem:[%s306 + $0x170] sm:$0xff]
        %v409 = vld [vmem:[%s306 + $0x178] sm:$0xff]
        %v410 = vld [vmem:[%s306 + $0x180] sm:$0xff]
        %v411 = vld [vmem:[%s306 + $0x188] sm:$0xff]
        %v412 = vld [vmem:[%s306 + $0x190] sm:$0xff]
        %v413 = vld [vmem:[%s306 + $0x198] sm:$0xff]
        %v414 = vld [vmem:[%s306 + $0x1a0] sm:$0xff]
        %v415 = vld [vmem:[%s306 + $0x1a8] sm:$0xff]
        %v416 = vld [vmem:[%s306 + $0x1b0] sm:$0xff]
        %v417 = vld [vmem:[%s306 + $0x1b8] sm:$0xff]
        %v418 = vld [vmem:[%s306 + $0x1c0] sm:$0xff]
        %v419 = vld [vmem:[%s306 + $0x1c8] sm:$0xff]
        %v420 = vld [vmem:[%s306 + $0x1d0] sm:$0xff]
        %v421 = vld [vmem:[%s306 + $0x1d8] sm:$0xff]
        %v422 = vld [vmem:[%s306 + $0x1e0] sm:$0xff]
        %v423 = vld [vmem:[%s306 + $0x1e8] sm:$0xff]
        %v424 = vld [vmem:[%s306 + $0x1f0] sm:$0xff]
        %v425 = vld [vmem:[%s306 + $0x1f8] sm:$0xff]
        %v426 = vld [vmem:[%s306 + $0x200] sm:$0xff]
        %v427 = vld [vmem:[%s306 + $0x208] sm:$0xff]
        %v428 = vld [vmem:[%s306 + $0x210] sm:$0xff]
        %v429 = vld [vmem:[%s306 + $0x218] sm:$0xff]
        %v430 = vld [vmem:[%s306 + $0x220] sm:$0xff]
        %v431 = vld [vmem:[%s306 + $0x228] sm:$0xff]
        %v432 = vld [vmem:[%s306 + $0x230] sm:$0xff]
        %v433 = vld [vmem:[%s306 + $0x238] sm:$0xff]
        %v434 = vld [vmem:[%s306 + $0x240] sm:$0xff]
        %v435 = vld [vmem:[%s306 + $0x248] sm:$0xff]
        %v436 = vld [vmem:[%s306 + $0x250] sm:$0xff]
        %v437 = vld [vmem:[%s306 + $0x258] sm:$0xff]
        %v438 = vld [vmem:[%s306 + $0x260] sm:$0xff]
        %v439 = vld [vmem:[%s306 + $0x268] sm:$0xff]
        %v440 = vld [vmem:[%s306 + $0x270] sm:$0xff]
        %v441 = vld [vmem:[%s306 + $0x278] sm:$0xff]
        %v442 = vld [vmem:[%s306 + $0x280] sm:$0xff]
        %v443 = vld [vmem:[%s306 + $0x288] sm:$0xff]
        %v444 = vld [vmem:[%s306 + $0x290] sm:$0xff]
        %v445 = vld [vmem:[%s306 + $0x298] sm:$0xff]
        %v446 = vld [vmem:[%s306 + $0x2a0] sm:$0xff]
        %v447 = vld [vmem:[%s306 + $0x2a8] sm:$0xff]
        %v448 = vld [vmem:[%s306 + $0x2b0] sm:$0xff]
        %v449 = vld [vmem:[%s306 + $0x2b8] sm:$0xff]
        %v450 = vld [vmem:[%s306 + $0x2c0] sm:$0xff]
        %v451 = vld [vmem:[%s306 + $0x2c8] sm:$0xff]
        %v452 = vld [vmem:[%s306 + $0x2d0] sm:$0xff]
        %v453 = vld [vmem:[%s306 + $0x2d8] sm:$0xff]
        %v454 = vld [vmem:[%s306 + $0x2e0] sm:$0xff]
        %v455 = vld [vmem:[%s306 + $0x2e8] sm:$0xff]
        %v456 = vld [vmem:[%s306 + $0x2f0] sm:$0xff]
        %v457 = vld [vmem:[%s306 + $0x2f8] sm:$0xff]
        %v458 = vld [vmem:[%s306 + $0x300] sm:$0xff]
        %v459 = vld [vmem:[%s306 + $0x308] sm:$0xff]
        %v460 = vld [vmem:[%s306 + $0x310] sm:$0xff]
        %v461 = vld [vmem:[%s306 + $0x318] sm:$0xff]
        %v462 = vld [vmem:[%s306 + $0x320] sm:$0xff]
        %v463 = vld [vmem:[%s306 + $0x328] sm:$0xff]
        %v464 = vld [vmem:[%s306 + $0x330] sm:$0xff]
        %v465 = vld [vmem:[%s306 + $0x338] sm:$0xff]
        %v466 = vld [vmem:[%s306 + $0x340] sm:$0xff]
        %v467 = vld [vmem:[%s306 + $0x348] sm:$0xff]
        %v468 = vld [vmem:[%s306 + $0x350] sm:$0xff]
        %v469 = vld [vmem:[%s306 + $0x358] sm:$0xff]
        %v470 = vld [vmem:[%s306 + $0x360] sm:$0xff]
        %v471 = vld [vmem:[%s306 + $0x368] sm:$0xff]
        %v472 = vld [vmem:[%s306 + $0x370] sm:$0xff]
        %v473 = vld [vmem:[%s306 + $0x378] sm:$0xff]
        %v474 = vld [vmem:[%s306 + $0x380] sm:$0xff]
        %v475 = vld [vmem:[%s306 + $0x388] sm:$0xff]
        %v476 = vld [vmem:[%s306 + $0x390] sm:$0xff]
        %v477 = vld [vmem:[%s306 + $0x398] sm:$0xff]
        %v478 = vld [vmem:[%s306 + $0x3a0] sm:$0xff]
        %v479 = vld [vmem:[%s306 + $0x3a8] sm:$0xff]
        %v480 = vld [vmem:[%s306 + $0x3b0] sm:$0xff]
        %v481 = vld [vmem:[%s306 + $0x3b8] sm:$0xff]
        %v482 = vld [vmem:[%s306 + $0x3c0] sm:$0xff]
        %v483 = vld [vmem:[%s306 + $0x3c8] sm:$0xff]
        %v484 = vld [vmem:[%s306 + $0x3d0] sm:$0xff]
        %v485 = vld [vmem:[%s306 + $0x3d8] sm:$0xff]
        %v486 = vld [vmem:[%s306 + $0x3e0] sm:$0xff]
        %v487 = vld [vmem:[%s306 + $0x3e8] sm:$0xff]
        %v488 = vld [vmem:[%s306 + $0x3f0] sm:$0xff]
        %v489 = vld [vmem:[%s306 + $0x3f8] sm:$0xff]
        %v490 = vld [vmem:[%s306 + $0x400] sm:$0xff]
        %v491 = vld [vmem:[%s306 + $0x408] sm:$0xff]
        %v492 = vld [vmem:[%s306 + $0x410] sm:$0xff]
        %v493 = vld [vmem:[%s306 + $0x418] sm:$0xff]
        %v494 = vld [vmem:[%s306 + $0x420] sm:$0xff]
        %v495 = vld [vmem:[%s306 + $0x428] sm:$0xff]
        %v496 = vld [vmem:[%s306 + $0x430] sm:$0xff]
        %v497 = vld [vmem:[%s306 + $0x438] sm:$0xff]
        %v498 = vld [vmem:[%s306 + $0x440] sm:$0xff]
        %v499 = vld [vmem:[%s306 + $0x448] sm:$0xff]
        %v500 = vld [vmem:[%s306 + $0x450] sm:$0xff]
        %v501 = vld [vmem:[%s306 + $0x458] sm:$0xff]
        %v502 = vld [vmem:[%s306 + $0x460] sm:$0xff]
        %v503 = vld [vmem:[%s306 + $0x468] sm:$0xff]
        %v504 = vld [vmem:[%s306 + $0x470] sm:$0xff]
        %v505 = vld [vmem:[%s306 + $0x478] sm:$0xff]
        %v506 = vld [vmem:[%s306 + $0x480] sm:$0xff]
        %v507 = vld [vmem:[%s306 + $0x488] sm:$0xff]
        %v508 = vld [vmem:[%s306 + $0x490] sm:$0xff]
        %v509 = vld [vmem:[%s306 + $0x498] sm:$0xff]
        %v510 = vld [vmem:[%s306 + $0x4a0] sm:$0xff]
        %v511 = vld [vmem:[%s306 + $0x4a8] sm:$0xff]
        %v512 = vld [vmem:[%s306 + $0x4b0] sm:$0xff]
        %v513 = vld [vmem:[%s306 + $0x4b8] sm:$0xff]
        %v514 = vld [vmem:[%s306 + $0x4c0] sm:$0xff]
        %v515 = vld [vmem:[%s306 + $0x4c8] sm:$0xff]
        %v516 = vld [vmem:[%s306 + $0x4d0] sm:$0xff]
        %v517 = vld [vmem:[%s306 + $0x4d8] sm:$0xff]
        %v518 = vld [vmem:[%s306 + $0x4e0] sm:$0xff]
        %v519 = vld [vmem:[%s306 + $0x4e8] sm:$0xff]
        %v520 = vld [vmem:[%s306 + $0x4f0] sm:$0xff]
        %v521 = vld [vmem:[%s306 + $0x4f8] sm:$0xff]
        %v522 = vld [vmem:[%s306 + $0x500] sm:$0xff]
        %v523 = vld [vmem:[%s306 + $0x508] sm:$0xff]
        %v524 = vld [vmem:[%s306 + $0x510] sm:$0xff]
        %v525 = vld [vmem:[%s306 + $0x518] sm:$0xff]
        %v526 = vld [vmem:[%s306 + $0x520] sm:$0xff]
        %v527 = vld [vmem:[%s306 + $0x528] sm:$0xff]
        %v528 = vld [vmem:[%s306 + $0x530] sm:$0xff]
        %v529 = vld [vmem:[%s306 + $0x538] sm:$0xff]
        %v530 = vld [vmem:[%s306 + $0x540] sm:$0xff]
        %v531 = vld [vmem:[%s306 + $0x548] sm:$0xff]
        %v532 = vld [vmem:[%s306 + $0x550] sm:$0xff]
        %v533 = vld [vmem:[%s306 + $0x558] sm:$0xff]
        %v534 = vld [vmem:[%s306 + $0x560] sm:$0xff]
        %v535 = vld [vmem:[%s306 + $0x568] sm:$0xff]
        %v536 = vld [vmem:[%s306 + $0x570] sm:$0xff]
        %v537 = vld [vmem:[%s306 + $0x578] sm:$0xff]
        %v538 = vld [vmem:[%s306 + $0x580] sm:$0xff]
        %v539 = vld [vmem:[%s306 + $0x588] sm:$0xff]
        %v540 = vld [vmem:[%s306 + $0x590] sm:$0xff]
        %v541 = vld [vmem:[%s306 + $0x598] sm:$0xff]
        %v542 = vld [vmem:[%s306 + $0x5a0] sm:$0xff]
        %v543 = vld [vmem:[%s306 + $0x5a8] sm:$0xff]
        %v544 = vld [vmem:[%s306 + $0x5b0] sm:$0xff]
        %v545 = vld [vmem:[%s306 + $0x5b8] sm:$0xff]
        %v546 = vld [vmem:[%s306 + $0x5c0] sm:$0xff]
        %v547 = vld [vmem:[%s306 + $0x5c8] sm:$0xff]
        %v548 = vld [vmem:[%s306 + $0x5d0] sm:$0xff]
        %v549 = vld [vmem:[%s306 + $0x5d8] sm:$0xff]
        %v550 = vld [vmem:[%s306 + $0x5e0] sm:$0xff]
        %v551 = vld [vmem:[%s306 + $0x5e8] sm:$0xff]
        %v552 = vld [vmem:[%s306 + $0x5f0] sm:$0xff]
        %v553 = vld [vmem:[%s306 + $0x5f8] sm:$0xff]
        %v554 = vld [vmem:[%s306 + $0x600] sm:$0xff]
        %v555 = vld [vmem:[%s306 + $0x608] sm:$0xff]
        %v556 = vld [vmem:[%s306 + $0x610] sm:$0xff]
        %v557 = vld [vmem:[%s306 + $0x618] sm:$0xff]
        %v558 = vld [vmem:[%s306 + $0x620] sm:$0xff]
        %v559 = vld [vmem:[%s306 + $0x628] sm:$0xff]
        %v560 = vld [vmem:[%s306 + $0x630] sm:$0xff]
        %v561 = vld [vmem:[%s306 + $0x638] sm:$0xff]
        %v562 = vld [vmem:[%s306 + $0x640] sm:$0xff]
        %v563 = vld [vmem:[%s306 + $0x648] sm:$0xff]
        %v564 = vld [vmem:[%s306 + $0x650] sm:$0xff]
        %v565 = vld [vmem:[%s306 + $0x658] sm:$0xff]
        %v566 = vld [vmem:[%s306 + $0x660] sm:$0xff]
        %v567 = vld [vmem:[%s306 + $0x668] sm:$0xff]
        %v568 = vld [vmem:[%s306 + $0x670] sm:$0xff]
        %v569 = vld [vmem:[%s306 + $0x678] sm:$0xff]
        %v570 = vld [vmem:[%s306 + $0x680] sm:$0xff]
        %v571 = vld [vmem:[%s306 + $0x688] sm:$0xff]
        %v572 = vld [vmem:[%s306 + $0x690] sm:$0xff]
        %v573 = vld [vmem:[%s306 + $0x698] sm:$0xff]
        %v574 = vld [vmem:[%s306 + $0x6a0] sm:$0xff]
        %v575 = vld [vmem:[%s306 + $0x6a8] sm:$0xff]
        %v576 = vld [vmem:[%s306 + $0x6b0] sm:$0xff]
        %v577 = vld [vmem:[%s306 + $0x6b8] sm:$0xff]
        %v578 = vld [vmem:[%s306 + $0x6c0] sm:$0xff]
        %v579 = vld [vmem:[%s306 + $0x6c8] sm:$0xff]
        %v580 = vld [vmem:[%s306 + $0x6d0] sm:$0xff]
        %v581 = vld [vmem:[%s306 + $0x6d8] sm:$0xff]
        %v582 = vld [vmem:[%s306 + $0x6e0] sm:$0xff]
        %v583 = vld [vmem:[%s306 + $0x6e8] sm:$0xff]
        %v584 = vld [vmem:[%s306 + $0x6f0] sm:$0xff]
        %v585 = vld [vmem:[%s306 + $0x6f8] sm:$0xff]
        %v586 = vld [vmem:[%s306 + $0x700] sm:$0xff]
        %v587 = vld [vmem:[%s306 + $0x708] sm:$0xff]
        %v588 = vld [vmem:[%s306 + $0x710] sm:$0xff]
        %v589 = vld [vmem:[%s306 + $0x718] sm:$0xff]
        %v590 = vld [vmem:[%s306 + $0x720] sm:$0xff]
        %v591 = vld [vmem:[%s306 + $0x728] sm:$0xff]
        %v592 = vld [vmem:[%s306 + $0x730] sm:$0xff]
        %v593 = vld [vmem:[%s306 + $0x738] sm:$0xff]
        %v594 = vld [vmem:[%s306 + $0x740] sm:$0xff]
        %v595 = vld [vmem:[%s306 + $0x748] sm:$0xff]
        %v596 = vld [vmem:[%s306 + $0x750] sm:$0xff]
        %v597 = vld [vmem:[%s306 + $0x758] sm:$0xff]
        %v598 = vld [vmem:[%s306 + $0x760] sm:$0xff]
        %v599 = vld [vmem:[%s306 + $0x768] sm:$0xff]
        %v600 = vld [vmem:[%s306 + $0x770] sm:$0xff]
        %v601 = vld [vmem:[%s306 + $0x778] sm:$0xff]
        %v602 = vld [vmem:[%s306 + $0x780] sm:$0xff]
        %v603 = vld [vmem:[%s306 + $0x788] sm:$0xff]
        %v604 = vld [vmem:[%s306 + $0x790] sm:$0xff]
        %v605 = vld [vmem:[%s306 + $0x798] sm:$0xff]
        %v606 = vld [vmem:[%s306 + $0x7a0] sm:$0xff]
        %v607 = vld [vmem:[%s306 + $0x7a8] sm:$0xff]
        %v608 = vld [vmem:[%s306 + $0x7b0] sm:$0xff]
        %v609 = vld [vmem:[%s306 + $0x7b8] sm:$0xff]
        %v610 = vld [vmem:[%s306 + $0x7c0] sm:$0xff]
        %v611 = vld [vmem:[%s306 + $0x7c8] sm:$0xff]
        %v612 = vld [vmem:[%s306 + $0x7d0] sm:$0xff]
        %v613 = vld [vmem:[%s306 + $0x7d8] sm:$0xff]
        %v614 = vld [vmem:[%s306 + $0x7e0] sm:$0xff]
        %v615 = vld [vmem:[%s306 + $0x7e8] sm:$0xff]
        %v616 = vld [vmem:[%s306 + $0x7f0] sm:$0xff]
        %v617 = vld [vmem:[%s306 + $0x7f8] sm:$0xff]
        %v618 = vld [vmem:[%s306 + $0x800] sm:$0xff]
        %v619 = vld [vmem:[%s306 + $0x808] sm:$0xff]
        %v620 = vld [vmem:[%s306 + $0x810] sm:$0xff]
        %v621 = vld [vmem:[%s306 + $0x818] sm:$0xff]
        %v622 = vld [vmem:[%s306 + $0x820] sm:$0xff]
        %v623 = vld [vmem:[%s306 + $0x828] sm:$0xff]
        %v624 = vld [vmem:[%s306 + $0x830] sm:$0xff]
        %v625 = vld [vmem:[%s306 + $0x838] sm:$0xff]
        %v626 = vld [vmem:[%s306 + $0x840] sm:$0xff]
        %v627 = vld [vmem:[%s306 + $0x848] sm:$0xff]
        %v628 = vld [vmem:[%s306 + $0x850] sm:$0xff]
        %v629 = vld [vmem:[%s306 + $0x858] sm:$0xff]
        %v630 = vld [vmem:[%s306 + $0x860] sm:$0xff]
        %v631 = vld [vmem:[%s306 + $0x868] sm:$0xff]
        %v632 = vld [vmem:[%s306 + $0x870] sm:$0xff]
        %v633 = vld [vmem:[%s306 + $0x878] sm:$0xff]
        %v634 = vld [vmem:[%s306 + $0x880] sm:$0xff]
        %v635 = vld [vmem:[%s306 + $0x888] sm:$0xff]
        %v636 = vld [vmem:[%s306 + $0x890] sm:$0xff]
        %v637 = vld [vmem:[%s306 + $0x898] sm:$0xff]
        %v638 = vld [vmem:[%s306 + $0x8a0] sm:$0xff]
        %v639 = vld [vmem:[%s306 + $0x8a8] sm:$0xff]
        %v640 = vld [vmem:[%s306 + $0x8b0] sm:$0xff]
        %v641 = vld [vmem:[%s306 + $0x8b8] sm:$0xff]
        %v642 = vld [vmem:[%s306 + $0x8c0] sm:$0xff]
        %v643 = vld [vmem:[%s306 + $0x8c8] sm:$0xff]
        %v644 = vld [vmem:[%s306 + $0x8d0] sm:$0xff]
        %v645 = vld [vmem:[%s306 + $0x8d8] sm:$0xff]
        %v646 = vld [vmem:[%s306 + $0x8e0] sm:$0xff]
        %v647 = vld [vmem:[%s306 + $0x8e8] sm:$0xff]
        %v648 = vld [vmem:[%s306 + $0x8f0] sm:$0xff]
        %v649 = vld [vmem:[%s306 + $0x8f8] sm:$0xff]
        %v650 = vld [vmem:[%s306 + $0x900] sm:$0xff]
        %v651 = vld [vmem:[%s306 + $0x908] sm:$0xff]
        %v652 = vld [vmem:[%s306 + $0x910] sm:$0xff]
        %v653 = vld [vmem:[%s306 + $0x918] sm:$0xff]
        %v654 = vld [vmem:[%s306 + $0x920] sm:$0xff]
        %v655 = vld [vmem:[%s306 + $0x928] sm:$0xff]
        %v656 = vld [vmem:[%s306 + $0x930] sm:$0xff]
        %v657 = vld [vmem:[%s306 + $0x938] sm:$0xff]
        %v658 = vld [vmem:[%s306 + $0x940] sm:$0xff]
        %v659 = vld [vmem:[%s306 + $0x948] sm:$0xff]
        %v660 = vld [vmem:[%s306 + $0x950] sm:$0xff]
        %v661 = vld [vmem:[%s306 + $0x958] sm:$0xff]
        %v662 = vld [vmem:[%s306 + $0x960] sm:$0xff]
        %v663 = vld [vmem:[%s306 + $0x968] sm:$0xff]
        %v664 = vld [vmem:[%s306 + $0x970] sm:$0xff]
        %v665 = vld [vmem:[%s306 + $0x978] sm:$0xff]
        %v666 = vld [vmem:[%s306 + $0x980] sm:$0xff]
        %v667 = vld [vmem:[%s306 + $0x988] sm:$0xff]
        %v668 = vld [vmem:[%s306 + $0x990] sm:$0xff]
        %v669 = vld [vmem:[%s306 + $0x998] sm:$0xff]
        %v670 = vld [vmem:[%s306 + $0x9a0] sm:$0xff]
        %v671 = vld [vmem:[%s306 + $0x9a8] sm:$0xff]
        %v672 = vld [vmem:[%s306 + $0x9b0] sm:$0xff]
        %v673 = vld [vmem:[%s306 + $0x9b8] sm:$0xff]
        %v674 = vld [vmem:[%s306 + $0x9c0] sm:$0xff]
        %v675 = vld [vmem:[%s306 + $0x9c8] sm:$0xff]
        %v676 = vld [vmem:[%s306 + $0x9d0] sm:$0xff]
        %v677 = vld [vmem:[%s306 + $0x9d8] sm:$0xff]
        %v678 = vld [vmem:[%s306 + $0x9e0] sm:$0xff]
        %v679 = vld [vmem:[%s306 + $0x9e8] sm:$0xff]
        %v680 = vld [vmem:[%s306 + $0x9f0] sm:$0xff]
        %v681 = vld [vmem:[%s306 + $0x9f8] sm:$0xff]
        %v682 = vld [vmem:[%s306 + $0xa00] sm:$0xff]
        %v683 = vld [vmem:[%s306 + $0xa08] sm:$0xff]
        %v684 = vld [vmem:[%s306 + $0xa10] sm:$0xff]
        %v685 = vld [vmem:[%s306 + $0xa18] sm:$0xff]
        %v686 = vld [vmem:[%s306 + $0xa20] sm:$0xff]
        %v687 = vld [vmem:[%s306 + $0xa28] sm:$0xff]
        %v688 = vld [vmem:[%s306 + $0xa30] sm:$0xff]
        %v689 = vld [vmem:[%s306 + $0xa38] sm:$0xff]
        %v690 = vld [vmem:[%s306 + $0xa40] sm:$0xff]
        %v691 = vld [vmem:[%s306 + $0xa48] sm:$0xff]
        %v692 = vld [vmem:[%s306 + $0xa50] sm:$0xff]
        %v693 = vld [vmem:[%s306 + $0xa58] sm:$0xff]
        %v694 = vld [vmem:[%s306 + $0xa60] sm:$0xff]
        %v695 = vld [vmem:[%s306 + $0xa68] sm:$0xff]
        %v696 = vld [vmem:[%s306 + $0xa70] sm:$0xff]
        %v697 = vld [vmem:[%s306 + $0xa78] sm:$0xff]
        %v698 = vld [vmem:[%s306 + $0xa80] sm:$0xff]
        %v699 = vld [vmem:[%s306 + $0xa88] sm:$0xff]
        %v700 = vld [vmem:[%s306 + $0xa90] sm:$0xff]
        %v701 = vld [vmem:[%s306 + $0xa98] sm:$0xff]
        %v702 = vld [vmem:[%s306 + $0xaa0] sm:$0xff]
        %v703 = vld [vmem:[%s306 + $0xaa8] sm:$0xff]
        %v704 = vld [vmem:[%s306 + $0xab0] sm:$0xff]
        %v705 = vld [vmem:[%s306 + $0xab8] sm:$0xff]
        %v706 = vld [vmem:[%s306 + $0xac0] sm:$0xff]
        %v707 = vld [vmem:[%s306 + $0xac8] sm:$0xff]
        %v708 = vld [vmem:[%s306 + $0xad0] sm:$0xff]
        %v709 = vld [vmem:[%s306 + $0xad8] sm:$0xff]
        %v710 = vld [vmem:[%s306 + $0xae0] sm:$0xff]
        %v711 = vld [vmem:[%s306 + $0xae8] sm:$0xff]
        %v712 = vld [vmem:[%s306 + $0xaf0] sm:$0xff]
        %v713 = vld [vmem:[%s306 + $0xaf8] sm:$0xff]
        %v714 = vld [vmem:[%s306 + $0xb00] sm:$0xff]
        %v715 = vld [vmem:[%s306 + $0xb08] sm:$0xff]
        %v716 = vld [vmem:[%s306 + $0xb10] sm:$0xff]
        %v717 = vld [vmem:[%s306 + $0xb18] sm:$0xff]
        %v718 = vld [vmem:[%s306 + $0xb20] sm:$0xff]
        %v719 = vld [vmem:[%s306 + $0xb28] sm:$0xff]
        %v720 = vld [vmem:[%s306 + $0xb30] sm:$0xff]
        %v721 = vld [vmem:[%s306 + $0xb38] sm:$0xff]
        %v722 = vld [vmem:[%s306 + $0xb40] sm:$0xff]
        %v723 = vld [vmem:[%s306 + $0xb48] sm:$0xff]
        %v724 = vld [vmem:[%s306 + $0xb50] sm:$0xff]
        %v725 = vld [vmem:[%s306 + $0xb58] sm:$0xff]
        %v726 = vld [vmem:[%s306 + $0xb60] sm:$0xff]
        %v727 = vld [vmem:[%s306 + $0xb68] sm:$0xff]
        %v728 = vld [vmem:[%s306 + $0xb70] sm:$0xff]
        %v729 = vld [vmem:[%s306 + $0xb78] sm:$0xff]
        %v730 = vld [vmem:[%s306 + $0xb80] sm:$0xff]
        %v731 = vld [vmem:[%s306 + $0xb88] sm:$0xff]
        %v732 = vld [vmem:[%s306 + $0xb90] sm:$0xff]
        %v733 = vld [vmem:[%s306 + $0xb98] sm:$0xff]
        %v734 = vld [vmem:[%s306 + $0xba0] sm:$0xff]
        %v735 = vld [vmem:[%s306 + $0xba8] sm:$0xff]
        %v736 = vld [vmem:[%s306 + $0xbb0] sm:$0xff]
        %v737 = vld [vmem:[%s306 + $0xbb8] sm:$0xff]
        %v738 = vld [vmem:[%s306 + $0xbc0] sm:$0xff]
        %v739 = vld [vmem:[%s306 + $0xbc8] sm:$0xff]
        %v740 = vld [vmem:[%s306 + $0xbd0] sm:$0xff]
        %v741 = vld [vmem:[%s306 + $0xbd8] sm:$0xff]
        %v742 = vld [vmem:[%s306 + $0xbe0] sm:$0xff]
        %v743 = vld [vmem:[%s306 + $0xbe8] sm:$0xff]
        %v744 = vld [vmem:[%s306 + $0xbf0] sm:$0xff]
        %v745 = vld [vmem:[%s306 + $0xbf8] sm:$0xff]
        %v746 = vld [vmem:[%s306 + $0xc00] sm:$0xff]
        %v747 = vld [vmem:[%s306 + $0xc08] sm:$0xff]
        %v748 = vld [vmem:[%s306 + $0xc10] sm:$0xff]
        %v749 = vld [vmem:[%s306 + $0xc18] sm:$0xff]
        %v750 = vld [vmem:[%s306 + $0xc20] sm:$0xff]
        %v751 = vld [vmem:[%s306 + $0xc28] sm:$0xff]
        %v752 = vld [vmem:[%s306 + $0xc30] sm:$0xff]
        %v753 = vld [vmem:[%s306 + $0xc38] sm:$0xff]
        %v754 = vld [vmem:[%s306 + $0xc40] sm:$0xff]
        %v755 = vld [vmem:[%s306 + $0xc48] sm:$0xff]
        %v756 = vld [vmem:[%s306 + $0xc50] sm:$0xff]
        %v757 = vld [vmem:[%s306 + $0xc58] sm:$0xff]
        %v758 = vld [vmem:[%s306 + $0xc60] sm:$0xff]
        %v759 = vld [vmem:[%s306 + $0xc68] sm:$0xff]
        %v760 = vld [vmem:[%s306 + $0xc70] sm:$0xff]
        %v761 = vld [vmem:[%s306 + $0xc78] sm:$0xff]
        %v762 = vld [vmem:[%s306 + $0xc80] sm:$0xff]
        %v763 = vld [vmem:[%s306 + $0xc88] sm:$0xff]
        %v764 = vld [vmem:[%s306 + $0xc90] sm:$0xff]
        %v765 = vld [vmem:[%s306 + $0xc98] sm:$0xff]
        %v766 = vld [vmem:[%s306 + $0xca0] sm:$0xff]
        %v767 = vld [vmem:[%s306 + $0xca8] sm:$0xff]
        %v768 = vld [vmem:[%s306 + $0xcb0] sm:$0xff]
        %v769 = vld [vmem:[%s306 + $0xcb8] sm:$0xff]
        %v770 = vld [vmem:[%s306 + $0xcc0] sm:$0xff]
        %v771 = vld [vmem:[%s306 + $0xcc8] sm:$0xff]
        %v772 = vld [vmem:[%s306 + $0xcd0] sm:$0xff]
        %v773 = vld [vmem:[%s306 + $0xcd8] sm:$0xff]
        %v774 = vld [vmem:[%s306 + $0xce0] sm:$0xff]
        %v775 = vld [vmem:[%s306 + $0xce8] sm:$0xff]
        %v776 = vld [vmem:[%s306 + $0xcf0] sm:$0xff]
        %v777 = vld [vmem:[%s306 + $0xcf8] sm:$0xff]
        %v778 = vld [vmem:[%s306 + $0xd00] sm:$0xff]
        %v779 = vld [vmem:[%s306 + $0xd08] sm:$0xff]
        %v780 = vld [vmem:[%s306 + $0xd10] sm:$0xff]
        %v781 = vld [vmem:[%s306 + $0xd18] sm:$0xff]
        %v782 = vld [vmem:[%s306 + $0xd20] sm:$0xff]
        %v783 = vld [vmem:[%s306 + $0xd28] sm:$0xff]
        %v784 = vld [vmem:[%s306 + $0xd30] sm:$0xff]
        %v785 = vld [vmem:[%s306 + $0xd38] sm:$0xff]
        %v786 = vld [vmem:[%s306 + $0xd40] sm:$0xff]
        %v787 = vld [vmem:[%s306 + $0xd48] sm:$0xff]
        %v788 = vld [vmem:[%s306 + $0xd50] sm:$0xff]
        %v789 = vld [vmem:[%s306 + $0xd58] sm:$0xff]
        %v790 = vld [vmem:[%s306 + $0xd60] sm:$0xff]
        %v791 = vld [vmem:[%s306 + $0xd68] sm:$0xff]
        %v792 = vld [vmem:[%s306 + $0xd70] sm:$0xff]
        %v793 = vld [vmem:[%s306 + $0xd78] sm:$0xff]
        %v794 = vld [vmem:[%s306 + $0xd80] sm:$0xff]
        %v795 = vld [vmem:[%s306 + $0xd88] sm:$0xff]
        %v796 = vld [vmem:[%s306 + $0xd90] sm:$0xff]
        %v797 = vld [vmem:[%s306 + $0xd98] sm:$0xff]
        %v798 = vld [vmem:[%s306 + $0xda0] sm:$0xff]
        %v799 = vld [vmem:[%s306 + $0xda8] sm:$0xff]
        %v800 = vld [vmem:[%s306 + $0xdb0] sm:$0xff]
        %v801 = vld [vmem:[%s306 + $0xdb8] sm:$0xff]
        %v802 = vld [vmem:[%s306 + $0xdc0] sm:$0xff]
        %v803 = vld [vmem:[%s306 + $0xdc8] sm:$0xff]
        %v804 = vld [vmem:[%s306 + $0xdd0] sm:$0xff]
        %v805 = vld [vmem:[%s306 + $0xdd8] sm:$0xff]
        %v806 = vld [vmem:[%s306 + $0xde0] sm:$0xff]
        %v807 = vld [vmem:[%s306 + $0xde8] sm:$0xff]
        %v808 = vld [vmem:[%s306 + $0xdf0] sm:$0xff]
        %v809 = vld [vmem:[%s306 + $0xdf8] sm:$0xff]
        %v810 = vld [vmem:[%s306 + $0xe00] sm:$0xff]
        %v811 = vld [vmem:[%s306 + $0xe08] sm:$0xff]
        %v812 = vld [vmem:[%s306 + $0xe10] sm:$0xff]
        %v813 = vld [vmem:[%s306 + $0xe18] sm:$0xff]
        %v814 = vld [vmem:[%s306 + $0xe20] sm:$0xff]
        %v815 = vld [vmem:[%s306 + $0xe28] sm:$0xff]
        %v816 = vld [vmem:[%s306 + $0xe30] sm:$0xff]
        %v817 = vld [vmem:[%s306 + $0xe38] sm:$0xff]
        %v818 = vld [vmem:[%s306 + $0xe40] sm:$0xff]
        %v819 = vld [vmem:[%s306 + $0xe48] sm:$0xff]
        %v820 = vld [vmem:[%s306 + $0xe50] sm:$0xff]
        %v821 = vld [vmem:[%s306 + $0xe58] sm:$0xff]
        %v822 = vld [vmem:[%s306 + $0xe60] sm:$0xff]
        %v823 = vld [vmem:[%s306 + $0xe68] sm:$0xff]
        %v824 = vld [vmem:[%s306 + $0xe70] sm:$0xff]
        %v825 = vld [vmem:[%s306 + $0xe78] sm:$0xff]
        %v826 = vld [vmem:[%s306 + $0xe80] sm:$0xff]
        %v827 = vld [vmem:[%s306 + $0xe88] sm:$0xff]
        %v828 = vld [vmem:[%s306 + $0xe90] sm:$0xff]
        %v829 = vld [vmem:[%s306 + $0xe98] sm:$0xff]
        %v830 = vld [vmem:[%s306 + $0xea0] sm:$0xff]
        %v831 = vld [vmem:[%s306 + $0xea8] sm:$0xff]
        %v832 = vld [vmem:[%s306 + $0xeb0] sm:$0xff]
        %v833 = vld [vmem:[%s306 + $0xeb8] sm:$0xff]
        %v834 = vld [vmem:[%s306 + $0xec0] sm:$0xff]
        %v835 = vld [vmem:[%s306 + $0xec8] sm:$0xff]
        %v836 = vld [vmem:[%s306 + $0xed0] sm:$0xff]
        %v837 = vld [vmem:[%s306 + $0xed8] sm:$0xff]
        %v838 = vld [vmem:[%s306 + $0xee0] sm:$0xff]
        %v839 = vld [vmem:[%s306 + $0xee8] sm:$0xff]
        %v840 = vld [vmem:[%s306 + $0xef0] sm:$0xff]
        %v841 = vld [vmem:[%s306 + $0xef8] sm:$0xff]
        %v842 = vld [vmem:[%s306 + $0xf00] sm:$0xff]
        %v843 = vld [vmem:[%s306 + $0xf08] sm:$0xff]
        %v844 = vld [vmem:[%s306 + $0xf10] sm:$0xff]
        %v845 = vld [vmem:[%s306 + $0xf18] sm:$0xff]
        %v846 = vld [vmem:[%s306 + $0xf20] sm:$0xff]
        %v847 = vld [vmem:[%s306 + $0xf28] sm:$0xff]
        %v848 = vld [vmem:[%s306 + $0xf30] sm:$0xff]
        %v849 = vld [vmem:[%s306 + $0xf38] sm:$0xff]
        %v850 = vld [vmem:[%s306 + $0xf40] sm:$0xff]
        %v851 = vld [vmem:[%s306 + $0xf48] sm:$0xff]
        %v852 = vld [vmem:[%s306 + $0xf50] sm:$0xff]
        %v853 = vld [vmem:[%s306 + $0xf58] sm:$0xff]
        %v854 = vld [vmem:[%s306 + $0xf60] sm:$0xff]
        %v855 = vld [vmem:[%s306 + $0xf68] sm:$0xff]
        %v856 = vld [vmem:[%s306 + $0xf70] sm:$0xff]
        %v857 = vld [vmem:[%s306 + $0xf78] sm:$0xff]
        %v858 = vld [vmem:[%s306 + $0xf80] sm:$0xff]
        %v859 = vld [vmem:[%s306 + $0xf88] sm:$0xff]
        %v860 = vld [vmem:[%s306 + $0xf90] sm:$0xff]
        %v861 = vld [vmem:[%s306 + $0xf98] sm:$0xff]
        %v862 = vld [vmem:[%s306 + $0xfa0] sm:$0xff]
        %v863 = vld [vmem:[%s306 + $0xfa8] sm:$0xff]
        %v864 = vld [vmem:[%s306 + $0xfb0] sm:$0xff]
        %v865 = vld [vmem:[%s306 + $0xfb8] sm:$0xff]
        %v866 = vld [vmem:[%s306 + $0xfc0] sm:$0xff]
        %v867 = vld [vmem:[%s306 + $0xfc8] sm:$0xff]
        %v868 = vld [vmem:[%s306 + $0xfd0] sm:$0xff]
        %v869 = vld [vmem:[%s306 + $0xfd8] sm:$0xff]
        %v870 = vld [vmem:[%s306 + $0xfe0] sm:$0xff]
        %v871 = vld [vmem:[%s306 + $0xfe8] sm:$0xff]
        %v872 = vld [vmem:[%s306 + $0xff0] sm:$0xff]
        %v873 = vld [vmem:[%s306 + $0xff8] sm:$0xff]
        %v874 = vld [vmem:[%s306 + $0x1000] sm:$0xff]
        %v875 = vld [vmem:[%s306 + $0x1008] sm:$0xff]
        %v876 = vld [vmem:[%s306 + $0x1010] sm:$0xff]
        %v877 = vld [vmem:[%s306 + $0x1018] sm:$0xff]
        %v878 = vld [vmem:[%s306 + $0x1020] sm:$0xff]
        %v879 = vld [vmem:[%s306 + $0x1028] sm:$0xff]
        %v880 = vld [vmem:[%s306 + $0x1030] sm:$0xff]
        %v881 = vld [vmem:[%s306 + $0x1038] sm:$0xff]
        %v882 = vld [vmem:[%s306 + $0x1040] sm:$0xff]
        %v883 = vld [vmem:[%s306 + $0x1048] sm:$0xff]
        %v884 = vld [vmem:[%s306 + $0x1050] sm:$0xff]
        %v885 = vld [vmem:[%s306 + $0x1058] sm:$0xff]
        %v886 = vld [vmem:[%s306 + $0x1060] sm:$0xff]
        %v887 = vld [vmem:[%s306 + $0x1068] sm:$0xff]
        %v888 = vld [vmem:[%s306 + $0x1070] sm:$0xff]
        %v889 = vld [vmem:[%s306 + $0x1078] sm:$0xff]
        %v890 = vld [vmem:[%s306 + $0x1080] sm:$0xff]
        %v891 = vld [vmem:[%s306 + $0x1088] sm:$0xff]
        %v892 = vld [vmem:[%s306 + $0x1090] sm:$0xff]
        %v893 = vld [vmem:[%s306 + $0x1098] sm:$0xff]
        %v894 = vld [vmem:[%s306 + $0x10a0] sm:$0xff]
        %v895 = vld [vmem:[%s306 + $0x10a8] sm:$0xff]
        %v896 = vld [vmem:[%s306 + $0x10b0] sm:$0xff]
        %v897 = vld [vmem:[%s306 + $0x10b8] sm:$0xff]
        %v898 = vld [vmem:[%s306 + $0x10c0] sm:$0xff]
        %v899 = vld [vmem:[%s306 + $0x10c8] sm:$0xff]
        %v900 = vld [vmem:[%s306 + $0x10d0] sm:$0xff]
        %v901 = vld [vmem:[%s306 + $0x10d8] sm:$0xff]
        %v902 = vld [vmem:[%s306 + $0x10e0] sm:$0xff]
        %v903 = vld [vmem:[%s306 + $0x10e8] sm:$0xff]
        %v904 = vld [vmem:[%s306 + $0x10f0] sm:$0xff]
        %v905 = vld [vmem:[%s306 + $0x10f8] sm:$0xff]
        %v906 = vld [vmem:[%s306 + $0x1100] sm:$0xff]
        %v907 = vld [vmem:[%s306 + $0x1108] sm:$0xff]
        %v908 = vld [vmem:[%s306 + $0x1110] sm:$0xff]
        %v909 = vld [vmem:[%s306 + $0x1118] sm:$0xff]
        %v910 = vld [vmem:[%s306 + $0x1120] sm:$0xff]
        %v911 = vld [vmem:[%s306 + $0x1128] sm:$0xff]
        %v912 = vld [vmem:[%s306 + $0x1130] sm:$0xff]
        %v913 = vld [vmem:[%s306 + $0x1138] sm:$0xff]
        %v914 = vld [vmem:[%s306 + $0x1140] sm:$0xff]
        %v915 = vld [vmem:[%s306 + $0x1148] sm:$0xff]
        %v916 = vld [vmem:[%s306 + $0x1150] sm:$0xff]
        %v917 = vld [vmem:[%s306 + $0x1158] sm:$0xff]
        %v918 = vld [vmem:[%s306 + $0x1160] sm:$0xff]
        %v919 = vld [vmem:[%s306 + $0x1168] sm:$0xff]
        %v920 = vld [vmem:[%s306 + $0x1170] sm:$0xff]
        %v921 = vld [vmem:[%s306 + $0x1178] sm:$0xff]
        %v922 = vld [vmem:[%s306 + $0x1180] sm:$0xff]
        %v923 = vld [vmem:[%s306 + $0x1188] sm:$0xff]
        %v924 = vld [vmem:[%s306 + $0x1190] sm:$0xff]
        %v925 = vld [vmem:[%s306 + $0x1198] sm:$0xff]
        %v926 = vld [vmem:[%s306 + $0x11a0] sm:$0xff]
        %v927 = vld [vmem:[%s306 + $0x11a8] sm:$0xff]
        %v928 = vld [vmem:[%s306 + $0x11b0] sm:$0xff]
        %v929 = vld [vmem:[%s306 + $0x11b8] sm:$0xff]
        %v930 = vld [vmem:[%s306 + $0x11c0] sm:$0xff]
        %v931 = vld [vmem:[%s306 + $0x11c8] sm:$0xff]
        %v932 = vld [vmem:[%s306 + $0x11d0] sm:$0xff]
        %v933 = vld [vmem:[%s306 + $0x11d8] sm:$0xff]
        %v934 = vld [vmem:[%s306 + $0x11e0] sm:$0xff]
        %v935 = vld [vmem:[%s306 + $0x11e8] sm:$0xff]
        %v936 = vld [vmem:[%s306 + $0x11f0] sm:$0xff]
        %v937 = vld [vmem:[%s306 + $0x11f8] sm:$0xff]
        %v938 = vld [vmem:[%s306 + $0x1200] sm:$0xff]
        %v939 = vld [vmem:[%s306 + $0x1208] sm:$0xff]
        %v940 = vld [vmem:[%s306 + $0x1210] sm:$0xff]
        %v941 = vld [vmem:[%s306 + $0x1218] sm:$0xff]
        %v942 = vld [vmem:[%s306 + $0x1220] sm:$0xff]
        %v943 = vld [vmem:[%s306 + $0x1228] sm:$0xff]
        %v944 = vld [vmem:[%s306 + $0x1230] sm:$0xff]
        %v945 = vld [vmem:[%s306 + $0x1238] sm:$0xff]
        %v946 = vld [vmem:[%s306 + $0x1240] sm:$0xff]
        %v947 = vld [vmem:[%s306 + $0x1248] sm:$0xff]
        %v948 = vld [vmem:[%s306 + $0x1250] sm:$0xff]
        %v949 = vld [vmem:[%s306 + $0x1258] sm:$0xff]
        %v950 = vld [vmem:[%s306 + $0x1260] sm:$0xff]
        %v951 = vld [vmem:[%s306 + $0x1268] sm:$0xff]
        %v952 = vld [vmem:[%s306 + $0x1270] sm:$0xff]
        %v953 = vld [vmem:[%s306 + $0x1278] sm:$0xff]
        %v954 = vld [vmem:[%s306 + $0x1280] sm:$0xff]
        %v955 = vld [vmem:[%s306 + $0x1288] sm:$0xff]
        %v956 = vld [vmem:[%s306 + $0x1290] sm:$0xff]
        %v957 = vld [vmem:[%s306 + $0x1298] sm:$0xff]
        %v958 = vld [vmem:[%s306 + $0x12a0] sm:$0xff]
        %v959 = vld [vmem:[%s306 + $0x12a8] sm:$0xff]
        %v960 = vld [vmem:[%s306 + $0x12b0] sm:$0xff]
        %v961 = vld [vmem:[%s306 + $0x12b8] sm:$0xff]
        %v962 = vld [vmem:[%s306 + $0x12c0] sm:$0xff]
        %v963 = vld [vmem:[%s306 + $0x12c8] sm:$0xff]
        %v964 = vld [vmem:[%s306 + $0x12d0] sm:$0xff]
        %v965 = vld [vmem:[%s306 + $0x12d8] sm:$0xff]
        %v966 = vld [vmem:[%s306 + $0x12e0] sm:$0xff]
        %v967 = vld [vmem:[%s306 + $0x12e8] sm:$0xff]
        %v968 = vld [vmem:[%s306 + $0x12f0] sm:$0xff]
        %v969 = vld [vmem:[%s306 + $0x12f8] sm:$0xff]
        %v970 = vld [vmem:[%s306 + $0x1300] sm:$0xff]
        %v971 = vld [vmem:[%s306 + $0x1308] sm:$0xff]
        %v972 = vld [vmem:[%s306 + $0x1310] sm:$0xff]
        %v973 = vld [vmem:[%s306 + $0x1318] sm:$0xff]
        %v974 = vld [vmem:[%s306 + $0x1320] sm:$0xff]
        %v975 = vld [vmem:[%s306 + $0x1328] sm:$0xff]
        %v976 = vld [vmem:[%s306 + $0x1330] sm:$0xff]
        %v977 = vld [vmem:[%s306 + $0x1338] sm:$0xff]
        %v978 = vld [vmem:[%s306 + $0x1340] sm:$0xff]
        %v979 = vld [vmem:[%s306 + $0x1348] sm:$0xff]
        %v980 = vld [vmem:[%s306 + $0x1350] sm:$0xff]
        %v981 = vld [vmem:[%s306 + $0x1358] sm:$0xff]
        %v982 = vld [vmem:[%s306 + $0x1360] sm:$0xff]
        %v983 = vld [vmem:[%s306 + $0x1368] sm:$0xff]
        %v984 = vld [vmem:[%s306 + $0x1370] sm:$0xff]
        %v985 = vld [vmem:[%s306 + $0x1378] sm:$0xff]
        %v986 = vld [vmem:[%s306 + $0x1380] sm:$0xff]
        %v987 = vld [vmem:[%s306 + $0x1388] sm:$0xff]
        %v988 = vld [vmem:[%s306 + $0x1390] sm:$0xff]
        %v989 = vld [vmem:[%s306 + $0x1398] sm:$0xff]
        %v990 = vld [vmem:[%s306 + $0x13a0] sm:$0xff]
        %v991 = vld [vmem:[%s306 + $0x13a8] sm:$0xff]
        %v992 = vld [vmem:[%s306 + $0x13b0] sm:$0xff]
        %v993 = vld [vmem:[%s306 + $0x13b8] sm:$0xff]
        %v994 = vld [vmem:[%s306 + $0x13c0] sm:$0xff]
        %v995 = vld [vmem:[%s306 + $0x13c8] sm:$0xff]
        %v996 = vld [vmem:[%s306 + $0x13d0] sm:$0xff]
        %v997 = vld [vmem:[%s306 + $0x13d8] sm:$0xff]
        %v998 = vld [vmem:[%s306 + $0x13e0] sm:$0xff]
        %v999 = vld [vmem:[%s306 + $0x13e8] sm:$0xff]
        %v1000 = vld [vmem:[%s306 + $0x13f0] sm:$0xff]
        %v1001 = vld [vmem:[%s306 + $0x13f8] sm:$0xff]
        %v1002 = vld [vmem:[%s306 + $0x1400] sm:$0xff]
        %v1003 = vld [vmem:[%s306 + $0x1408] sm:$0xff]
        %v1004 = vld [vmem:[%s306 + $0x1410] sm:$0xff]
        %v1005 = vld [vmem:[%s306 + $0x1418] sm:$0xff]
        %v1006 = vld [vmem:[%s306 + $0x1420] sm:$0xff]
        %v1007 = vld [vmem:[%s306 + $0x1428] sm:$0xff]
        %v1008 = vld [vmem:[%s306 + $0x1430] sm:$0xff]
        %v1009 = vld [vmem:[%s306 + $0x1438] sm:$0xff]
        %v1010 = vld [vmem:[%s306 + $0x1440] sm:$0xff]
        %v1011 = vld [vmem:[%s306 + $0x1448] sm:$0xff]
        %v1012 = vld [vmem:[%s306 + $0x1450] sm:$0xff]
        %v1013 = vld [vmem:[%s306 + $0x1458] sm:$0xff]
        %v1014 = vld [vmem:[%s306 + $0x1460] sm:$0xff]
        %v1015 = vld [vmem:[%s306 + $0x1468] sm:$0xff]
        %v1016 = vld [vmem:[%s306 + $0x1470] sm:$0xff]
        %v1017 = vld [vmem:[%s306 + $0x1478] sm:$0xff]
        %v1018 = vld [vmem:[%s306 + $0x1480] sm:$0xff]
        %v1019 = vld [vmem:[%s306 + $0x1488] sm:$0xff]
        %v1020 = vld [vmem:[%s306 + $0x1490] sm:$0xff]
        %v1021 = vld [vmem:[%s306 + $0x1498] sm:$0xff]
        %v1022 = vld [vmem:[%s306 + $0x14a0] sm:$0xff]
        %v1023 = vld [vmem:[%s306 + $0x14a8] sm:$0xff]
        %v1024 = vld [vmem:[%s306 + $0x14b0] sm:$0xff]
        %v1025 = vld [vmem:[%s306 + $0x14b8] sm:$0xff]
        %v1026 = vld [vmem:[%s306 + $0x14c0] sm:$0xff]
        %v1027 = vld [vmem:[%s306 + $0x14c8] sm:$0xff]
        %v1028 = vld [vmem:[%s306 + $0x14d0] sm:$0xff]
        %v1029 = vld [vmem:[%s306 + $0x14d8] sm:$0xff]
        %v1030 = vld [vmem:[%s306 + $0x14e0] sm:$0xff]
        %v1031 = vld [vmem:[%s306 + $0x14e8] sm:$0xff]
        %v1032 = vld [vmem:[%s306 + $0x14f0] sm:$0xff]
        %v1033 = vld [vmem:[%s306 + $0x14f8] sm:$0xff]
        %v1034 = vld [vmem:[%s306 + $0x1500] sm:$0xff]
        %v1035 = vld [vmem:[%s306 + $0x1508] sm:$0xff]
        %v1036 = vld [vmem:[%s306 + $0x1510] sm:$0xff]
        %v1037 = vld [vmem:[%s306 + $0x1518] sm:$0xff]
        %v1038 = vld [vmem:[%s306 + $0x1520] sm:$0xff]
        %v1039 = vld [vmem:[%s306 + $0x1528] sm:$0xff]
        %v1040 = vld [vmem:[%s306 + $0x1530] sm:$0xff]
        %v1041 = vld [vmem:[%s306 + $0x1538] sm:$0xff]
        %v1042 = vld [vmem:[%s306 + $0x1540] sm:$0xff]
        %v1043 = vld [vmem:[%s306 + $0x1548] sm:$0xff]
        %v1044 = vld [vmem:[%s306 + $0x1550] sm:$0xff]
        %v1045 = vld [vmem:[%s306 + $0x1558] sm:$0xff]
        %v1046 = vld [vmem:[%s306 + $0x1560] sm:$0xff]
        %v1047 = vld [vmem:[%s306 + $0x1568] sm:$0xff]
        %v1048 = vld [vmem:[%s306 + $0x1570] sm:$0xff]
        %v1049 = vld [vmem:[%s306 + $0x1578] sm:$0xff]
        %v1050 = vld [vmem:[%s306 + $0x1580] sm:$0xff]
        %v1051 = vld [vmem:[%s306 + $0x1588] sm:$0xff]
        %v1052 = vld [vmem:[%s306 + $0x1590] sm:$0xff]
        %v1053 = vld [vmem:[%s306 + $0x1598] sm:$0xff]
        %v1054 = vld [vmem:[%s306 + $0x15a0] sm:$0xff]
        %v1055 = vld [vmem:[%s306 + $0x15a8] sm:$0xff]
        %v1056 = vld [vmem:[%s306 + $0x15b0] sm:$0xff]
        %v1057 = vld [vmem:[%s306 + $0x15b8] sm:$0xff]
        %v1058 = vld [vmem:[%s306 + $0x15c0] sm:$0xff]
        %v1059 = vld [vmem:[%s306 + $0x15c8] sm:$0xff]
        %v1060 = vld [vmem:[%s306 + $0x15d0] sm:$0xff]
        %v1061 = vld [vmem:[%s306 + $0x15d8] sm:$0xff]
        %v1062 = vld [vmem:[%s306 + $0x15e0] sm:$0xff]
        %v1063 = vld [vmem:[%s306 + $0x15e8] sm:$0xff]
        %v1064 = vld [vmem:[%s306 + $0x15f0] sm:$0xff]
        %v1065 = vld [vmem:[%s306 + $0x15f8] sm:$0xff]
        %v1066 = vld [vmem:[%s306 + $0x1600] sm:$0xff]
        %v1067 = vld [vmem:[%s306 + $0x1608] sm:$0xff]
        %v1068 = vld [vmem:[%s306 + $0x1610] sm:$0xff]
        %v1069 = vld [vmem:[%s306 + $0x1618] sm:$0xff]
        %v1070 = vld [vmem:[%s306 + $0x1620] sm:$0xff]
        %v1071 = vld [vmem:[%s306 + $0x1628] sm:$0xff]
        %v1072 = vld [vmem:[%s306 + $0x1630] sm:$0xff]
        %v1073 = vld [vmem:[%s306 + $0x1638] sm:$0xff]
        %v1074 = vld [vmem:[%s306 + $0x1640] sm:$0xff]
        %v1075 = vld [vmem:[%s306 + $0x1648] sm:$0xff]
        %v1076 = vld [vmem:[%s306 + $0x1650] sm:$0xff]
        %v1077 = vld [vmem:[%s306 + $0x1658] sm:$0xff]
        %v1078 = vld [vmem:[%s306 + $0x1660] sm:$0xff]
        %v1079 = vld [vmem:[%s306 + $0x1668] sm:$0xff]
        %v1080 = vld [vmem:[%s306 + $0x1670] sm:$0xff]
        %v1081 = vld [vmem:[%s306 + $0x1678] sm:$0xff]
        %v1082 = vld [vmem:[%s306 + $0x1680] sm:$0xff]
        %v1083 = vld [vmem:[%s306 + $0x1688] sm:$0xff]
        %v1084 = vld [vmem:[%s306 + $0x1690] sm:$0xff]
        %v1085 = vld [vmem:[%s306 + $0x1698] sm:$0xff]
        %v1086 = vld [vmem:[%s306 + $0x16a0] sm:$0xff]
        %v1087 = vld [vmem:[%s306 + $0x16a8] sm:$0xff]
        %v1088 = vld [vmem:[%s306 + $0x16b0] sm:$0xff]
        %v1089 = vld [vmem:[%s306 + $0x16b8] sm:$0xff]
        %v1090 = vld [vmem:[%s306 + $0x16c0] sm:$0xff]
        %v1091 = vld [vmem:[%s306 + $0x16c8] sm:$0xff]
        %v1092 = vld [vmem:[%s306 + $0x16d0] sm:$0xff]
        %v1093 = vld [vmem:[%s306 + $0x16d8] sm:$0xff]
        %v1094 = vld [vmem:[%s306 + $0x16e0] sm:$0xff]
        %v1095 = vld [vmem:[%s306 + $0x16e8] sm:$0xff]
        %v1096 = vld [vmem:[%s306 + $0x16f0] sm:$0xff]
        %v1097 = vld [vmem:[%s306 + $0x16f8] sm:$0xff]
        %v1098 = vld [vmem:[%s306 + $0x1700] sm:$0xff]
        %v1099 = vld [vmem:[%s306 + $0x1708] sm:$0xff]
        %v1100 = vld [vmem:[%s306 + $0x1710] sm:$0xff]
        %v1101 = vld [vmem:[%s306 + $0x1718] sm:$0xff]
        %v1102 = vld [vmem:[%s306 + $0x1720] sm:$0xff]
        %v1103 = vld [vmem:[%s306 + $0x1728] sm:$0xff]
        %v1104 = vld [vmem:[%s306 + $0x1730] sm:$0xff]
        %v1105 = vld [vmem:[%s306 + $0x1738] sm:$0xff]
        %v1106 = vld [vmem:[%s306 + $0x1740] sm:$0xff]
        %v1107 = vld [vmem:[%s306 + $0x1748] sm:$0xff]
        %v1108 = vld [vmem:[%s306 + $0x1750] sm:$0xff]
        %v1109 = vld [vmem:[%s306 + $0x1758] sm:$0xff]
        %v1110 = vld [vmem:[%s306 + $0x1760] sm:$0xff]
        %v1111 = vld [vmem:[%s306 + $0x1768] sm:$0xff]
        %v1112 = vld [vmem:[%s306 + $0x1770] sm:$0xff]
        %v1113 = vld [vmem:[%s306 + $0x1778] sm:$0xff]
        %v1114 = vld [vmem:[%s306 + $0x1780] sm:$0xff]
        %v1115 = vld [vmem:[%s306 + $0x1788] sm:$0xff]
        %v1116 = vld [vmem:[%s306 + $0x1790] sm:$0xff]
        %v1117 = vld [vmem:[%s306 + $0x1798] sm:$0xff]
        %v1118 = vld [vmem:[%s306 + $0x17a0] sm:$0xff]
        %v1119 = vld [vmem:[%s306 + $0x17a8] sm:$0xff]
        %v1120 = vld [vmem:[%s306 + $0x17b0] sm:$0xff]
        %v1121 = vld [vmem:[%s306 + $0x17b8] sm:$0xff]
        %v1122 = vld [vmem:[%s306 + $0x17c0] sm:$0xff]
        %v1123 = vld [vmem:[%s306 + $0x17c8] sm:$0xff]
        %v1124 = vld [vmem:[%s306 + $0x17d0] sm:$0xff]
        %v1125 = vld [vmem:[%s306 + $0x17d8] sm:$0xff]
        %v1126 = vld [vmem:[%s306 + $0x17e0] sm:$0xff]
        %v1127 = vld [vmem:[%s306 + $0x17e8] sm:$0xff]
        %v1128 = vld [vmem:[%s306 + $0x17f0] sm:$0xff]
        %v1129 = vld [vmem:[%s306 + $0x17f8] sm:$0xff]
        %v1130 = vld [vmem:[%s306 + $0x1800] sm:$0xff]
        %v1131 = vld [vmem:[%s306 + $0x1808] sm:$0xff]
        %v1132 = vld [vmem:[%s306 + $0x1810] sm:$0xff]
        %v1133 = vld [vmem:[%s306 + $0x1818] sm:$0xff]
        %v1134 = vld [vmem:[%s306 + $0x1820] sm:$0xff]
        %v1135 = vld [vmem:[%s306 + $0x1828] sm:$0xff]
        %v1136 = vld [vmem:[%s306 + $0x1830] sm:$0xff]
        %v1137 = vld [vmem:[%s306 + $0x1838] sm:$0xff]
        %v1138 = vld [vmem:[%s306 + $0x1840] sm:$0xff]
        %v1139 = vld [vmem:[%s306 + $0x1848] sm:$0xff]
        %v1140 = vld [vmem:[%s306 + $0x1850] sm:$0xff]
        %v1141 = vld [vmem:[%s306 + $0x1858] sm:$0xff]
        %v1142 = vld [vmem:[%s306 + $0x1860] sm:$0xff]
        %v1143 = vld [vmem:[%s306 + $0x1868] sm:$0xff]
        %v1144 = vld [vmem:[%s306 + $0x1870] sm:$0xff]
        %v1145 = vld [vmem:[%s306 + $0x1878] sm:$0xff]
        %v1146 = vld [vmem:[%s306 + $0x1880] sm:$0xff]
        %v1147 = vld [vmem:[%s306 + $0x1888] sm:$0xff]
        %v1148 = vld [vmem:[%s306 + $0x1890] sm:$0xff]
        %v1149 = vld [vmem:[%s306 + $0x1898] sm:$0xff]
        %v1150 = vld [vmem:[%s306 + $0x18a0] sm:$0xff]
        %v1151 = vld [vmem:[%s306 + $0x18a8] sm:$0xff]
        %v1152 = vld [vmem:[%s306 + $0x18b0] sm:$0xff]
        %v1153 = vld [vmem:[%s306 + $0x18b8] sm:$0xff]
        %v1154 = vld [vmem:[%s306 + $0x18c0] sm:$0xff]
        %v1155 = vld [vmem:[%s306 + $0x18c8] sm:$0xff]
        %v1156 = vld [vmem:[%s306 + $0x18d0] sm:$0xff]
        %v1157 = vld [vmem:[%s306 + $0x18d8] sm:$0xff]
        %v1158 = vld [vmem:[%s306 + $0x18e0] sm:$0xff]
        %v1159 = vld [vmem:[%s306 + $0x18e8] sm:$0xff]
        %v1160 = vld [vmem:[%s306 + $0x18f0] sm:$0xff]
        %v1161 = vld [vmem:[%s306 + $0x18f8] sm:$0xff]
        %v1162 = vld [vmem:[%s306 + $0x1900] sm:$0xff]
        %v1163 = vld [vmem:[%s306 + $0x1908] sm:$0xff]
        %v1164 = vld [vmem:[%s306 + $0x1910] sm:$0xff]
        %v1165 = vld [vmem:[%s306 + $0x1918] sm:$0xff]
        %v1166 = vld [vmem:[%s306 + $0x1920] sm:$0xff]
        %v1167 = vld [vmem:[%s306 + $0x1928] sm:$0xff]
        %v1168 = vld [vmem:[%s306 + $0x1930] sm:$0xff]
        %v1169 = vld [vmem:[%s306 + $0x1938] sm:$0xff]
        %v1170 = vld [vmem:[%s306 + $0x1940] sm:$0xff]
        %v1171 = vld [vmem:[%s306 + $0x1948] sm:$0xff]
        %v1172 = vld [vmem:[%s306 + $0x1950] sm:$0xff]
        %v1173 = vld [vmem:[%s306 + $0x1958] sm:$0xff]
        %v1174 = vld [vmem:[%s306 + $0x1960] sm:$0xff]
        %v1175 = vld [vmem:[%s306 + $0x1968] sm:$0xff]
        %v1176 = vld [vmem:[%s306 + $0x1970] sm:$0xff]
        %v1177 = vld [vmem:[%s306 + $0x1978] sm:$0xff]
        %v1178 = vld [vmem:[%s306 + $0x1980] sm:$0xff]
        %v1179 = vld [vmem:[%s306 + $0x1988] sm:$0xff]
        %v1180 = vld [vmem:[%s306 + $0x1990] sm:$0xff]
        %v1181 = vld [vmem:[%s306 + $0x1998] sm:$0xff]
        %v1182 = vld [vmem:[%s306 + $0x19a0] sm:$0xff]
        %v1183 = vld [vmem:[%s306 + $0x19a8] sm:$0xff]
        %v1184 = vld [vmem:[%s306 + $0x19b0] sm:$0xff]
        %v1185 = vld [vmem:[%s306 + $0x19b8] sm:$0xff]
        %v1186 = vld [vmem:[%s306 + $0x19c0] sm:$0xff]
        %v1187 = vld [vmem:[%s306 + $0x19c8] sm:$0xff]
        %v1188 = vld [vmem:[%s306 + $0x19d0] sm:$0xff]
        %v1189 = vld [vmem:[%s306 + $0x19d8] sm:$0xff]
        %v1190 = vld [vmem:[%s306 + $0x19e0] sm:$0xff]
        %v1191 = vld [vmem:[%s306 + $0x19e8] sm:$0xff]
        %v1192 = vld [vmem:[%s306 + $0x19f0] sm:$0xff]
        %v1193 = vld [vmem:[%s306 + $0x19f8] sm:$0xff]
        %v1194 = vld [vmem:[%s306 + $0x1a00] sm:$0xff]
        %v1195 = vld [vmem:[%s306 + $0x1a08] sm:$0xff]
        %v1196 = vld [vmem:[%s306 + $0x1a10] sm:$0xff]
        %v1197 = vld [vmem:[%s306 + $0x1a18] sm:$0xff]
        %v1198 = vld [vmem:[%s306 + $0x1a20] sm:$0xff]
        %v1199 = vld [vmem:[%s306 + $0x1a28] sm:$0xff]
        %v1200 = vld [vmem:[%s306 + $0x1a30] sm:$0xff]
        %v1201 = vld [vmem:[%s306 + $0x1a38] sm:$0xff]
        %v1202 = vld [vmem:[%s306 + $0x1a40] sm:$0xff]
        %v1203 = vld [vmem:[%s306 + $0x1a48] sm:$0xff]
        %v1204 = vld [vmem:[%s306 + $0x1a50] sm:$0xff]
        %v1205 = vld [vmem:[%s306 + $0x1a58] sm:$0xff]
        %v1206 = vld [vmem:[%s306 + $0x1a60] sm:$0xff]
        %v1207 = vld [vmem:[%s306 + $0x1a68] sm:$0xff]
        %v1208 = vld [vmem:[%s306 + $0x1a70] sm:$0xff]
        %v1209 = vld [vmem:[%s306 + $0x1a78] sm:$0xff]
        %v1210 = vld [vmem:[%s306 + $0x1a80] sm:$0xff]
        %v1211 = vld [vmem:[%s306 + $0x1a88] sm:$0xff]
        %v1212 = vld [vmem:[%s306 + $0x1a90] sm:$0xff]
        %v1213 = vld [vmem:[%s306 + $0x1a98] sm:$0xff]
        %v1214 = vld [vmem:[%s306 + $0x1aa0] sm:$0xff]
        %v1215 = vld [vmem:[%s306 + $0x1aa8] sm:$0xff]
        %v1216 = vld [vmem:[%s306 + $0x1ab0] sm:$0xff]
        %v1217 = vld [vmem:[%s306 + $0x1ab8] sm:$0xff]
        %v1218 = vld [vmem:[%s306 + $0x1ac0] sm:$0xff]
        %v1219 = vld [vmem:[%s306 + $0x1ac8] sm:$0xff]
        %v1220 = vld [vmem:[%s306 + $0x1ad0] sm:$0xff]
        %v1221 = vld [vmem:[%s306 + $0x1ad8] sm:$0xff]
        %v1222 = vld [vmem:[%s306 + $0x1ae0] sm:$0xff]
        %v1223 = vld [vmem:[%s306 + $0x1ae8] sm:$0xff]
        %v1224 = vld [vmem:[%s306 + $0x1af0] sm:$0xff]
        %v1225 = vld [vmem:[%s306 + $0x1af8] sm:$0xff]
        %v1226 = vld [vmem:[%s306 + $0x1b00] sm:$0xff]
        %v1227 = vld [vmem:[%s306 + $0x1b08] sm:$0xff]
        %v1228 = vld [vmem:[%s306 + $0x1b10] sm:$0xff]
        %v1229 = vld [vmem:[%s306 + $0x1b18] sm:$0xff]
        %v1230 = vld [vmem:[%s306 + $0x1b20] sm:$0xff]
        %v1231 = vld [vmem:[%s306 + $0x1b28] sm:$0xff]
        %v1232 = vld [vmem:[%s306 + $0x1b30] sm:$0xff]
        %v1233 = vld [vmem:[%s306 + $0x1b38] sm:$0xff]
        %v1234 = vld [vmem:[%s306 + $0x1b40] sm:$0xff]
        %v1235 = vld [vmem:[%s306 + $0x1b48] sm:$0xff]
        %v1236 = vld [vmem:[%s306 + $0x1b50] sm:$0xff]
        %v1237 = vld [vmem:[%s306 + $0x1b58] sm:$0xff]
        %v1238 = vld [vmem:[%s306 + $0x1b60] sm:$0xff]
        %v1239 = vld [vmem:[%s306 + $0x1b68] sm:$0xff]
        %v1240 = vld [vmem:[%s306 + $0x1b70] sm:$0xff]
        %v1241 = vld [vmem:[%s306 + $0x1b78] sm:$0xff]
        %v1242 = vld [vmem:[%s306 + $0x1b80] sm:$0xff]
        %v1243 = vld [vmem:[%s306 + $0x1b88] sm:$0xff]
        %v1244 = vld [vmem:[%s306 + $0x1b90] sm:$0xff]
        %v1245 = vld [vmem:[%s306 + $0x1b98] sm:$0xff]
        %v1246 = vld [vmem:[%s306 + $0x1ba0] sm:$0xff]
        %v1247 = vld [vmem:[%s306 + $0x1ba8] sm:$0xff]
        %v1248 = vld [vmem:[%s306 + $0x1bb0] sm:$0xff]
        %v1249 = vld [vmem:[%s306 + $0x1bb8] sm:$0xff]
        %v1250 = vld [vmem:[%s306 + $0x1bc0] sm:$0xff]
        %v1251 = vld [vmem:[%s306 + $0x1bc8] sm:$0xff]
        %v1252 = vld [vmem:[%s306 + $0x1bd0] sm:$0xff]
        %v1253 = vld [vmem:[%s306 + $0x1bd8] sm:$0xff]
        %v1254 = vld [vmem:[%s306 + $0x1be0] sm:$0xff]
        %v1255 = vld [vmem:[%s306 + $0x1be8] sm:$0xff]
        %v1256 = vld [vmem:[%s306 + $0x1bf0] sm:$0xff]
        %v1257 = vld [vmem:[%s306 + $0x1bf8] sm:$0xff]
        %v1260 = vcombine.high %v360, %v360
        %v1262 = vunpack.c.l.s4 1983009808
        %v1263 = vunpack.c.0.s8 %v1262
        %v1264 = vlaneseq
        %v1265 = vshrl.u32 %v1264, 7
        %v1266 = vsub.s32 %v1263, %v1265
        %v1267 = vrot.slane %v360, %v1266
        %v1269 = vunpack.c.l.s4 1983009808
        %v1270 = vunpack.c.0.s8 %v1269
        %v1271 = vlaneseq
        %v1272 = vshrl.u32 %v1271, 7
        %v1273 = vsub.s32 %v1270, %v1272
        %v1274 = vrot.slane %v1260, %v1273
        %v1275 = vcombine.high %v1267, %v1267
        %v1276 = vcombine.high %v1274, %v1274
        %v1277 = vcombine.high %v361, %v361
        %v1279 = vunpack.c.l.s4 1983009808
        %v1280 = vunpack.c.0.s8 %v1279
        %v1281 = vlaneseq
        %v1282 = vshrl.u32 %v1281, 7
        %v1283 = vsub.s32 %v1280, %v1282
        %v1284 = vrot.slane %v361, %v1283
        %v1286 = vunpack.c.l.s4 1983009808
        %v1287 = vunpack.c.0.s8 %v1286
        %v1288 = vlaneseq
        %v1289 = vshrl.u32 %v1288, 7
        %v1290 = vsub.s32 %v1287, %v1289
        %v1291 = vrot.slane %v1277, %v1290
        %v1292 = vcombine.high %v1284, %v1284
        %1300 = vmatprep.subr.mxu0 %v363
        %1301 = vmatpush1.msra.mxu0 %v362
        %1302 = vmatprep.subr.mxu0 %v371
        %1303 = vmatpush1.msra.mxu0 %v370
        %1304 = vmatprep.subr.mxu0 %v379
        %1305 = vmatpush1.msra.mxu0 %v378
        %1306 = vmatprep.subr.mxu0 %v387
        %1307 = vmatpush1.msra.mxu0 %v386
        %1308 = vmatprep.subr.mxu0 %v395
        %1309 = vmatpush1.msra.mxu0 %v394
        %1310 = vmatprep.subr.mxu0 %v403
        %1311 = vmatpush1.msra.mxu0 %v402
        %1312 = vmatprep.subr.mxu0 %v411
        %1313 = vmatpush1.msra.mxu0 %v410
        %1314 = vmatprep.subr.mxu0 %v419
        %1315 = vmatpush1.msra.mxu0 %v418
        %1316 = vmatprep.subr.mxu0 %v427
        %1317 = vmatpush1.msra.mxu0 %v426
        %1318 = vmatprep.subr.mxu0 %v435
        %1319 = vmatpush1.msra.mxu0 %v434
        %1320 = vmatprep.subr.mxu0 %v443
        %1321 = vmatpush1.msra.mxu0 %v442
        %1322 = vmatprep.subr.mxu0 %v451
        %1323 = vmatpush1.msra.mxu0 %v450
        %1324 = vmatprep.subr.mxu0 %v459
        %1325 = vmatpush1.msra.mxu0 %v458
        %1326 = vmatprep.subr.mxu0 %v467
        %1327 = vmatpush1.msra.mxu0 %v466
        %1328 = vmatprep.subr.mxu0 %v475
        %1329 = vmatpush1.msra.mxu0 %v474
        %1330 = vmatprep.subr.mxu0 %v483
        %1331 = vmatpush1.msra.mxu0 %v482
        %1332 = vmatprep.subr.mxu0 %v491
        %1333 = vmatpush1.msra.mxu0 %v490
        %1334 = vmatprep.subr.mxu0 %v499
        %1335 = vmatpush1.msra.mxu0 %v498
        %1336 = vmatprep.subr.mxu0 %v507
        %1337 = vmatpush1.msra.mxu0 %v506
        %1338 = vmatprep.subr.mxu0 %v515
        %1339 = vmatpush1.msra.mxu0 %v514
        %1340 = vmatprep.subr.mxu0 %v523
        %1341 = vmatpush1.msra.mxu0 %v522
        %1342 = vmatprep.subr.mxu0 %v531
        %1343 = vmatpush1.msra.mxu0 %v530
        %1344 = vmatprep.subr.mxu0 %v539
        %1345 = vmatpush1.msra.mxu0 %v538
        %1346 = vmatprep.subr.mxu0 %v547
        %1347 = vmatpush1.msra.mxu0 %v546
        %1348 = vmatprep.subr.mxu0 %v555
        %1349 = vmatpush1.msra.mxu0 %v554
        %1350 = vmatprep.subr.mxu0 %v563
        %1351 = vmatpush1.msra.mxu0 %v562
        %1352 = vmatprep.subr.mxu0 %v571
        %1353 = vmatpush1.msra.mxu0 %v570
        %1354 = vmatprep.subr.mxu0 %v579
        %1355 = vmatpush1.msra.mxu0 %v578
        %1356 = vmatprep.subr.mxu0 %v587
        %1357 = vmatpush1.msra.mxu0 %v586
        %1358 = vmatprep.subr.mxu0 %v595
        %1359 = vmatpush1.msra.mxu0 %v594
        %1360 = vmatprep.subr.mxu0 %v603
        %1361 = vmatpush1.msra.mxu0 %v602
        %1362 = vmatprep.subr.mxu0 %v611
        %1363 = vmatpush1.msra.mxu0 %v610
        %1364 = vmatprep.mubr.f32.mxu0 %v1275
        %1365 = vmatmul.mubr.f32.gmra.mrb[0].mxu0 %v1267
        %v1366 = vpop.f32.mrb[0].mxu0
        %v1367 = vadd.f32 0.0, %v1366
        %v1368 = vpop.f32.mrb[0].mxu0
        %v1369 = vadd.f32 0.0, %v1368
        %1370 = vdwg.mxu0
        %1371 = vmatprep.subr.mxu0 %v619
        %1372 = vmatpush1.msra.mxu0 %v618
        %1373 = vmatprep.subr.mxu0 %v627
        %1374 = vmatpush1.msra.mxu0 %v626
        %1375 = vmatprep.subr.mxu0 %v635
        %1376 = vmatpush1.msra.mxu0 %v634
        %1377 = vmatprep.subr.mxu0 %v643
        %1378 = vmatpush1.msra.mxu0 %v642
        %1379 = vmatprep.subr.mxu0 %v651
        %1380 = vmatpush1.msra.mxu0 %v650
        %1381 = vmatprep.subr.mxu0 %v659
        %1382 = vmatpush1.msra.mxu0 %v658
        %1383 = vmatprep.subr.mxu0 %v667
        %1384 = vmatpush1.msra.mxu0 %v666
        %1385 = vmatprep.subr.mxu0 %v675
        %1386 = vmatpush1.msra.mxu0 %v674
        %1387 = vmatprep.subr.mxu0 %v683
        %1388 = vmatpush1.msra.mxu0 %v682
        %1389 = vmatprep.subr.mxu0 %v691
        %1390 = vmatpush1.msra.mxu0 %v690
        %1391 = vmatprep.subr.mxu0 %v699
        %1392 = vmatpush1.msra.mxu0 %v698
        %1393 = vmatprep.subr.mxu0 %v707
        %1394 = vmatpush1.msra.mxu0 %v706
        %1395 = vmatprep.subr.mxu0 %v715
        %1396 = vmatpush1.msra.mxu0 %v714
        %1397 = vmatprep.subr.mxu0 %v723
        %1398 = vmatpush1.msra.mxu0 %v722
        %1399 = vmatprep.subr.mxu0 %v731
        %1400 = vmatpush1.msra.mxu0 %v730
        %1401 = vmatprep.subr.mxu0 %v739
        %1402 = vmatpush1.msra.mxu0 %v738
        %1403 = vmatprep.subr.mxu0 %v747
        %1404 = vmatpush1.msra.mxu0 %v746
        %1405 = vmatprep.subr.mxu0 %v755
        %1406 = vmatpush1.msra.mxu0 %v754
        %1407 = vmatprep.subr.mxu0 %v763
        %1408 = vmatpush1.msra.mxu0 %v762
        %1409 = vmatprep.subr.mxu0 %v771
        %1410 = vmatpush1.msra.mxu0 %v770
        %1411 = vmatprep.subr.mxu0 %v779
        %1412 = vmatpush1.msra.mxu0 %v778
        %1413 = vmatprep.subr.mxu0 %v787
        %1414 = vmatpush1.msra.mxu0 %v786
        %1415 = vmatprep.subr.mxu0 %v795
        %1416 = vmatpush1.msra.mxu0 %v794
        %1417 = vmatprep.subr.mxu0 %v803
        %1418 = vmatpush1.msra.mxu0 %v802
        %1419 = vmatprep.subr.mxu0 %v811
        %1420 = vmatpush1.msra.mxu0 %v810
        %1421 = vmatprep.subr.mxu0 %v819
        %1422 = vmatpush1.msra.mxu0 %v818
        %1423 = vmatprep.subr.mxu0 %v827
        %1424 = vmatpush1.msra.mxu0 %v826
        %1425 = vmatprep.subr.mxu0 %v835
        %1426 = vmatpush1.msra.mxu0 %v834
        %1427 = vmatprep.subr.mxu0 %v843
        %1428 = vmatpush1.msra.mxu0 %v842
        %1429 = vmatprep.subr.mxu0 %v851
        %1430 = vmatpush1.msra.mxu0 %v850
        %1431 = vmatprep.subr.mxu0 %v859
        %1432 = vmatpush1.msra.mxu0 %v858
        %1433 = vmatprep.subr.mxu0 %v867
        %1434 = vmatpush1.msra.mxu0 %v866
        %1435 = vmatprep.mubr.f32.mxu0 %v1276
        %1436 = vmatmul.mubr.f32.gmra.mrb[0].mxu0 %v1274
        %v1437 = vpop.f32.mrb[0].mxu0
        %v1438 = vadd.f32 %v1367, %v1437
        %v1439 = vpop.f32.mrb[0].mxu0
        %v1440 = vadd.f32 %v1369, %v1439
        %1441 = vdwg.mxu0
        %1442 = vmatprep.subr.mxu0 %v875
        %1443 = vmatpush1.msra.mxu0 %v874
        %1444 = vmatprep.subr.mxu0 %v883
        %1445 = vmatpush1.msra.mxu0 %v882
        %1446 = vmatprep.subr.mxu0 %v891
        %1447 = vmatpush1.msra.mxu0 %v890
        %1448 = vmatprep.subr.mxu0 %v899
        %1449 = vmatpush1.msra.mxu0 %v898
        %1450 = vmatprep.subr.mxu0 %v907
        %1451 = vmatpush1.msra.mxu0 %v906
        %1452 = vmatprep.subr.mxu0 %v915
        %1453 = vmatpush1.msra.mxu0 %v914
        %1454 = vmatprep.subr.mxu0 %v923
        %1455 = vmatpush1.msra.mxu0 %v922
        %1456 = vmatprep.subr.mxu0 %v931
        %1457 = vmatpush1.msra.mxu0 %v930
        %1458 = vmatprep.subr.mxu0 %v939
        %1459 = vmatpush1.msra.mxu0 %v938
        %1460 = vmatprep.subr.mxu0 %v947
        %1461 = vmatpush1.msra.mxu0 %v946
        %1462 = vmatprep.subr.mxu0 %v955
        %1463 = vmatpush1.msra.mxu0 %v954
        %1464 = vmatprep.subr.mxu0 %v963
        %1465 = vmatpush1.msra.mxu0 %v962
        %1466 = vmatprep.subr.mxu0 %v971
        %1467 = vmatpush1.msra.mxu0 %v970
        %1468 = vmatprep.subr.mxu0 %v979
        %1469 = vmatpush1.msra.mxu0 %v978
        %1470 = vmatprep.subr.mxu0 %v987
        %1471 = vmatpush1.msra.mxu0 %v986
        %1472 = vmatprep.subr.mxu0 %v995
        %1473 = vmatpush1.msra.mxu0 %v994
        %1474 = vmatprep.subr.mxu0 %v1003
        %1475 = vmatpush1.msra.mxu0 %v1002
        %1476 = vmatprep.subr.mxu0 %v1011
        %1477 = vmatpush1.msra.mxu0 %v1010
        %1478 = vmatprep.subr.mxu0 %v1019
        %1479 = vmatpush1.msra.mxu0 %v1018
        %1480 = vmatprep.subr.mxu0 %v1027
        %1481 = vmatpush1.msra.mxu0 %v1026
        %1482 = vmatprep.subr.mxu0 %v1035
        %1483 = vmatpush1.msra.mxu0 %v1034
        %1484 = vmatprep.subr.mxu0 %v1043
        %1485 = vmatpush1.msra.mxu0 %v1042
        %1486 = vmatprep.subr.mxu0 %v1051
        %1487 = vmatpush1.msra.mxu0 %v1050
        %1488 = vmatprep.subr.mxu0 %v1059
        %1489 = vmatpush1.msra.mxu0 %v1058
        %1490 = vmatprep.subr.mxu0 %v1067
        %1491 = vmatpush1.msra.mxu0 %v1066
        %1492 = vmatprep.subr.mxu0 %v1075
        %1493 = vmatpush1.msra.mxu0 %v1074
        %1494 = vmatprep.subr.mxu0 %v1083
        %1495 = vmatpush1.msra.mxu0 %v1082
        %1496 = vmatprep.subr.mxu0 %v1091
        %1497 = vmatpush1.msra.mxu0 %v1090
        %1498 = vmatprep.subr.mxu0 %v1099
        %1499 = vmatpush1.msra.mxu0 %v1098
        %1500 = vmatprep.subr.mxu0 %v1107
        %1501 = vmatpush1.msra.mxu0 %v1106
        %1502 = vmatprep.subr.mxu0 %v1115
        %1503 = vmatpush1.msra.mxu0 %v1114
        %1504 = vmatprep.subr.mxu0 %v1123
        %1505 = vmatpush1.msra.mxu0 %v1122
        %1506 = vmatprep.mubr.f32.mxu0 %v1292
        %1507 = vmatmul.mubr.f32.gmra.mrb[0].mxu0 %v1284
        %v1508 = vpop.f32.mrb[0].mxu0
        %v1509 = vadd.f32 %v1438, %v1508
        %v1510 = vpop.f32.mrb[0].mxu0
        %v1511 = vadd.f32 %v1440, %v1510
        %1512 = vdwg.mxu0
        %1513 = vmatprep.subr.mxu0 %v1131
        %1514 = vmatpush1.msra.mxu0 %v1130
        %1515 = vmatprep.subr.mxu0 %v1139
        %1516 = vmatpush1.msra.mxu0 %v1138
        %1517 = vmatprep.subr.mxu0 %v1147
        %1518 = vmatpush1.msra.mxu0 %v1146
        %1519 = vmatprep.subr.mxu0 %v1155
        %1520 = vmatpush1.msra.mxu0 %v1154
        %1521 = vmatprep.subr.mxu0 %v1163
        %1522 = vmatpush1.msra.mxu0 %v1162
        %1523 = vmatprep.subr.mxu0 %v1171
        %1524 = vmatpush1.msra.mxu0 %v1170
        %1525 = vmatprep.subr.mxu0 %v1179
        %1526 = vmatpush1.msra.mxu0 %v1178
        %1527 = vmatprep.subr.mxu0 %v1187
        %1528 = vmatpush1.msra.mxu0 %v1186
        %1529 = vmatprep.subr.mxu0 %v1195
        %1530 = vmatpush1.msra.mxu0 %v1194
        %1531 = vmatprep.subr.mxu0 %v1203
        %1532 = vmatpush1.msra.mxu0 %v1202
        %1533 = vmatprep.subr.mxu0 %v1211
        %1534 = vmatpush1.msra.mxu0 %v1210
        %1535 = vmatprep.subr.mxu0 %v1219
        %1536 = vmatpush1.msra.mxu0 %v1218
        %1537 = vmatprep.subr.mxu0 %v1227
        %1538 = vmatpush1.msra.mxu0 %v1226
        %1539 = vmatprep.subr.mxu0 %v1235
        %1540 = vmatpush1.msra.mxu0 %v1234
        %1541 = vmatprep.subr.mxu0 %v1243
        %1542 = vmatpush1.msra.mxu0 %v1242
        %1543 = vmatprep.subr.mxu0 %v1251
        %1544 = vmatpush1.msra.mxu0 %v1250
        %1545 = vmatprep.subr.mxu0 0.0
        %1546 = vmatpush1.msra.mxu0 0.0
        %1547 = vmatprep.subr.mxu0 0.0
        %1548 = vmatpush1.msra.mxu0 0.0
        %1549 = vmatprep.subr.mxu0 0.0
        %1550 = vmatpush1.msra.mxu0 0.0
        %1551 = vmatprep.subr.mxu0 0.0
        %1552 = vmatpush1.msra.mxu0 0.0
        %1553 = vmatprep.subr.mxu0 0.0
        %1554 = vmatpush1.msra.mxu0 0.0
        %1555 = vmatprep.subr.mxu0 0.0
        %1556 = vmatpush1.msra.mxu0 0.0
        %1557 = vmatprep.subr.mxu0 0.0
        %1558 = vmatpush1.msra.mxu0 0.0
        %1559 = vmatprep.subr.mxu0 0.0
        %1560 = vmatpush1.msra.mxu0 0.0
        %1561 = vmatprep.subr.mxu0 0.0
        %1562 = vmatpush1.msra.mxu0 0.0
        %1563 = vmatprep.subr.mxu0 0.0
        %1564 = vmatpush1.msra.mxu0 0.0
        %1565 = vmatprep.subr.mxu0 0.0
        %1566 = vmatpush1.msra.mxu0 0.0
        %1567 = vmatprep.subr.mxu0 0.0
        %1568 = vmatpush1.msra.mxu0 0.0
        %1569 = vmatprep.subr.mxu0 0.0
        %1570 = vmatpush1.msra.mxu0 0.0
        %1571 = vmatprep.subr.mxu0 0.0
        %1572 = vmatpush1.msra.mxu0 0.0
        %1573 = vmatprep.subr.mxu0 0.0
        %1574 = vmatpush1.msra.mxu0 0.0
        %1575 = vmatprep.subr.mxu0 0.0
        %1576 = vmatpush1.msra.mxu0 0.0
        %1577 = vmatprep.mubr.f32.mxu0 0.0
        %1578 = vmatmul.mubr.f32.gmra.mrb[0].mxu0 %v1291
        %v1579 = vpop.f32.mrb[0].mxu0
        %v1580 = vadd.f32 %v1509, %v1579
        %v1581 = vpop.f32.mrb[0].mxu0
        %v1582 = vadd.f32 %v1511, %v1581
        %1583 = vdwg.mxu0
        %1584 = vmatprep.subr.mxu0 %v365
        %1585 = vmatpush1.msra.mxu0 %v364
        %1586 = vmatprep.subr.mxu0 %v373
        %1587 = vmatpush1.msra.mxu0 %v372
        %1588 = vmatprep.subr.mxu0 %v381
        %1589 = vmatpush1.msra.mxu0 %v380
        %1590 = vmatprep.subr.mxu0 %v389
        %1591 = vmatpush1.msra.mxu0 %v388
        %1592 = vmatprep.subr.mxu0 %v397
        %1593 = vmatpush1.msra.mxu0 %v396
        %1594 = vmatprep.subr.mxu0 %v405
        %1595 = vmatpush1.msra.mxu0 %v404
        %1596 = vmatprep.subr.mxu0 %v413
        %1597 = vmatpush1.msra.mxu0 %v412
        %1598 = vmatprep.subr.mxu0 %v421
        %1599 = vmatpush1.msra.mxu0 %v420
        %1600 = vmatprep.subr.mxu0 %v429
        %1601 = vmatpush1.msra.mxu0 %v428
        %1602 = vmatprep.subr.mxu0 %v437
        %1603 = vmatpush1.msra.mxu0 %v436
        %1604 = vmatprep.subr.mxu0 %v445
        %1605 = vmatpush1.msra.mxu0 %v444
        %1606 = vmatprep.subr.mxu0 %v453
        %1607 = vmatpush1.msra.mxu0 %v452
        %1608 = vmatprep.subr.mxu0 %v461
        %1609 = vmatpush1.msra.mxu0 %v460
        %1610 = vmatprep.subr.mxu0 %v469
        %1611 = vmatpush1.msra.mxu0 %v468
        %1612 = vmatprep.subr.mxu0 %v477
        %1613 = vmatpush1.msra.mxu0 %v476
        %1614 = vmatprep.subr.mxu0 %v485
        %1615 = vmatpush1.msra.mxu0 %v484
        %1616 = vmatprep.subr.mxu0 %v493
        %1617 = vmatpush1.msra.mxu0 %v492
        %1618 = vmatprep.subr.mxu0 %v501
        %1619 = vmatpush1.msra.mxu0 %v500
        %1620 = vmatprep.subr.mxu0 %v509
        %1621 = vmatpush1.msra.mxu0 %v508
        %1622 = vmatprep.subr.mxu0 %v517
        %1623 = vmatpush1.msra.mxu0 %v516
        %1624 = vmatprep.subr.mxu0 %v525
        %1625 = vmatpush1.msra.mxu0 %v524
        %1626 = vmatprep.subr.mxu0 %v533
        %1627 = vmatpush1.msra.mxu0 %v532
        %1628 = vmatprep.subr.mxu0 %v541
        %1629 = vmatpush1.msra.mxu0 %v540
        %1630 = vmatprep.subr.mxu0 %v549
        %1631 = vmatpush1.msra.mxu0 %v548
        %1632 = vmatprep.subr.mxu0 %v557
        %1633 = vmatpush1.msra.mxu0 %v556
        %1634 = vmatprep.subr.mxu0 %v565
        %1635 = vmatpush1.msra.mxu0 %v564
        %1636 = vmatprep.subr.mxu0 %v573
        %1637 = vmatpush1.msra.mxu0 %v572
        %1638 = vmatprep.subr.mxu0 %v581
        %1639 = vmatpush1.msra.mxu0 %v580
        %1640 = vmatprep.subr.mxu0 %v589
        %1641 = vmatpush1.msra.mxu0 %v588
        %1642 = vmatprep.subr.mxu0 %v597
        %1643 = vmatpush1.msra.mxu0 %v596
        %1644 = vmatprep.subr.mxu0 %v605
        %1645 = vmatpush1.msra.mxu0 %v604
        %1646 = vmatprep.subr.mxu0 %v613
        %1647 = vmatpush1.msra.mxu0 %v612
        %1648 = vmatprep.mubr.f32.mxu0 %v1275
        %1649 = vmatmul.mubr.f32.gmra.mrb[0].mxu0 %v1267
        %v1650 = vpop.f32.mrb[0].mxu0
        %v1651 = vadd.f32 0.0, %v1650
        %v1652 = vpop.f32.mrb[0].mxu0
        %v1653 = vadd.f32 0.0, %v1652
        %1654 = vdwg.mxu0
        %1655 = vmatprep.subr.mxu0 %v621
        %1656 = vmatpush1.msra.mxu0 %v620
        %1657 = vmatprep.subr.mxu0 %v629
        %1658 = vmatpush1.msra.mxu0 %v628
        %1659 = vmatprep.subr.mxu0 %v637
        %1660 = vmatpush1.msra.mxu0 %v636
        %1661 = vmatprep.subr.mxu0 %v645
        %1662 = vmatpush1.msra.mxu0 %v644
        %1663 = vmatprep.subr.mxu0 %v653
        %1664 = vmatpush1.msra.mxu0 %v652
        %1665 = vmatprep.subr.mxu0 %v661
        %1666 = vmatpush1.msra.mxu0 %v660
        %1667 = vmatprep.subr.mxu0 %v669
        %1668 = vmatpush1.msra.mxu0 %v668
        %1669 = vmatprep.subr.mxu0 %v677
        %1670 = vmatpush1.msra.mxu0 %v676
        %1671 = vmatprep.subr.mxu0 %v685
        %1672 = vmatpush1.msra.mxu0 %v684
        %1673 = vmatprep.subr.mxu0 %v693
        %1674 = vmatpush1.msra.mxu0 %v692
        %1675 = vmatprep.subr.mxu0 %v701
        %1676 = vmatpush1.msra.mxu0 %v700
        %1677 = vmatprep.subr.mxu0 %v709
        %1678 = vmatpush1.msra.mxu0 %v708
        %1679 = vmatprep.subr.mxu0 %v717
        %1680 = vmatpush1.msra.mxu0 %v716
        %1681 = vmatprep.subr.mxu0 %v725
        %1682 = vmatpush1.msra.mxu0 %v724
        %1683 = vmatprep.subr.mxu0 %v733
        %1684 = vmatpush1.msra.mxu0 %v732
        %1685 = vmatprep.subr.mxu0 %v741
        %1686 = vmatpush1.msra.mxu0 %v740
        %1687 = vmatprep.subr.mxu0 %v749
        %1688 = vmatpush1.msra.mxu0 %v748
        %1689 = vmatprep.subr.mxu0 %v757
        %1690 = vmatpush1.msra.mxu0 %v756
        %1691 = vmatprep.subr.mxu0 %v765
        %1692 = vmatpush1.msra.mxu0 %v764
        %1693 = vmatprep.subr.mxu0 %v773
        %1694 = vmatpush1.msra.mxu0 %v772
        %1695 = vmatprep.subr.mxu0 %v781
        %1696 = vmatpush1.msra.mxu0 %v780
        %1697 = vmatprep.subr.mxu0 %v789
        %1698 = vmatpush1.msra.mxu0 %v788
        %1699 = vmatprep.subr.mxu0 %v797
        %1700 = vmatpush1.msra.mxu0 %v796
        %1701 = vmatprep.subr.mxu0 %v805
        %1702 = vmatpush1.msra.mxu0 %v804
        %1703 = vmatprep.subr.mxu0 %v813
        %1704 = vmatpush1.msra.mxu0 %v812
        %1705 = vmatprep.subr.mxu0 %v821
        %1706 = vmatpush1.msra.mxu0 %v820
        %1707 = vmatprep.subr.mxu0 %v829
        %1708 = vmatpush1.msra.mxu0 %v828
        %1709 = vmatprep.subr.mxu0 %v837
        %1710 = vmatpush1.msra.mxu0 %v836
        %1711 = vmatprep.subr.mxu0 %v845
        %1712 = vmatpush1.msra.mxu0 %v844
        %1713 = vmatprep.subr.mxu0 %v853
        %1714 = vmatpush1.msra.mxu0 %v852
        %1715 = vmatprep.subr.mxu0 %v861
        %1716 = vmatpush1.msra.mxu0 %v860
        %1717 = vmatprep.subr.mxu0 %v869
        %1718 = vmatpush1.msra.mxu0 %v868
        %1719 = vmatprep.mubr.f32.mxu0 %v1276
        %1720 = vmatmul.mubr.f32.gmra.mrb[0].mxu0 %v1274
        %v1721 = vpop.f32.mrb[0].mxu0
        %v1722 = vadd.f32 %v1651, %v1721
        %v1723 = vpop.f32.mrb[0].mxu0
        %v1724 = vadd.f32 %v1653, %v1723
        %1725 = vdwg.mxu0
        %1726 = vmatprep.subr.mxu0 %v877
        %1727 = vmatpush1.msra.mxu0 %v876
        %1728 = vmatprep.subr.mxu0 %v885
        %1729 = vmatpush1.msra.mxu0 %v884
        %1730 = vmatprep.subr.mxu0 %v893
        %1731 = vmatpush1.msra.mxu0 %v892
        %1732 = vmatprep.subr.mxu0 %v901
        %1733 = vmatpush1.msra.mxu0 %v900
        %1734 = vmatprep.subr.mxu0 %v909
        %1735 = vmatpush1.msra.mxu0 %v908
        %1736 = vmatprep.subr.mxu0 %v917
        %1737 = vmatpush1.msra.mxu0 %v916
        %1738 = vmatprep.subr.mxu0 %v925
        %1739 = vmatpush1.msra.mxu0 %v924
        %1740 = vmatprep.subr.mxu0 %v933
        %1741 = vmatpush1.msra.mxu0 %v932
        %1742 = vmatprep.subr.mxu0 %v941
        %1743 = vmatpush1.msra.mxu0 %v940
        %1744 = vmatprep.subr.mxu0 %v949
        %1745 = vmatpush1.msra.mxu0 %v948
        %1746 = vmatprep.subr.mxu0 %v957
        %1747 = vmatpush1.msra.mxu0 %v956
        %1748 = vmatprep.subr.mxu0 %v965
        %1749 = vmatpush1.msra.mxu0 %v964
        %1750 = vmatprep.subr.mxu0 %v973
        %1751 = vmatpush1.msra.mxu0 %v972
        %1752 = vmatprep.subr.mxu0 %v981
        %1753 = vmatpush1.msra.mxu0 %v980
        %1754 = vmatprep.subr.mxu0 %v989
        %1755 = vmatpush1.msra.mxu0 %v988
        %1756 = vmatprep.subr.mxu0 %v997
        %1757 = vmatpush1.msra.mxu0 %v996
        %1758 = vmatprep.subr.mxu0 %v1005
        %1759 = vmatpush1.msra.mxu0 %v1004
        %1760 = vmatprep.subr.mxu0 %v1013
        %1761 = vmatpush1.msra.mxu0 %v1012
        %1762 = vmatprep.subr.mxu0 %v1021
        %1763 = vmatpush1.msra.mxu0 %v1020
        %1764 = vmatprep.subr.mxu0 %v1029
        %1765 = vmatpush1.msra.mxu0 %v1028
        %1766 = vmatprep.subr.mxu0 %v1037
        %1767 = vmatpush1.msra.mxu0 %v1036
        %1768 = vmatprep.subr.mxu0 %v1045
        %1769 = vmatpush1.msra.mxu0 %v1044
        %1770 = vmatprep.subr.mxu0 %v1053
        %1771 = vmatpush1.msra.mxu0 %v1052
        %1772 = vmatprep.subr.mxu0 %v1061
        %1773 = vmatpush1.msra.mxu0 %v1060
        %1774 = vmatprep.subr.mxu0 %v1069
        %1775 = vmatpush1.msra.mxu0 %v1068
        %1776 = vmatprep.subr.mxu0 %v1077
        %1777 = vmatpush1.msra.mxu0 %v1076
        %1778 = vmatprep.subr.mxu0 %v1085
        %1779 = vmatpush1.msra.mxu0 %v1084
        %1780 = vmatprep.subr.mxu0 %v1093
        %1781 = vmatpush1.msra.mxu0 %v1092
        %1782 = vmatprep.subr.mxu0 %v1101
        %1783 = vmatpush1.msra.mxu0 %v1100
        %1784 = vmatprep.subr.mxu0 %v1109
        %1785 = vmatpush1.msra.mxu0 %v1108
        %1786 = vmatprep.subr.mxu0 %v1117
        %1787 = vmatpush1.msra.mxu0 %v1116
        %1788 = vmatprep.subr.mxu0 %v1125
        %1789 = vmatpush1.msra.mxu0 %v1124
        %1790 = vmatprep.mubr.f32.mxu0 %v1292
        %1791 = vmatmul.mubr.f32.gmra.mrb[0].mxu0 %v1284
        %v1792 = vpop.f32.mrb[0].mxu0
        %v1793 = vadd.f32 %v1722, %v1792
        %v1794 = vpop.f32.mrb[0].mxu0
        %v1795 = vadd.f32 %v1724, %v1794
        %1796 = vdwg.mxu0
        %1797 = vmatprep.subr.mxu0 %v1133
        %1798 = vmatpush1.msra.mxu0 %v1132
        %1799 = vmatprep.subr.mxu0 %v1141
        %1800 = vmatpush1.msra.mxu0 %v1140
        %1801 = vmatprep.subr.mxu0 %v1149
        %1802 = vmatpush1.msra.mxu0 %v1148
        %1803 = vmatprep.subr.mxu0 %v1157
        %1804 = vmatpush1.msra.mxu0 %v1156
        %1805 = vmatprep.subr.mxu0 %v1165
        %1806 = vmatpush1.msra.mxu0 %v1164
        %1807 = vmatprep.subr.mxu0 %v1173
        %1808 = vmatpush1.msra.mxu0 %v1172
        %1809 = vmatprep.subr.mxu0 %v1181
        %1810 = vmatpush1.msra.mxu0 %v1180
        %1811 = vmatprep.subr.mxu0 %v1189
        %1812 = vmatpush1.msra.mxu0 %v1188
        %1813 = vmatprep.subr.mxu0 %v1197
        %1814 = vmatpush1.msra.mxu0 %v1196
        %1815 = vmatprep.subr.mxu0 %v1205
        %1816 = vmatpush1.msra.mxu0 %v1204
        %1817 = vmatprep.subr.mxu0 %v1213
        %1818 = vmatpush1.msra.mxu0 %v1212
        %1819 = vmatprep.subr.mxu0 %v1221
        %1820 = vmatpush1.msra.mxu0 %v1220
        %1821 = vmatprep.subr.mxu0 %v1229
        %1822 = vmatpush1.msra.mxu0 %v1228
        %1823 = vmatprep.subr.mxu0 %v1237
        %1824 = vmatpush1.msra.mxu0 %v1236
        %1825 = vmatprep.subr.mxu0 %v1245
        %1826 = vmatpush1.msra.mxu0 %v1244
        %1827 = vmatprep.subr.mxu0 %v1253
        %1828 = vmatpush1.msra.mxu0 %v1252
        %1829 = vmatprep.subr.mxu0 0.0
        %1830 = vmatpush1.msra.mxu0 0.0
        %1831 = vmatprep.subr.mxu0 0.0
        %1832 = vmatpush1.msra.mxu0 0.0
        %1833 = vmatprep.subr.mxu0 0.0
        %1834 = vmatpush1.msra.mxu0 0.0
        %1835 = vmatprep.subr.mxu0 0.0
        %1836 = vmatpush1.msra.mxu0 0.0
        %1837 = vmatprep.subr.mxu0 0.0
        %1838 = vmatpush1.msra.mxu0 0.0
        %1839 = vmatprep.subr.mxu0 0.0
        %1840 = vmatpush1.msra.mxu0 0.0
        %1841 = vmatprep.subr.mxu0 0.0
        %1842 = vmatpush1.msra.mxu0 0.0
        %1843 = vmatprep.subr.mxu0 0.0
        %1844 = vmatpush1.msra.mxu0 0.0
        %1845 = vmatprep.subr.mxu0 0.0
        %1846 = vmatpush1.msra.mxu0 0.0
        %1847 = vmatprep.subr.mxu0 0.0
        %1848 = vmatpush1.msra.mxu0 0.0
        %1849 = vmatprep.subr.mxu0 0.0
        %1850 = vmatpush1.msra.mxu0 0.0
        %1851 = vmatprep.subr.mxu0 0.0
        %1852 = vmatpush1.msra.mxu0 0.0
        %1853 = vmatprep.subr.mxu0 0.0
        %1854 = vmatpush1.msra.mxu0 0.0
        %1855 = vmatprep.subr.mxu0 0.0
        %1856 = vmatpush1.msra.mxu0 0.0
        %1857 = vmatprep.subr.mxu0 0.0
        %1858 = vmatpush1.msra.mxu0 0.0
        %1859 = vmatprep.subr.mxu0 0.0
        %1860 = vmatpush1.msra.mxu0 0.0
        %1861 = vmatprep.mubr.f32.mxu0 0.0
        %1862 = vmatmul.mubr.f32.gmra.mrb[0].mxu0 %v1291
        %v1863 = vpop.f32.mrb[0].mxu0
        %v1864 = vadd.f32 %v1793, %v1863
        %v1865 = vpop.f32.mrb[0].mxu0
        %v1866 = vadd.f32 %v1795, %v1865
        %1867 = vdwg.mxu0
        %1868 = vmatprep.subr.mxu0 %v367
        %1869 = vmatpush1.msra.mxu0 %v366
        %1870 = vmatprep.subr.mxu0 %v375
        %1871 = vmatpush1.msra.mxu0 %v374
        %1872 = vmatprep.subr.mxu0 %v383
        %1873 = vmatpush1.msra.mxu0 %v382
        %1874 = vmatprep.subr.mxu0 %v391
        %1875 = vmatpush1.msra.mxu0 %v390
        %1876 = vmatprep.subr.mxu0 %v399
        %1877 = vmatpush1.msra.mxu0 %v398
        %1878 = vmatprep.subr.mxu0 %v407
        %1879 = vmatpush1.msra.mxu0 %v406
        %1880 = vmatprep.subr.mxu0 %v415
        %1881 = vmatpush1.msra.mxu0 %v414
        %1882 = vmatprep.subr.mxu0 %v423
        %1883 = vmatpush1.msra.mxu0 %v422
        %1884 = vmatprep.subr.mxu0 %v431
        %1885 = vmatpush1.msra.mxu0 %v430
        %1886 = vmatprep.subr.mxu0 %v439
        %1887 = vmatpush1.msra.mxu0 %v438
        %1888 = vmatprep.subr.mxu0 %v447
        %1889 = vmatpush1.msra.mxu0 %v446
        %1890 = vmatprep.subr.mxu0 %v455
        %1891 = vmatpush1.msra.mxu0 %v454
        %1892 = vmatprep.subr.mxu0 %v463
        %1893 = vmatpush1.msra.mxu0 %v462
        %1894 = vmatprep.subr.mxu0 %v471
        %1895 = vmatpush1.msra.mxu0 %v470
        %1896 = vmatprep.subr.mxu0 %v479
        %1897 = vmatpush1.msra.mxu0 %v478
        %1898 = vmatprep.subr.mxu0 %v487
        %1899 = vmatpush1.msra.mxu0 %v486
        %1900 = vmatprep.subr.mxu0 %v495
        %1901 = vmatpush1.msra.mxu0 %v494
        %1902 = vmatprep.subr.mxu0 %v503
        %1903 = vmatpush1.msra.mxu0 %v502
        %1904 = vmatprep.subr.mxu0 %v511
        %1905 = vmatpush1.msra.mxu0 %v510
        %1906 = vmatprep.subr.mxu0 %v519
        %1907 = vmatpush1.msra.mxu0 %v518
        %1908 = vmatprep.subr.mxu0 %v527
        %1909 = vmatpush1.msra.mxu0 %v526
        %1910 = vmatprep.subr.mxu0 %v535
        %1911 = vmatpush1.msra.mxu0 %v534
        %1912 = vmatprep.subr.mxu0 %v543
        %1913 = vmatpush1.msra.mxu0 %v542
        %1914 = vmatprep.subr.mxu0 %v551
        %1915 = vmatpush1.msra.mxu0 %v550
        %1916 = vmatprep.subr.mxu0 %v559
        %1917 = vmatpush1.msra.mxu0 %v558
        %1918 = vmatprep.subr.mxu0 %v567
        %1919 = vmatpush1.msra.mxu0 %v566
        %1920 = vmatprep.subr.mxu0 %v575
        %1921 = vmatpush1.msra.mxu0 %v574
        %1922 = vmatprep.subr.mxu0 %v583
        %1923 = vmatpush1.msra.mxu0 %v582
        %1924 = vmatprep.subr.mxu0 %v591
        %1925 = vmatpush1.msra.mxu0 %v590
        %1926 = vmatprep.subr.mxu0 %v599
        %1927 = vmatpush1.msra.mxu0 %v598
        %1928 = vmatprep.subr.mxu0 %v607
        %1929 = vmatpush1.msra.mxu0 %v606
        %1930 = vmatprep.subr.mxu0 %v615
        %1931 = vmatpush1.msra.mxu0 %v614
        %1932 = vmatprep.mubr.f32.mxu0 %v1275
        %1933 = vmatmul.mubr.f32.gmra.mrb[0].mxu0 %v1267
        %v1934 = vpop.f32.mrb[0].mxu0
        %v1935 = vadd.f32 0.0, %v1934
        %v1936 = vpop.f32.mrb[0].mxu0
        %v1937 = vadd.f32 0.0, %v1936
        %1938 = vdwg.mxu0
        %1939 = vmatprep.subr.mxu0 %v623
        %1940 = vmatpush1.msra.mxu0 %v622
        %1941 = vmatprep.subr.mxu0 %v631
        %1942 = vmatpush1.msra.mxu0 %v630
        %1943 = vmatprep.subr.mxu0 %v639
        %1944 = vmatpush1.msra.mxu0 %v638
        %1945 = vmatprep.subr.mxu0 %v647
        %1946 = vmatpush1.msra.mxu0 %v646
        %1947 = vmatprep.subr.mxu0 %v655
        %1948 = vmatpush1.msra.mxu0 %v654
        %1949 = vmatprep.subr.mxu0 %v663
        %1950 = vmatpush1.msra.mxu0 %v662
        %1951 = vmatprep.subr.mxu0 %v671
        %1952 = vmatpush1.msra.mxu0 %v670
        %1953 = vmatprep.subr.mxu0 %v679
        %1954 = vmatpush1.msra.mxu0 %v678
        %1955 = vmatprep.subr.mxu0 %v687
        %1956 = vmatpush1.msra.mxu0 %v686
        %1957 = vmatprep.subr.mxu0 %v695
        %1958 = vmatpush1.msra.mxu0 %v694
        %1959 = vmatprep.subr.mxu0 %v703
        %1960 = vmatpush1.msra.mxu0 %v702
        %1961 = vmatprep.subr.mxu0 %v711
        %1962 = vmatpush1.msra.mxu0 %v710
        %1963 = vmatprep.subr.mxu0 %v719
        %1964 = vmatpush1.msra.mxu0 %v718
        %1965 = vmatprep.subr.mxu0 %v727
        %1966 = vmatpush1.msra.mxu0 %v726
        %1967 = vmatprep.subr.mxu0 %v735
        %1968 = vmatpush1.msra.mxu0 %v734
        %1969 = vmatprep.subr.mxu0 %v743
        %1970 = vmatpush1.msra.mxu0 %v742
        %1971 = vmatprep.subr.mxu0 %v751
        %1972 = vmatpush1.msra.mxu0 %v750
        %1973 = vmatprep.subr.mxu0 %v759
        %1974 = vmatpush1.msra.mxu0 %v758
        %1975 = vmatprep.subr.mxu0 %v767
        %1976 = vmatpush1.msra.mxu0 %v766
        %1977 = vmatprep.subr.mxu0 %v775
        %1978 = vmatpush1.msra.mxu0 %v774
        %1979 = vmatprep.subr.mxu0 %v783
        %1980 = vmatpush1.msra.mxu0 %v782
        %1981 = vmatprep.subr.mxu0 %v791
        %1982 = vmatpush1.msra.mxu0 %v790
        %1983 = vmatprep.subr.mxu0 %v799
        %1984 = vmatpush1.msra.mxu0 %v798
        %1985 = vmatprep.subr.mxu0 %v807
        %1986 = vmatpush1.msra.mxu0 %v806
        %1987 = vmatprep.subr.mxu0 %v815
        %1988 = vmatpush1.msra.mxu0 %v814
        %1989 = vmatprep.subr.mxu0 %v823
        %1990 = vmatpush1.msra.mxu0 %v822
        %1991 = vmatprep.subr.mxu0 %v831
        %1992 = vmatpush1.msra.mxu0 %v830
        %1993 = vmatprep.subr.mxu0 %v839
        %1994 = vmatpush1.msra.mxu0 %v838
        %1995 = vmatprep.subr.mxu0 %v847
        %1996 = vmatpush1.msra.mxu0 %v846
        %1997 = vmatprep.subr.mxu0 %v855
        %1998 = vmatpush1.msra.mxu0 %v854
        %1999 = vmatprep.subr.mxu0 %v863
        %2000 = vmatpush1.msra.mxu0 %v862
        %2001 = vmatprep.subr.mxu0 %v871
        %2002 = vmatpush1.msra.mxu0 %v870
        %2003 = vmatprep.mubr.f32.mxu0 %v1276
        %2004 = vmatmul.mubr.f32.gmra.mrb[0].mxu0 %v1274
        %v2005 = vpop.f32.mrb[0].mxu0
        %v2006 = vadd.f32 %v1935, %v2005
        %v2007 = vpop.f32.mrb[0].mxu0
        %v2008 = vadd.f32 %v1937, %v2007
        %2009 = vdwg.mxu0
        %2010 = vmatprep.subr.mxu0 %v879
        %2011 = vmatpush1.msra.mxu0 %v878
        %2012 = vmatprep.subr.mxu0 %v887
        %2013 = vmatpush1.msra.mxu0 %v886
        %2014 = vmatprep.subr.mxu0 %v895
        %2015 = vmatpush1.msra.mxu0 %v894
        %2016 = vmatprep.subr.mxu0 %v903
        %2017 = vmatpush1.msra.mxu0 %v902
        %2018 = vmatprep.subr.mxu0 %v911
        %2019 = vmatpush1.msra.mxu0 %v910
        %2020 = vmatprep.subr.mxu0 %v919
        %2021 = vmatpush1.msra.mxu0 %v918
        %2022 = vmatprep.subr.mxu0 %v927
        %2023 = vmatpush1.msra.mxu0 %v926
        %2024 = vmatprep.subr.mxu0 %v935
        %2025 = vmatpush1.msra.mxu0 %v934
        %2026 = vmatprep.subr.mxu0 %v943
        %2027 = vmatpush1.msra.mxu0 %v942
        %2028 = vmatprep.subr.mxu0 %v951
        %2029 = vmatpush1.msra.mxu0 %v950
        %2030 = vmatprep.subr.mxu0 %v959
        %2031 = vmatpush1.msra.mxu0 %v958
        %2032 = vmatprep.subr.mxu0 %v967
        %2033 = vmatpush1.msra.mxu0 %v966
        %2034 = vmatprep.subr.mxu0 %v975
        %2035 = vmatpush1.msra.mxu0 %v974
        %2036 = vmatprep.subr.mxu0 %v983
        %2037 = vmatpush1.msra.mxu0 %v982
        %2038 = vmatprep.subr.mxu0 %v991
        %2039 = vmatpush1.msra.mxu0 %v990
        %2040 = vmatprep.subr.mxu0 %v999
        %2041 = vmatpush1.msra.mxu0 %v998
        %2042 = vmatprep.subr.mxu0 %v1007
        %2043 = vmatpush1.msra.mxu0 %v1006
        %2044 = vmatprep.subr.mxu0 %v1015
        %2045 = vmatpush1.msra.mxu0 %v1014
        %2046 = vmatprep.subr.mxu0 %v1023
        %2047 = vmatpush1.msra.mxu0 %v1022
        %2048 = vmatprep.subr.mxu0 %v1031
        %2049 = vmatpush1.msra.mxu0 %v1030
        %2050 = vmatprep.subr.mxu0 %v1039
        %2051 = vmatpush1.msra.mxu0 %v1038
        %2052 = vmatprep.subr.mxu0 %v1047
        %2053 = vmatpush1.msra.mxu0 %v1046
        %2054 = vmatprep.subr.mxu0 %v1055
        %2055 = vmatpush1.msra.mxu0 %v1054
        %2056 = vmatprep.subr.mxu0 %v1063
        %2057 = vmatpush1.msra.mxu0 %v1062
        %2058 = vmatprep.subr.mxu0 %v1071
        %2059 = vmatpush1.msra.mxu0 %v1070
        %2060 = vmatprep.subr.mxu0 %v1079
        %2061 = vmatpush1.msra.mxu0 %v1078
        %2062 = vmatprep.subr.mxu0 %v1087
        %2063 = vmatpush1.msra.mxu0 %v1086
        %2064 = vmatprep.subr.mxu0 %v1095
        %2065 = vmatpush1.msra.mxu0 %v1094
        %2066 = vmatprep.subr.mxu0 %v1103
        %2067 = vmatpush1.msra.mxu0 %v1102
        %2068 = vmatprep.subr.mxu0 %v1111
        %2069 = vmatpush1.msra.mxu0 %v1110
        %2070 = vmatprep.subr.mxu0 %v1119
        %2071 = vmatpush1.msra.mxu0 %v1118
        %2072 = vmatprep.subr.mxu0 %v1127
        %2073 = vmatpush1.msra.mxu0 %v1126
        %2074 = vmatprep.mubr.f32.mxu0 %v1292
        %2075 = vmatmul.mubr.f32.gmra.mrb[0].mxu0 %v1284
        %v2076 = vpop.f32.mrb[0].mxu0
        %v2077 = vadd.f32 %v2006, %v2076
        %v2078 = vpop.f32.mrb[0].mxu0
        %v2079 = vadd.f32 %v2008, %v2078
        %2080 = vdwg.mxu0
        %2081 = vmatprep.subr.mxu0 %v1135
        %2082 = vmatpush1.msra.mxu0 %v1134
        %2083 = vmatprep.subr.mxu0 %v1143
        %2084 = vmatpush1.msra.mxu0 %v1142
        %2085 = vmatprep.subr.mxu0 %v1151
        %2086 = vmatpush1.msra.mxu0 %v1150
        %2087 = vmatprep.subr.mxu0 %v1159
        %2088 = vmatpush1.msra.mxu0 %v1158
        %2089 = vmatprep.subr.mxu0 %v1167
        %2090 = vmatpush1.msra.mxu0 %v1166
        %2091 = vmatprep.subr.mxu0 %v1175
        %2092 = vmatpush1.msra.mxu0 %v1174
        %2093 = vmatprep.subr.mxu0 %v1183
        %2094 = vmatpush1.msra.mxu0 %v1182
        %2095 = vmatprep.subr.mxu0 %v1191
        %2096 = vmatpush1.msra.mxu0 %v1190
        %2097 = vmatprep.subr.mxu0 %v1199
        %2098 = vmatpush1.msra.mxu0 %v1198
        %2099 = vmatprep.subr.mxu0 %v1207
        %2100 = vmatpush1.msra.mxu0 %v1206
        %2101 = vmatprep.subr.mxu0 %v1215
        %2102 = vmatpush1.msra.mxu0 %v1214
        %2103 = vmatprep.subr.mxu0 %v1223
        %2104 = vmatpush1.msra.mxu0 %v1222
        %2105 = vmatprep.subr.mxu0 %v1231
        %2106 = vmatpush1.msra.mxu0 %v1230
        %2107 = vmatprep.subr.mxu0 %v1239
        %2108 = vmatpush1.msra.mxu0 %v1238
        %2109 = vmatprep.subr.mxu0 %v1247
        %2110 = vmatpush1.msra.mxu0 %v1246
        %2111 = vmatprep.subr.mxu0 %v1255
        %2112 = vmatpush1.msra.mxu0 %v1254
        %2113 = vmatprep.subr.mxu0 0.0
        %2114 = vmatpush1.msra.mxu0 0.0
        %2115 = vmatprep.subr.mxu0 0.0
        %2116 = vmatpush1.msra.mxu0 0.0
        %2117 = vmatprep.subr.mxu0 0.0
        %2118 = vmatpush1.msra.mxu0 0.0
        %2119 = vmatprep.subr.mxu0 0.0
        %2120 = vmatpush1.msra.mxu0 0.0
        %2121 = vmatprep.subr.mxu0 0.0
        %2122 = vmatpush1.msra.mxu0 0.0
        %2123 = vmatprep.subr.mxu0 0.0
        %2124 = vmatpush1.msra.mxu0 0.0
        %2125 = vmatprep.subr.mxu0 0.0
        %2126 = vmatpush1.msra.mxu0 0.0
        %2127 = vmatprep.subr.mxu0 0.0
        %2128 = vmatpush1.msra.mxu0 0.0
        %2129 = vmatprep.subr.mxu0 0.0
        %2130 = vmatpush1.msra.mxu0 0.0
        %2131 = vmatprep.subr.mxu0 0.0
        %2132 = vmatpush1.msra.mxu0 0.0
        %2133 = vmatprep.subr.mxu0 0.0
        %2134 = vmatpush1.msra.mxu0 0.0
        %2135 = vmatprep.subr.mxu0 0.0
        %2136 = vmatpush1.msra.mxu0 0.0
        %2137 = vmatprep.subr.mxu0 0.0
        %2138 = vmatpush1.msra.mxu0 0.0
        %2139 = vmatprep.subr.mxu0 0.0
        %2140 = vmatpush1.msra.mxu0 0.0
        %2141 = vmatprep.subr.mxu0 0.0
        %2142 = vmatpush1.msra.mxu0 0.0
        %2143 = vmatprep.subr.mxu0 0.0
        %2144 = vmatpush1.msra.mxu0 0.0
        %2145 = vmatprep.mubr.f32.mxu0 0.0
        %2146 = vmatmul.mubr.f32.gmra.mrb[0].mxu0 %v1291
        %v2147 = vpop.f32.mrb[0].mxu0
        %v2148 = vadd.f32 %v2077, %v2147
        %v2149 = vpop.f32.mrb[0].mxu0
        %v2150 = vadd.f32 %v2079, %v2149
        %2151 = vdwg.mxu0
        %2152 = vmatprep.subr.mxu0 %v369
        %2153 = vmatpush1.msra.mxu0 %v368
        %2154 = vmatprep.subr.mxu0 %v377
        %2155 = vmatpush1.msra.mxu0 %v376
        %2156 = vmatprep.subr.mxu0 %v385
        %2157 = vmatpush1.msra.mxu0 %v384
        %2158 = vmatprep.subr.mxu0 %v393
        %2159 = vmatpush1.msra.mxu0 %v392
        %2160 = vmatprep.subr.mxu0 %v401
        %2161 = vmatpush1.msra.mxu0 %v400
        %2162 = vmatprep.subr.mxu0 %v409
        %2163 = vmatpush1.msra.mxu0 %v408
        %2164 = vmatprep.subr.mxu0 %v417
        %2165 = vmatpush1.msra.mxu0 %v416
        %2166 = vmatprep.subr.mxu0 %v425
        %2167 = vmatpush1.msra.mxu0 %v424
        %2168 = vmatprep.subr.mxu0 %v433
        %2169 = vmatpush1.msra.mxu0 %v432
        %2170 = vmatprep.subr.mxu0 %v441
        %2171 = vmatpush1.msra.mxu0 %v440
        %2172 = vmatprep.subr.mxu0 %v449
        %2173 = vmatpush1.msra.mxu0 %v448
        %2174 = vmatprep.subr.mxu0 %v457
        %2175 = vmatpush1.msra.mxu0 %v456
        %2176 = vmatprep.subr.mxu0 %v465
        %2177 = vmatpush1.msra.mxu0 %v464
        %2178 = vmatprep.subr.mxu0 %v473
        %2179 = vmatpush1.msra.mxu0 %v472
        %2180 = vmatprep.subr.mxu0 %v481
        %2181 = vmatpush1.msra.mxu0 %v480
        %2182 = vmatprep.subr.mxu0 %v489
        %2183 = vmatpush1.msra.mxu0 %v488
        %2184 = vmatprep.subr.mxu0 %v497
        %2185 = vmatpush1.msra.mxu0 %v496
        %2186 = vmatprep.subr.mxu0 %v505
        %2187 = vmatpush1.msra.mxu0 %v504
        %2188 = vmatprep.subr.mxu0 %v513
        %2189 = vmatpush1.msra.mxu0 %v512
        %2190 = vmatprep.subr.mxu0 %v521
        %2191 = vmatpush1.msra.mxu0 %v520
        %2192 = vmatprep.subr.mxu0 %v529
        %2193 = vmatpush1.msra.mxu0 %v528
        %2194 = vmatprep.subr.mxu0 %v537
        %2195 = vmatpush1.msra.mxu0 %v536
        %2196 = vmatprep.subr.mxu0 %v545
        %2197 = vmatpush1.msra.mxu0 %v544
        %2198 = vmatprep.subr.mxu0 %v553
        %2199 = vmatpush1.msra.mxu0 %v552
        %2200 = vmatprep.subr.mxu0 %v561
        %2201 = vmatpush1.msra.mxu0 %v560
        %2202 = vmatprep.subr.mxu0 %v569
        %2203 = vmatpush1.msra.mxu0 %v568
        %2204 = vmatprep.subr.mxu0 %v577
        %2205 = vmatpush1.msra.mxu0 %v576
        %2206 = vmatprep.subr.mxu0 %v585
        %2207 = vmatpush1.msra.mxu0 %v584
        %2208 = vmatprep.subr.mxu0 %v593
        %2209 = vmatpush1.msra.mxu0 %v592
        %2210 = vmatprep.subr.mxu0 %v601
        %2211 = vmatpush1.msra.mxu0 %v600
        %2212 = vmatprep.subr.mxu0 %v609
        %2213 = vmatpush1.msra.mxu0 %v608
        %2214 = vmatprep.subr.mxu0 %v617
        %2215 = vmatpush1.msra.mxu0 %v616
        %2216 = vmatprep.mubr.f32.mxu0 %v1275
        %2217 = vmatmul.mubr.f32.gmra.mrb[0].mxu0 %v1267
        %v2218 = vpop.f32.mrb[0].mxu0
        %v2219 = vadd.f32 0.0, %v2218
        %v2220 = vpop.f32.mrb[0].mxu0
        %v2221 = vadd.f32 0.0, %v2220
        %2222 = vdwg.mxu0
        %2223 = vmatprep.subr.mxu0 %v625
        %2224 = vmatpush1.msra.mxu0 %v624
        %2225 = vmatprep.subr.mxu0 %v633
        %2226 = vmatpush1.msra.mxu0 %v632
        %2227 = vmatprep.subr.mxu0 %v641
        %2228 = vmatpush1.msra.mxu0 %v640
        %2229 = vmatprep.subr.mxu0 %v649
        %2230 = vmatpush1.msra.mxu0 %v648
        %2231 = vmatprep.subr.mxu0 %v657
        %2232 = vmatpush1.msra.mxu0 %v656
        %2233 = vmatprep.subr.mxu0 %v665
        %2234 = vmatpush1.msra.mxu0 %v664
        %2235 = vmatprep.subr.mxu0 %v673
        %2236 = vmatpush1.msra.mxu0 %v672
        %2237 = vmatprep.subr.mxu0 %v681
        %2238 = vmatpush1.msra.mxu0 %v680
        %2239 = vmatprep.subr.mxu0 %v689
        %2240 = vmatpush1.msra.mxu0 %v688
        %2241 = vmatprep.subr.mxu0 %v697
        %2242 = vmatpush1.msra.mxu0 %v696
        %2243 = vmatprep.subr.mxu0 %v705
        %2244 = vmatpush1.msra.mxu0 %v704
        %2245 = vmatprep.subr.mxu0 %v713
        %2246 = vmatpush1.msra.mxu0 %v712
        %2247 = vmatprep.subr.mxu0 %v721
        %2248 = vmatpush1.msra.mxu0 %v720
        %2249 = vmatprep.subr.mxu0 %v729
        %2250 = vmatpush1.msra.mxu0 %v728
        %2251 = vmatprep.subr.mxu0 %v737
        %2252 = vmatpush1.msra.mxu0 %v736
        %2253 = vmatprep.subr.mxu0 %v745
        %2254 = vmatpush1.msra.mxu0 %v744
        %2255 = vmatprep.subr.mxu0 %v753
        %2256 = vmatpush1.msra.mxu0 %v752
        %2257 = vmatprep.subr.mxu0 %v761
        %2258 = vmatpush1.msra.mxu0 %v760
        %2259 = vmatprep.subr.mxu0 %v769
        %2260 = vmatpush1.msra.mxu0 %v768
        %2261 = vmatprep.subr.mxu0 %v777
        %2262 = vmatpush1.msra.mxu0 %v776
        %2263 = vmatprep.subr.mxu0 %v785
        %2264 = vmatpush1.msra.mxu0 %v784
        %2265 = vmatprep.subr.mxu0 %v793
        %2266 = vmatpush1.msra.mxu0 %v792
        %2267 = vmatprep.subr.mxu0 %v801
        %2268 = vmatpush1.msra.mxu0 %v800
        %2269 = vmatprep.subr.mxu0 %v809
        %2270 = vmatpush1.msra.mxu0 %v808
        %2271 = vmatprep.subr.mxu0 %v817
        %2272 = vmatpush1.msra.mxu0 %v816
        %2273 = vmatprep.subr.mxu0 %v825
        %2274 = vmatpush1.msra.mxu0 %v824
        %2275 = vmatprep.subr.mxu0 %v833
        %2276 = vmatpush1.msra.mxu0 %v832
        %2277 = vmatprep.subr.mxu0 %v841
        %2278 = vmatpush1.msra.mxu0 %v840
        %2279 = vmatprep.subr.mxu0 %v849
        %2280 = vmatpush1.msra.mxu0 %v848
        %2281 = vmatprep.subr.mxu0 %v857
        %2282 = vmatpush1.msra.mxu0 %v856
        %2283 = vmatprep.subr.mxu0 %v865
        %2284 = vmatpush1.msra.mxu0 %v864
        %2285 = vmatprep.subr.mxu0 %v873
        %2286 = vmatpush1.msra.mxu0 %v872
        %2287 = vmatprep.mubr.f32.mxu0 %v1276
        %2288 = vmatmul.mubr.f32.gmra.mrb[0].mxu0 %v1274
        %v2289 = vpop.f32.mrb[0].mxu0
        %v2290 = vadd.f32 %v2219, %v2289
        %v2291 = vpop.f32.mrb[0].mxu0
        %v2292 = vadd.f32 %v2221, %v2291
        %2293 = vdwg.mxu0
        %2294 = vmatprep.subr.mxu0 %v881
        %2295 = vmatpush1.msra.mxu0 %v880
        %2296 = vmatprep.subr.mxu0 %v889
        %2297 = vmatpush1.msra.mxu0 %v888
        %2298 = vmatprep.subr.mxu0 %v897
        %2299 = vmatpush1.msra.mxu0 %v896
        %2300 = vmatprep.subr.mxu0 %v905
        %2301 = vmatpush1.msra.mxu0 %v904
        %2302 = vmatprep.subr.mxu0 %v913
        %2303 = vmatpush1.msra.mxu0 %v912
        %2304 = vmatprep.subr.mxu0 %v921
        %2305 = vmatpush1.msra.mxu0 %v920
        %2306 = vmatprep.subr.mxu0 %v929
        %2307 = vmatpush1.msra.mxu0 %v928
        %2308 = vmatprep.subr.mxu0 %v937
        %2309 = vmatpush1.msra.mxu0 %v936
        %2310 = vmatprep.subr.mxu0 %v945
        %2311 = vmatpush1.msra.mxu0 %v944
        %2312 = vmatprep.subr.mxu0 %v953
        %2313 = vmatpush1.msra.mxu0 %v952
        %2314 = vmatprep.subr.mxu0 %v961
        %2315 = vmatpush1.msra.mxu0 %v960
        %2316 = vmatprep.subr.mxu0 %v969
        %2317 = vmatpush1.msra.mxu0 %v968
        %2318 = vmatprep.subr.mxu0 %v977
        %2319 = vmatpush1.msra.mxu0 %v976
        %2320 = vmatprep.subr.mxu0 %v985
        %2321 = vmatpush1.msra.mxu0 %v984
        %2322 = vmatprep.subr.mxu0 %v993
        %2323 = vmatpush1.msra.mxu0 %v992
        %2324 = vmatprep.subr.mxu0 %v1001
        %2325 = vmatpush1.msra.mxu0 %v1000
        %2326 = vmatprep.subr.mxu0 %v1009
        %2327 = vmatpush1.msra.mxu0 %v1008
        %2328 = vmatprep.subr.mxu0 %v1017
        %2329 = vmatpush1.msra.mxu0 %v1016
        %2330 = vmatprep.subr.mxu0 %v1025
        %2331 = vmatpush1.msra.mxu0 %v1024
        %2332 = vmatprep.subr.mxu0 %v1033
        %2333 = vmatpush1.msra.mxu0 %v1032
        %2334 = vmatprep.subr.mxu0 %v1041
        %2335 = vmatpush1.msra.mxu0 %v1040
        %2336 = vmatprep.subr.mxu0 %v1049
        %2337 = vmatpush1.msra.mxu0 %v1048
        %2338 = vmatprep.subr.mxu0 %v1057
        %2339 = vmatpush1.msra.mxu0 %v1056
        %2340 = vmatprep.subr.mxu0 %v1065
        %2341 = vmatpush1.msra.mxu0 %v1064
        %2342 = vmatprep.subr.mxu0 %v1073
        %2343 = vmatpush1.msra.mxu0 %v1072
        %2344 = vmatprep.subr.mxu0 %v1081
        %2345 = vmatpush1.msra.mxu0 %v1080
        %2346 = vmatprep.subr.mxu0 %v1089
        %2347 = vmatpush1.msra.mxu0 %v1088
        %2348 = vmatprep.subr.mxu0 %v1097
        %2349 = vmatpush1.msra.mxu0 %v1096
        %2350 = vmatprep.subr.mxu0 %v1105
        %2351 = vmatpush1.msra.mxu0 %v1104
        %2352 = vmatprep.subr.mxu0 %v1113
        %2353 = vmatpush1.msra.mxu0 %v1112
        %2354 = vmatprep.subr.mxu0 %v1121
        %2355 = vmatpush1.msra.mxu0 %v1120
        %2356 = vmatprep.subr.mxu0 %v1129
        %2357 = vmatpush1.msra.mxu0 %v1128
        %2358 = vmatprep.mubr.f32.mxu0 %v1292
        %2359 = vmatmul.mubr.f32.gmra.mrb[0].mxu0 %v1284
        %v2360 = vpop.f32.mrb[0].mxu0
        %v2361 = vadd.f32 %v2290, %v2360
        %v2362 = vpop.f32.mrb[0].mxu0
        %v2363 = vadd.f32 %v2292, %v2362
        %2364 = vdwg.mxu0
        %2365 = vmatprep.subr.mxu0 %v1137
        %2366 = vmatpush1.msra.mxu0 %v1136
        %2367 = vmatprep.subr.mxu0 %v1145
        %2368 = vmatpush1.msra.mxu0 %v1144
        %2369 = vmatprep.subr.mxu0 %v1153
        %2370 = vmatpush1.msra.mxu0 %v1152
        %2371 = vmatprep.subr.mxu0 %v1161
        %2372 = vmatpush1.msra.mxu0 %v1160
        %2373 = vmatprep.subr.mxu0 %v1169
        %2374 = vmatpush1.msra.mxu0 %v1168
        %2375 = vmatprep.subr.mxu0 %v1177
        %2376 = vmatpush1.msra.mxu0 %v1176
        %2377 = vmatprep.subr.mxu0 %v1185
        %2378 = vmatpush1.msra.mxu0 %v1184
        %2379 = vmatprep.subr.mxu0 %v1193
        %2380 = vmatpush1.msra.mxu0 %v1192
        %2381 = vmatprep.subr.mxu0 %v1201
        %2382 = vmatpush1.msra.mxu0 %v1200
        %2383 = vmatprep.subr.mxu0 %v1209
        %2384 = vmatpush1.msra.mxu0 %v1208
        %2385 = vmatprep.subr.mxu0 %v1217
        %2386 = vmatpush1.msra.mxu0 %v1216
        %2387 = vmatprep.subr.mxu0 %v1225
        %2388 = vmatpush1.msra.mxu0 %v1224
        %2389 = vmatprep.subr.mxu0 %v1233
        %2390 = vmatpush1.msra.mxu0 %v1232
        %2391 = vmatprep.subr.mxu0 %v1241
        %2392 = vmatpush1.msra.mxu0 %v1240
        %2393 = vmatprep.subr.mxu0 %v1249
        %2394 = vmatpush1.msra.mxu0 %v1248
        %2395 = vmatprep.subr.mxu0 %v1257
        %2396 = vmatpush1.msra.mxu0 %v1256
        %2397 = vmatprep.subr.mxu0 0.0
        %2398 = vmatpush1.msra.mxu0 0.0
        %2399 = vmatprep.subr.mxu0 0.0
        %2400 = vmatpush1.msra.mxu0 0.0
        %2401 = vmatprep.subr.mxu0 0.0
        %2402 = vmatpush1.msra.mxu0 0.0
        %2403 = vmatprep.subr.mxu0 0.0
        %2404 = vmatpush1.msra.mxu0 0.0
        %2405 = vmatprep.subr.mxu0 0.0
        %2406 = vmatpush1.msra.mxu0 0.0
        %2407 = vmatprep.subr.mxu0 0.0
        %2408 = vmatpush1.msra.mxu0 0.0
        %2409 = vmatprep.subr.mxu0 0.0
        %2410 = vmatpush1.msra.mxu0 0.0
        %2411 = vmatprep.subr.mxu0 0.0
        %2412 = vmatpush1.msra.mxu0 0.0
        %2413 = vmatprep.subr.mxu0 0.0
        %2414 = vmatpush1.msra.mxu0 0.0
        %2415 = vmatprep.subr.mxu0 0.0
        %2416 = vmatpush1.msra.mxu0 0.0
        %2417 = vmatprep.subr.mxu0 0.0
        %2418 = vmatpush1.msra.mxu0 0.0
        %2419 = vmatprep.subr.mxu0 0.0
        %2420 = vmatpush1.msra.mxu0 0.0
        %2421 = vmatprep.subr.mxu0 0.0
        %2422 = vmatpush1.msra.mxu0 0.0
        %2423 = vmatprep.subr.mxu0 0.0
        %2424 = vmatpush1.msra.mxu0 0.0
        %2425 = vmatprep.subr.mxu0 0.0
        %2426 = vmatpush1.msra.mxu0 0.0
        %2427 = vmatprep.subr.mxu0 0.0
        %2428 = vmatpush1.msra.mxu0 0.0
        %2429 = vmatprep.mubr.f32.mxu0 0.0
        %2430 = vmatmul.mubr.f32.gmra.mrb[0].mxu0 %v1291
        %v2431 = vpop.f32.mrb[0].mxu0
        %v2432 = vadd.f32 %v2361, %v2431
        %v2433 = vpop.f32.mrb[0].mxu0
        %v2434 = vadd.f32 %v2363, %v2433
        %2435 = vdwg.mxu0
        %p2436 = scmp.eq.s32.totalorder %s25, 0
        // Predicated region
        $region69: #{discriminator_forward.5} parent=47 // pred_check
          %p2437 = pneg %p2436
        $region70: #{discriminator_forward.5} parent=47 // pred_check_branch
          %2439 = sbr.rel (%p2437) target = $region72
        $region71: #{discriminator_forward.5} parent=47 // pred_region
          %v2448 = vcombine.low %v1580, %v1582
          %v2449 = vcombine.low %v1864, %v1866
          %v2451 = vunpack.c.l.s4 1983009808
          %v2452 = vunpack.c.0.s8 %v2451
          %v2453 = vlaneseq
          %v2454 = vshrl.u32 %v2453, 7
          %v2455 = vsub.s32 %v2452, %v2454
          %v2456 = vrot.slane %v2448, %v2455
          %v2458 = vunpack.c.l.s4 1983009808
          %v2459 = vunpack.c.0.s8 %v2458
          %v2460 = vlaneseq
          %v2461 = vshrl.u32 %v2460, 7
          %v2462 = vsub.s32 %v2459, %v2461
          %v2463 = vrot.slane %v2449, %v2462
          %v2464 = vcombine.low %v2456, %v2463
          %v2465 = vcombine.low %v2148, %v2150
          %v2466 = vcombine.low %v2432, %v2434
          %v2468 = vunpack.c.l.s4 1983009808
          %v2469 = vunpack.c.0.s8 %v2468
          %v2470 = vlaneseq
          %v2471 = vshrl.u32 %v2470, 7
          %v2472 = vsub.s32 %v2469, %v2471
          %v2473 = vrot.slane %v2465, %v2472
          %v2475 = vunpack.c.l.s4 1983009808
          %v2476 = vunpack.c.0.s8 %v2475
          %v2477 = vlaneseq
          %v2478 = vshrl.u32 %v2477, 7
          %v2479 = vsub.s32 %v2476, %v2478
          %v2480 = vrot.slane %v2466, %v2479
          %v2481 = vcombine.low %v2473, %v2480
          %2484 = vst [vmem:[#allocation2] sm:$0xff] %v2464
          %2485 = vst [vmem:[#allocation2 + $0x8] sm:$0xff] %v2481
        $region72: #{discriminator_forward.5} parent=47 // pred_fallthru
          _
        %p2486 = scmp.gt.s32.totalorder %s25, 0
        // Predicated region
        $region73: #{discriminator_forward.5} parent=47 // pred_check
          %p2487 = pneg %p2486
        $region74: #{discriminator_forward.5} parent=47 // pred_check_branch
          %2489 = sbr.rel (%p2487) target = $region76
        $region75: #{discriminator_forward.5} parent=47 // pred_region
          %v2490 = vld [vmem:[#allocation2] sm:$0xff]
          %v2491 = vld [vmem:[#allocation2 + $0x8] sm:$0xff]
          %v2500 = vcombine.low %v1580, %v1582
          %v2501 = vcombine.low %v1864, %v1866
          %v2503 = vunpack.c.l.s4 1983009808
          %v2504 = vunpack.c.0.s8 %v2503
          %v2505 = vlaneseq
          %v2506 = vshrl.u32 %v2505, 7
          %v2507 = vsub.s32 %v2504, %v2506
          %v2508 = vrot.slane %v2500, %v2507
          %v2510 = vunpack.c.l.s4 1983009808
          %v2511 = vunpack.c.0.s8 %v2510
          %v2512 = vlaneseq
          %v2513 = vshrl.u32 %v2512, 7
          %v2514 = vsub.s32 %v2511, %v2513
          %v2515 = vrot.slane %v2501, %v2514
          %v2516 = vcombine.low %v2508, %v2515
          %v2517 = vcombine.low %v2148, %v2150
          %v2518 = vcombine.low %v2432, %v2434
          %v2520 = vunpack.c.l.s4 1983009808
          %v2521 = vunpack.c.0.s8 %v2520
          %v2522 = vlaneseq
          %v2523 = vshrl.u32 %v2522, 7
          %v2524 = vsub.s32 %v2521, %v2523
          %v2525 = vrot.slane %v2517, %v2524
          %v2527 = vunpack.c.l.s4 1983009808
          %v2528 = vunpack.c.0.s8 %v2527
          %v2529 = vlaneseq
          %v2530 = vshrl.u32 %v2529, 7
          %v2531 = vsub.s32 %v2528, %v2530
          %v2532 = vrot.slane %v2518, %v2531
          %v2533 = vcombine.low %v2525, %v2532
          %v2536 = vadd.f32 %v2490, %v2516
          %v2537 = vadd.f32 %v2491, %v2533
          %2538 = vst [vmem:[#allocation2] sm:$0xff] %v2536
          %2539 = vst [vmem:[#allocation2 + $0x8] sm:$0xff] %v2537
        $region76: #{discriminator_forward.5} parent=47 // pred_fallthru
          _
        %p2540 = scmp.eq.s32.totalorder %s25, 6
        // Predicated region
        $region77: #{discriminator_forward.5} parent=47 // pred_check
          %p2541 = pneg %p2540
        $region78: #{discriminator_forward.5} parent=47 // pred_check_branch
          %2543 = sbr.rel (%p2541) target = $region80
        $region79: #{discriminator_forward.5} parent=47 // pred_region
          %v2544 = vld [vmem:[#allocation2] sm:$0xff]
          %v2545 = vld [vmem:[#allocation2 + $0x8] sm:$0xff]
          %v2546 = vld [vmem:[#allocation6] sm:$0xff]
          %v2548 = vlaneseq
          %v2549 = vshrl.u32 %v2548, 7
          %v2550 = vsub.s32 0, %v2549
          %v2551 = vrot.slane %v2546, %v2550
          %v2552 = vlaneseq
          %v2553 = vshrl.u32 %v2552, 7
          %v2554 = vsub.s32 1, %v2553
          %v2555 = vrot.slane %v2546, %v2554
          %v2556 = vlaneseq
          %v2557 = vshrl.u32 %v2556, 7
          %v2558 = vsub.s32 2, %v2557
          %v2559 = vrot.slane %v2546, %v2558
          %v2560 = vlaneseq
          %v2561 = vshrl.u32 %v2560, 7
          %v2562 = vsub.s32 3, %v2561
          %v2563 = vrot.slane %v2546, %v2562
          %v2564 = vlaneseq
          %v2565 = vshrl.u32 %v2564, 7
          %v2566 = vsub.s32 4, %v2565
          %v2567 = vrot.slane %v2546, %v2566
          %v2568 = vlaneseq
          %v2569 = vshrl.u32 %v2568, 7
          %v2570 = vsub.s32 5, %v2569
          %v2571 = vrot.slane %v2546, %v2570
          %v2572 = vlaneseq
          %v2573 = vshrl.u32 %v2572, 7
          %v2574 = vsub.s32 6, %v2573
          %v2575 = vrot.slane %v2546, %v2574
          %v2576 = vlaneseq
          %v2577 = vshrl.u32 %v2576, 7
          %v2578 = vsub.s32 7, %v2577
          %v2579 = vrot.slane %v2546, %v2578
          %v2580 = vcombine.low %v2551, %v2555
          %v2581 = vcombine.low %v2559, %v2563
          %v2583 = vunpack.c.l.s4 1983009808
          %v2584 = vunpack.c.0.s8 %v2583
          %v2585 = vlaneseq
          %v2586 = vshrl.u32 %v2585, 7
          %v2587 = vsub.s32 %v2584, %v2586
          %v2588 = vrot.slane %v2580, %v2587
          %v2590 = vunpack.c.l.s4 1983009808
          %v2591 = vunpack.c.0.s8 %v2590
          %v2592 = vlaneseq
          %v2593 = vshrl.u32 %v2592, 7
          %v2594 = vsub.s32 %v2591, %v2593
          %v2595 = vrot.slane %v2581, %v2594
          %v2596 = vcombine.low %v2588, %v2595
          %v2597 = vcombine.low %v2567, %v2571
          %v2598 = vcombine.low %v2575, %v2579
          %v2600 = vunpack.c.l.s4 1983009808
          %v2601 = vunpack.c.0.s8 %v2600
          %v2602 = vlaneseq
          %v2603 = vshrl.u32 %v2602, 7
          %v2604 = vsub.s32 %v2601, %v2603
          %v2605 = vrot.slane %v2597, %v2604
          %v2607 = vunpack.c.l.s4 1983009808
          %v2608 = vunpack.c.0.s8 %v2607
          %v2609 = vlaneseq
          %v2610 = vshrl.u32 %v2609, 7
          %v2611 = vsub.s32 %v2608, %v2610
          %v2612 = vrot.slane %v2598, %v2611
          %v2613 = vcombine.low %v2605, %v2612
          %v2616 = vadd.f32 %v2544, %v2596
          %v2617 = vadd.f32 %v2545, %v2613
          %v2620 = vcombine.high %v2616, %v2616
          %v2622 = vunpack.c.l.s4 1983009808
          %v2623 = vunpack.c.0.s8 %v2622
          %v2624 = vlaneseq
          %v2625 = vshrl.u32 %v2624, 7
          %v2626 = vsub.s32 %v2623, %v2625
          %v2627 = vrot.slane %v2616, %v2626
          %v2629 = vunpack.c.l.s4 1983009808
          %v2630 = vunpack.c.0.s8 %v2629
          %v2631 = vlaneseq
          %v2632 = vshrl.u32 %v2631, 7
          %v2633 = vsub.s32 %v2630, %v2632
          %v2634 = vrot.slane %v2620, %v2633
          %v2635 = vcombine.high %v2627, %v2627
          %v2636 = vcombine.high %v2634, %v2634
          %v2637 = vcombine.high %v2617, %v2617
          %v2639 = vunpack.c.l.s4 1983009808
          %v2640 = vunpack.c.0.s8 %v2639
          %v2641 = vlaneseq
          %v2642 = vshrl.u32 %v2641, 7
          %v2643 = vsub.s32 %v2640, %v2642
          %v2644 = vrot.slane %v2617, %v2643
          %v2646 = vunpack.c.l.s4 1983009808
          %v2647 = vunpack.c.0.s8 %v2646
          %v2648 = vlaneseq
          %v2649 = vshrl.u32 %v2648, 7
          %v2650 = vsub.s32 %v2647, %v2649
          %v2651 = vrot.slane %v2637, %v2650
          %v2652 = vcombine.high %v2644, %v2644
          %v2653 = vcombine.high %v2651, %v2651
          %vm2662 = vcmask 1041408
          %v2663 = vsel %vm2662, %v2627, 0.0
          %v2664 = vrot.slane %v2663, 4
          %v2665 = vadd.f32 %v2663, %v2664
          %v2666 = vrot.slane %v2665, 2
          %v2667 = vadd.f32 %v2665, %v2666
          %v2668 = vrot.slane %v2667, 1
          %v2669 = vadd.f32 %v2667, %v2668
          %v2670 = vsel %vm2662, %v2635, 0.0
          %v2671 = vrot.slane %v2670, 4
          %v2672 = vadd.f32 %v2670, %v2671
          %v2673 = vrot.slane %v2672, 2
          %v2674 = vadd.f32 %v2672, %v2673
          %v2675 = vrot.slane %v2674, 1
          %v2676 = vadd.f32 %v2674, %v2675
          %v2677 = vsel %vm2662, %v2634, 0.0
          %v2678 = vrot.slane %v2677, 4
          %v2679 = vadd.f32 %v2677, %v2678
          %v2680 = vrot.slane %v2679, 2
          %v2681 = vadd.f32 %v2679, %v2680
          %v2682 = vrot.slane %v2681, 1
          %v2683 = vadd.f32 %v2681, %v2682
          %v2684 = vsel %vm2662, %v2636, 0.0
          %v2685 = vrot.slane %v2684, 4
          %v2686 = vadd.f32 %v2684, %v2685
          %v2687 = vrot.slane %v2686, 2
          %v2688 = vadd.f32 %v2686, %v2687
          %v2689 = vrot.slane %v2688, 1
          %v2690 = vadd.f32 %v2688, %v2689
          %v2691 = vsel %vm2662, %v2644, 0.0
          %v2692 = vrot.slane %v2691, 4
          %v2693 = vadd.f32 %v2691, %v2692
          %v2694 = vrot.slane %v2693, 2
          %v2695 = vadd.f32 %v2693, %v2694
          %v2696 = vrot.slane %v2695, 1
          %v2697 = vadd.f32 %v2695, %v2696
          %v2698 = vsel %vm2662, %v2652, 0.0
          %v2699 = vrot.slane %v2698, 4
          %v2700 = vadd.f32 %v2698, %v2699
          %v2701 = vrot.slane %v2700, 2
          %v2702 = vadd.f32 %v2700, %v2701
          %v2703 = vrot.slane %v2702, 1
          %v2704 = vadd.f32 %v2702, %v2703
          %v2705 = vsel %vm2662, %v2651, 0.0
          %v2706 = vrot.slane %v2705, 4
          %v2707 = vadd.f32 %v2705, %v2706
          %v2708 = vrot.slane %v2707, 2
          %v2709 = vadd.f32 %v2707, %v2708
          %v2710 = vrot.slane %v2709, 1
          %v2711 = vadd.f32 %v2709, %v2710
          %v2712 = vsel %vm2662, %v2653, 0.0
          %v2713 = vrot.slane %v2712, 4
          %v2714 = vadd.f32 %v2712, %v2713
          %v2715 = vrot.slane %v2714, 2
          %v2716 = vadd.f32 %v2714, %v2715
          %v2717 = vrot.slane %v2716, 1
          %v2718 = vadd.f32 %v2716, %v2717
          %v2719 = vrcp.pop 2.0
          %v2720 = vmul.f32 %v2669, %v2719
          %v2721 = vmul.f32 %v2676, %v2719
          %v2722 = vmul.f32 %v2683, %v2719
          %v2723 = vmul.f32 %v2690, %v2719
          %v2724 = vmul.f32 %v2697, %v2719
          %v2725 = vmul.f32 %v2704, %v2719
          %v2726 = vmul.f32 %v2711, %v2719
          %v2727 = vmul.f32 %v2718, %v2719
          %v2736 = vcombine.low %v2720, %v2721
          %v2737 = vcombine.low %v2722, %v2723
          %v2739 = vunpack.c.l.s4 1983009808
          %v2740 = vunpack.c.0.s8 %v2739
          %v2741 = vlaneseq
          %v2742 = vshrl.u32 %v2741, 7
          %v2743 = vsub.s32 %v2740, %v2742
          %v2744 = vrot.slane %v2736, %v2743
          %v2746 = vunpack.c.l.s4 1983009808
          %v2747 = vunpack.c.0.s8 %v2746
          %v2748 = vlaneseq
          %v2749 = vshrl.u32 %v2748, 7
          %v2750 = vsub.s32 %v2747, %v2749
          %v2751 = vrot.slane %v2737, %v2750
          %v2752 = vcombine.low %v2744, %v2751
          %v2753 = vcombine.low %v2724, %v2725
          %v2754 = vcombine.low %v2726, %v2727
          %v2756 = vunpack.c.l.s4 1983009808
          %v2757 = vunpack.c.0.s8 %v2756
          %v2758 = vlaneseq
          %v2759 = vshrl.u32 %v2758, 7
          %v2760 = vsub.s32 %v2757, %v2759
          %v2761 = vrot.slane %v2753, %v2760
          %v2763 = vunpack.c.l.s4 1983009808
          %v2764 = vunpack.c.0.s8 %v2763
          %v2765 = vlaneseq
          %v2766 = vshrl.u32 %v2765, 7
          %v2767 = vsub.s32 %v2764, %v2766
          %v2768 = vrot.slane %v2754, %v2767
          %v2769 = vcombine.low %v2761, %v2768
          %v2772 = vsub.f32 %v2616, %v2752
          %v2773 = vsub.f32 %v2617, %v2769
          %v2774 = vmul.f32 %v2772, %v2772
          %v2775 = vmul.f32 %v2773, %v2773
          %v2778 = vcombine.high %v2774, %v2774
          %v2780 = vunpack.c.l.s4 1983009808
          %v2781 = vunpack.c.0.s8 %v2780
          %v2782 = vlaneseq
          %v2783 = vshrl.u32 %v2782, 7
          %v2784 = vsub.s32 %v2781, %v2783
          %v2785 = vrot.slane %v2774, %v2784
          %v2787 = vunpack.c.l.s4 1983009808
          %v2788 = vunpack.c.0.s8 %v2787
          %v2789 = vlaneseq
          %v2790 = vshrl.u32 %v2789, 7
          %v2791 = vsub.s32 %v2788, %v2790
          %v2792 = vrot.slane %v2778, %v2791
          %v2793 = vcombine.high %v2785, %v2785
          %v2794 = vcombine.high %v2792, %v2792
          %v2795 = vcombine.high %v2775, %v2775
          %v2797 = vunpack.c.l.s4 1983009808
          %v2798 = vunpack.c.0.s8 %v2797
          %v2799 = vlaneseq
          %v2800 = vshrl.u32 %v2799, 7
          %v2801 = vsub.s32 %v2798, %v2800
          %v2802 = vrot.slane %v2775, %v2801
          %v2804 = vunpack.c.l.s4 1983009808
          %v2805 = vunpack.c.0.s8 %v2804
          %v2806 = vlaneseq
          %v2807 = vshrl.u32 %v2806, 7
          %v2808 = vsub.s32 %v2805, %v2807
          %v2809 = vrot.slane %v2795, %v2808
          %v2810 = vcombine.high %v2802, %v2802
          %v2811 = vcombine.high %v2809, %v2809
          %v2820 = vsel %vm2662, %v2785, 0.0
          %v2821 = vrot.slane %v2820, 4
          %v2822 = vadd.f32 %v2820, %v2821
          %v2823 = vrot.slane %v2822, 2
          %v2824 = vadd.f32 %v2822, %v2823
          %v2825 = vrot.slane %v2824, 1
          %v2826 = vadd.f32 %v2824, %v2825
          %v2827 = vsel %vm2662, %v2793, 0.0
          %v2828 = vrot.slane %v2827, 4
          %v2829 = vadd.f32 %v2827, %v2828
          %v2830 = vrot.slane %v2829, 2
          %v2831 = vadd.f32 %v2829, %v2830
          %v2832 = vrot.slane %v2831, 1
          %v2833 = vadd.f32 %v2831, %v2832
          %v2834 = vsel %vm2662, %v2792, 0.0
          %v2835 = vrot.slane %v2834, 4
          %v2836 = vadd.f32 %v2834, %v2835
          %v2837 = vrot.slane %v2836, 2
          %v2838 = vadd.f32 %v2836, %v2837
          %v2839 = vrot.slane %v2838, 1
          %v2840 = vadd.f32 %v2838, %v2839
          %v2841 = vsel %vm2662, %v2794, 0.0
          %v2842 = vrot.slane %v2841, 4
          %v2843 = vadd.f32 %v2841, %v2842
          %v2844 = vrot.slane %v2843, 2
          %v2845 = vadd.f32 %v2843, %v2844
          %v2846 = vrot.slane %v2845, 1
          %v2847 = vadd.f32 %v2845, %v2846
          %v2848 = vsel %vm2662, %v2802, 0.0
          %v2849 = vrot.slane %v2848, 4
          %v2850 = vadd.f32 %v2848, %v2849
          %v2851 = vrot.slane %v2850, 2
          %v2852 = vadd.f32 %v2850, %v2851
          %v2853 = vrot.slane %v2852, 1
          %v2854 = vadd.f32 %v2852, %v2853
          %v2855 = vsel %vm2662, %v2810, 0.0
          %v2856 = vrot.slane %v2855, 4
          %v2857 = vadd.f32 %v2855, %v2856
          %v2858 = vrot.slane %v2857, 2
          %v2859 = vadd.f32 %v2857, %v2858
          %v2860 = vrot.slane %v2859, 1
          %v2861 = vadd.f32 %v2859, %v2860
          %v2862 = vsel %vm2662, %v2809, 0.0
          %v2863 = vrot.slane %v2862, 4
          %v2864 = vadd.f32 %v2862, %v2863
          %v2865 = vrot.slane %v2864, 2
          %v2866 = vadd.f32 %v2864, %v2865
          %v2867 = vrot.slane %v2866, 1
          %v2868 = vadd.f32 %v2866, %v2867
          %v2869 = vsel %vm2662, %v2811, 0.0
          %v2870 = vrot.slane %v2869, 4
          %v2871 = vadd.f32 %v2869, %v2870
          %v2872 = vrot.slane %v2871, 2
          %v2873 = vadd.f32 %v2871, %v2872
          %v2874 = vrot.slane %v2873, 1
          %v2875 = vadd.f32 %v2873, %v2874
          %v2876 = vmul.f32 %v2826, %v2719
          %v2877 = vmul.f32 %v2833, %v2719
          %v2878 = vmul.f32 %v2840, %v2719
          %v2879 = vmul.f32 %v2847, %v2719
          %v2880 = vmul.f32 %v2854, %v2719
          %v2881 = vmul.f32 %v2861, %v2719
          %v2882 = vmul.f32 %v2868, %v2719
          %v2883 = vmul.f32 %v2875, %v2719
          %v2884 = vadd.f32 %v2876, 1e-05
          %v2885 = vadd.f32 %v2877, 1e-05
          %v2886 = vadd.f32 %v2878, 1e-05
          %v2887 = vadd.f32 %v2879, 1e-05
          %v2888 = vadd.f32 %v2880, 1e-05
          %v2889 = vadd.f32 %v2881, 1e-05
          %v2890 = vadd.f32 %v2882, 1e-05
          %v2891 = vadd.f32 %v2883, 1e-05
          %v2892 = vrsqrt.pop %v2884
          %v2893 = vrsqrt.pop %v2885
          %v2894 = vrsqrt.pop %v2886
          %v2895 = vrsqrt.pop %v2887
          %v2896 = vrsqrt.pop %v2888
          %v2897 = vrsqrt.pop %v2889
          %v2898 = vrsqrt.pop %v2890
          %v2899 = vrsqrt.pop %v2891
          %v2908 = vcombine.low %v2892, %v2893
          %v2909 = vcombine.low %v2894, %v2895
          %v2911 = vunpack.c.l.s4 1983009808
          %v2912 = vunpack.c.0.s8 %v2911
          %v2913 = vlaneseq
          %v2914 = vshrl.u32 %v2913, 7
          %v2915 = vsub.s32 %v2912, %v2914
          %v2916 = vrot.slane %v2908, %v2915
          %v2918 = vunpack.c.l.s4 1983009808
          %v2919 = vunpack.c.0.s8 %v2918
          %v2920 = vlaneseq
          %v2921 = vshrl.u32 %v2920, 7
          %v2922 = vsub.s32 %v2919, %v2921
          %v2923 = vrot.slane %v2909, %v2922
          %v2924 = vcombine.low %v2916, %v2923
          %v2925 = vcombine.low %v2896, %v2897
          %v2926 = vcombine.low %v2898, %v2899
          %v2928 = vunpack.c.l.s4 1983009808
          %v2929 = vunpack.c.0.s8 %v2928
          %v2930 = vlaneseq
          %v2931 = vshrl.u32 %v2930, 7
          %v2932 = vsub.s32 %v2929, %v2931
          %v2933 = vrot.slane %v2925, %v2932
          %v2935 = vunpack.c.l.s4 1983009808
          %v2936 = vunpack.c.0.s8 %v2935
          %v2937 = vlaneseq
          %v2938 = vshrl.u32 %v2937, 7
          %v2939 = vsub.s32 %v2936, %v2938
          %v2940 = vrot.slane %v2926, %v2939
          %v2941 = vcombine.low %v2933, %v2940
          %v2944 = vmul.f32 %v2772, %v2924
          %v2945 = vmul.f32 %v2773, %v2941
          %v2946 = vld [vmem:[#allocation8] sm:$0xff]
          %v2948 = vlaneseq
          %v2949 = vshrl.u32 %v2948, 7
          %v2950 = vsub.s32 0, %v2949
          %v2951 = vrot.slane %v2946, %v2950
          %v2952 = vlaneseq
          %v2953 = vshrl.u32 %v2952, 7
          %v2954 = vsub.s32 1, %v2953
          %v2955 = vrot.slane %v2946, %v2954
          %v2956 = vlaneseq
          %v2957 = vshrl.u32 %v2956, 7
          %v2958 = vsub.s32 2, %v2957
          %v2959 = vrot.slane %v2946, %v2958
          %v2960 = vlaneseq
          %v2961 = vshrl.u32 %v2960, 7
          %v2962 = vsub.s32 3, %v2961
          %v2963 = vrot.slane %v2946, %v2962
          %v2964 = vlaneseq
          %v2965 = vshrl.u32 %v2964, 7
          %v2966 = vsub.s32 4, %v2965
          %v2967 = vrot.slane %v2946, %v2966
          %v2968 = vlaneseq
          %v2969 = vshrl.u32 %v2968, 7
          %v2970 = vsub.s32 5, %v2969
          %v2971 = vrot.slane %v2946, %v2970
          %v2972 = vlaneseq
          %v2973 = vshrl.u32 %v2972, 7
          %v2974 = vsub.s32 6, %v2973
          %v2975 = vrot.slane %v2946, %v2974
          %v2976 = vlaneseq
          %v2977 = vshrl.u32 %v2976, 7
          %v2978 = vsub.s32 7, %v2977
          %v2979 = vrot.slane %v2946, %v2978
          %v2980 = vcombine.low %v2951, %v2955
          %v2981 = vcombine.low %v2959, %v2963
          %v2983 = vunpack.c.l.s4 1983009808
          %v2984 = vunpack.c.0.s8 %v2983
          %v2985 = vlaneseq
          %v2986 = vshrl.u32 %v2985, 7
          %v2987 = vsub.s32 %v2984, %v2986
          %v2988 = vrot.slane %v2980, %v2987
          %v2990 = vunpack.c.l.s4 1983009808
          %v2991 = vunpack.c.0.s8 %v2990
          %v2992 = vlaneseq
          %v2993 = vshrl.u32 %v2992, 7
          %v2994 = vsub.s32 %v2991, %v2993
          %v2995 = vrot.slane %v2981, %v2994
          %v2996 = vcombine.low %v2988, %v2995
          %v2997 = vcombine.low %v2967, %v2971
          %v2998 = vcombine.low %v2975, %v2979
          %v3000 = vunpack.c.l.s4 1983009808
          %v3001 = vunpack.c.0.s8 %v3000
          %v3002 = vlaneseq
          %v3003 = vshrl.u32 %v3002, 7
          %v3004 = vsub.s32 %v3001, %v3003
          %v3005 = vrot.slane %v2997, %v3004
          %v3007 = vunpack.c.l.s4 1983009808
          %v3008 = vunpack.c.0.s8 %v3007
          %v3009 = vlaneseq
          %v3010 = vshrl.u32 %v3009, 7
          %v3011 = vsub.s32 %v3008, %v3010
          %v3012 = vrot.slane %v2998, %v3011
          %v3013 = vcombine.low %v3005, %v3012
          %v3016 = vmul.f32 %v2944, %v2996
          %v3017 = vmul.f32 %v2945, %v3013
          %v3018 = vld [vmem:[#allocation9] sm:$0xff]
          %v3020 = vlaneseq
          %v3021 = vshrl.u32 %v3020, 7
          %v3022 = vsub.s32 0, %v3021
          %v3023 = vrot.slane %v3018, %v3022
          %v3024 = vlaneseq
          %v3025 = vshrl.u32 %v3024, 7
          %v3026 = vsub.s32 1, %v3025
          %v3027 = vrot.slane %v3018, %v3026
          %v3028 = vlaneseq
          %v3029 = vshrl.u32 %v3028, 7
          %v3030 = vsub.s32 2, %v3029
          %v3031 = vrot.slane %v3018, %v3030
          %v3032 = vlaneseq
          %v3033 = vshrl.u32 %v3032, 7
          %v3034 = vsub.s32 3, %v3033
          %v3035 = vrot.slane %v3018, %v3034
          %v3036 = vlaneseq
          %v3037 = vshrl.u32 %v3036, 7
          %v3038 = vsub.s32 4, %v3037
          %v3039 = vrot.slane %v3018, %v3038
          %v3040 = vlaneseq
          %v3041 = vshrl.u32 %v3040, 7
          %v3042 = vsub.s32 5, %v3041
          %v3043 = vrot.slane %v3018, %v3042
          %v3044 = vlaneseq
          %v3045 = vshrl.u32 %v3044, 7
          %v3046 = vsub.s32 6, %v3045
          %v3047 = vrot.slane %v3018, %v3046
          %v3048 = vlaneseq
          %v3049 = vshrl.u32 %v3048, 7
          %v3050 = vsub.s32 7, %v3049
          %v3051 = vrot.slane %v3018, %v3050
          %v3052 = vcombine.low %v3023, %v3027
          %v3053 = vcombine.low %v3031, %v3035
          %v3055 = vunpack.c.l.s4 1983009808
          %v3056 = vunpack.c.0.s8 %v3055
          %v3057 = vlaneseq
          %v3058 = vshrl.u32 %v3057, 7
          %v3059 = vsub.s32 %v3056, %v3058
          %v3060 = vrot.slane %v3052, %v3059
          %v3062 = vunpack.c.l.s4 1983009808
          %v3063 = vunpack.c.0.s8 %v3062
          %v3064 = vlaneseq
          %v3065 = vshrl.u32 %v3064, 7
          %v3066 = vsub.s32 %v3063, %v3065
          %v3067 = vrot.slane %v3053, %v3066
          %v3068 = vcombine.low %v3060, %v3067
          %v3069 = vcombine.low %v3039, %v3043
          %v3070 = vcombine.low %v3047, %v3051
          %v3072 = vunpack.c.l.s4 1983009808
          %v3073 = vunpack.c.0.s8 %v3072
          %v3074 = vlaneseq
          %v3075 = vshrl.u32 %v3074, 7
          %v3076 = vsub.s32 %v3073, %v3075
          %v3077 = vrot.slane %v3069, %v3076
          %v3079 = vunpack.c.l.s4 1983009808
          %v3080 = vunpack.c.0.s8 %v3079
          %v3081 = vlaneseq
          %v3082 = vshrl.u32 %v3081, 7
          %v3083 = vsub.s32 %v3080, %v3082
          %v3084 = vrot.slane %v3070, %v3083
          %v3085 = vcombine.low %v3077, %v3084
          %v3088 = vadd.f32 %v3016, %v3068
          %v3089 = vadd.f32 %v3017, %v3085
          %vm3090 = vcmp.gt.f32.partialorder %v3088, 0.0
          %vm3091 = vcmp.gt.f32.partialorder %v3089, 0.0
          %v3092 = vmul.f32 %v3088, 0.2
          %v3093 = vmul.f32 %v3089, 0.2
          %v3094 = vsel %vm3090, %v3088, %v3092
          %v3095 = vsel %vm3091, %v3089, %v3093
          %v3096 = vld [vmem:[#allocation11] sm:$0xff]
          %v3098 = vlaneseq
          %v3099 = vshrl.u32 %v3098, 7
          %v3100 = vsub.s32 0, %v3099
          %v3101 = vrot.slane %v3096, %v3100
          %v3102 = vlaneseq
          %v3103 = vshrl.u32 %v3102, 7
          %v3104 = vsub.s32 1, %v3103
          %v3105 = vrot.slane %v3096, %v3104
          %v3106 = vlaneseq
          %v3107 = vshrl.u32 %v3106, 7
          %v3108 = vsub.s32 2, %v3107
          %v3109 = vrot.slane %v3096, %v3108
          %v3110 = vlaneseq
          %v3111 = vshrl.u32 %v3110, 7
          %v3112 = vsub.s32 3, %v3111
          %v3113 = vrot.slane %v3096, %v3112
          %v3114 = vlaneseq
          %v3115 = vshrl.u32 %v3114, 7
          %v3116 = vsub.s32 4, %v3115
          %v3117 = vrot.slane %v3096, %v3116
          %v3118 = vlaneseq
          %v3119 = vshrl.u32 %v3118, 7
          %v3120 = vsub.s32 5, %v3119
          %v3121 = vrot.slane %v3096, %v3120
          %v3122 = vlaneseq
          %v3123 = vshrl.u32 %v3122, 7
          %v3124 = vsub.s32 6, %v3123
          %v3125 = vrot.slane %v3096, %v3124
          %v3126 = vlaneseq
          %v3127 = vshrl.u32 %v3126, 7
          %v3128 = vsub.s32 7, %v3127
          %v3129 = vrot.slane %v3096, %v3128
          %v3130 = vcombine.low %v3101, %v3105
          %v3131 = vcombine.low %v3109, %v3113
          %v3133 = vunpack.c.l.s4 1983009808
          %v3134 = vunpack.c.0.s8 %v3133
          %v3135 = vlaneseq
          %v3136 = vshrl.u32 %v3135, 7
          %v3137 = vsub.s32 %v3134, %v3136
          %v3138 = vrot.slane %v3130, %v3137
          %v3140 = vunpack.c.l.s4 1983009808
          %v3141 = vunpack.c.0.s8 %v3140
          %v3142 = vlaneseq
          %v3143 = vshrl.u32 %v3142, 7
          %v3144 = vsub.s32 %v3141, %v3143
          %v3145 = vrot.slane %v3131, %v3144
          %v3146 = vcombine.low %v3138, %v3145
          %v3147 = vcombine.low %v3117, %v3121
          %v3148 = vcombine.low %v3125, %v3129
          %v3150 = vunpack.c.l.s4 1983009808
          %v3151 = vunpack.c.0.s8 %v3150
          %v3152 = vlaneseq
          %v3153 = vshrl.u32 %v3152, 7
          %v3154 = vsub.s32 %v3151, %v3153
          %v3155 = vrot.slane %v3147, %v3154
          %v3157 = vunpack.c.l.s4 1983009808
          %v3158 = vunpack.c.0.s8 %v3157
          %v3159 = vlaneseq
          %v3160 = vshrl.u32 %v3159, 7
          %v3161 = vsub.s32 %v3158, %v3160
          %v3162 = vrot.slane %v3148, %v3161
          %v3163 = vcombine.low %v3155, %v3162
          %v3166 = vmul.f32 %v3094, %v3146
          %v3167 = vmul.f32 %v3095, %v3163
          %v3170 = vcombine.high %v3166, %v3166
          %v3172 = vunpack.c.l.s4 1983009808
          %v3173 = vunpack.c.0.s8 %v3172
          %v3174 = vlaneseq
          %v3175 = vshrl.u32 %v3174, 7
          %v3176 = vsub.s32 %v3173, %v3175
          %v3177 = vrot.slane %v3166, %v3176
          %v3179 = vunpack.c.l.s4 1983009808
          %v3180 = vunpack.c.0.s8 %v3179
          %v3181 = vlaneseq
          %v3182 = vshrl.u32 %v3181, 7
          %v3183 = vsub.s32 %v3180, %v3182
          %v3184 = vrot.slane %v3170, %v3183
          %v3185 = vcombine.high %v3177, %v3177
          %v3186 = vcombine.high %v3184, %v3184
          %v3187 = vcombine.high %v3167, %v3167
          %v3189 = vunpack.c.l.s4 1983009808
          %v3190 = vunpack.c.0.s8 %v3189
          %v3191 = vlaneseq
          %v3192 = vshrl.u32 %v3191, 7
          %v3193 = vsub.s32 %v3190, %v3192
          %v3194 = vrot.slane %v3167, %v3193
          %v3196 = vunpack.c.l.s4 1983009808
          %v3197 = vunpack.c.0.s8 %v3196
          %v3198 = vlaneseq
          %v3199 = vshrl.u32 %v3198, 7
          %v3200 = vsub.s32 %v3197, %v3199
          %v3201 = vrot.slane %v3187, %v3200
          %v3202 = vcombine.high %v3194, %v3194
          %v3203 = vcombine.high %v3201, %v3201
          %v3212 = vsel %vm2662, %v3177, 0.0
          %v3213 = vsel %vm2662, %v3185, 0.0
          %v3214 = vadd.f32 %v3212, %v3213
          %v3215 = vsel %vm2662, %v3184, 0.0
          %v3216 = vadd.f32 %v3214, %v3215
          %v3217 = vsel %vm2662, %v3186, 0.0
          %v3218 = vadd.f32 %v3216, %v3217
          %v3219 = vsel %vm2662, %v3194, 0.0
          %v3220 = vadd.f32 %v3218, %v3219
          %v3221 = vsel %vm2662, %v3202, 0.0
          %v3222 = vadd.f32 %v3220, %v3221
          %v3223 = vsel %vm2662, %v3201, 0.0
          %v3224 = vadd.f32 %v3222, %v3223
          %v3225 = vsel %vm2662, %v3203, 0.0
          %v3226 = vadd.f32 %v3224, %v3225
          %3227 = vadd.xlane.f32.xlu0 %v3226
          %v3228 = vpop.xlane.xlu0 %3227
          %v3229 = vld [vmem:[#allocation3] sm:$0x1]
          %v3231 = vlaneseq
          %v3232 = vshrl.u32 %v3231, 7
          %v3233 = vsub.s32 0, %v3232
          %v3234 = vrot.slane %v3229, %v3233
          %v3236 = vadd.f32 %v3228, %v3234
          %v3237 = vsub.f32 0.0, %v3236
          %v3238 = vmul.f32 %v3237, 1.442695
          %v3239 = vpow.pop %v3238
          %v3240 = vadd.f32 %v3239, 1.0
          %v3241 = vrcp.pop %v3240
          %vm3242 = vcmask 1024
          %3243 = vst.msk [vmem:[%s7] sm:$0x3] %vm3242, %v3241
        $region80: #{discriminator_forward.5} parent=47 // pred_fallthru
          _
        // Predicated region
        $region81: #{discriminator_forward.5} parent=47 // pred_check
          %p3244 = pneg %p195
        $region82: #{discriminator_forward.5} parent=47 // pred_check_branch
          %3246 = sbr.rel (%p3244) target = $region84
        $region83: #{discriminator_forward.5} parent=47 // pred_region
          _
        $region84: #{discriminator_forward.5} parent=47 // pred_fallthru
          _
        // Predicated region
        $region85: #{discriminator_forward.5} parent=47 // pred_check
          %p3247 = pneg %p195
        $region86: #{discriminator_forward.5} parent=47 // pred_check_branch
          %3249 = sbr.rel (%p3247) target = $region88
        $region87: #{discriminator_forward.5} parent=47 // pred_region
          _
        $region88: #{discriminator_forward.5} parent=47 // pred_fallthru
          _
      $region48: #{discriminator_forward.5} parent=5 // pred_fallthru
        _
      %p3250 = scmp.le.s32.totalorder 2, %s20
      // Predicated region
      $region89: #{discriminator_forward.5} parent=5 // pred_check
        %p3251 = pneg %p3250
      $region90: #{discriminator_forward.5} parent=5 // pred_check_branch
        %3253 = sbr.rel (%p3251) target = $region92
      $region91: #{discriminator_forward.5} parent=5 // pred_region
        %s3254 = ssub.s32 %s20, 2
      $region92: #{discriminator_forward.5} parent=5 // pred_fallthru
        _
    $region6: #{discriminator_forward.5} parent=1 // loop_footer
      %s24 = sadd.s32 1, %s20
    $region7: #{discriminator_forward.5} parent=1 // loop_footer_branch
      %19 = sbr.rel target = $region3
    $region8: #{discriminator_forward.5} parent=1 // loop_exit
      _
    %3255 = vsyncpa [#allocation5], 1
    %s3256 = scalar_lea.sflag [#allocation5], 1
    %3257 = vsyncpa %s3256, 1
    %3258 = vsyncpa [#allocation7], 1
    %3259 = vsyncpa [#allocation10], 1

</llo_original>
